<compile_context>
chip_gen: v7x
topology: tpu7x:2x2x1
jax: 0.10.0
libtpu: 0.0.40
codegen_flags: <defaults>
</compile_context>

<pallas_src>
import numpy as np

import jax
import jax.numpy as jnp
from jax.experimental import pallas as pl
from jax.experimental.pallas import tpu as pltpu

HIDDEN = 512
LANE = 128


def _round_up(x, m):
    return ((x + m - 1) // m) * m


def qnetwork_kernel(x_ref,
                    w1_ref, s1_ref, b1_ref,
                    w2_ref, s2_ref, b2_ref,
                    w3_ref, s3_ref, b3_ref,
                    w4_ref, s4_ref, b4_ref,
                    out_ref):
    """Fused 4-layer MLP: (Linear -> ReLU) x3 -> Linear (dropout = identity, eval).

    Weights may be bf16 / int8 / fp8; they are widened to bf16 on the VPU, every
    dot accumulates in f32 on the MXU, and the per-output-channel dequant scale is
    folded into the f32 epilogue together with the bias.
    """
    def layer(h, w_ref, s_ref, b_ref):
        acc = jnp.dot(h, w_ref[...].astype(jnp.bfloat16),
                      preferred_element_type=jnp.float32)
        return acc * s_ref[...] + b_ref[...]

    h = x_ref[...]                                              # bf16, lane-dense K
    h = jnp.maximum(layer(h, w1_ref, s1_ref, b1_ref), 0.0).astype(jnp.bfloat16)
    h = jnp.maximum(layer(h, w2_ref, s2_ref, b2_ref), 0.0).astype(jnp.bfloat16)
    h = jnp.maximum(layer(h, w3_ref, s3_ref, b3_ref), 0.0).astype(jnp.bfloat16)
    out_ref[...] = layer(h, w4_ref, s4_ref, b4_ref).astype(out_ref.dtype)


def prepare_params(torch_params, *, quant="bf16"):
    """One-time conversion of PyTorch-layout params (do OUTSIDE the hot path).

    (out, in) f32 weights -> (in, out) narrow dtype; biases -> (1, out) f32;
    per-output-channel dequant scales -> (1, out) f32 (ones for quant='bf16').
    Layer-1 input dim and layer-4 output dim are zero-padded to multiples of 128.

    quant: 'bf16' (all generations), 'int8' (v5e/v6e int MXU path),
           'fp8'  (v7x; e4m3 -- its MXU has no int datapath).
    """
    prep = {}
    for i in (1, 2, 3, 4):
        w = torch_params[f"w{i}"].T.astype(jnp.float32)        # (in, out)
        b = torch_params[f"b{i}"][None, :].astype(jnp.float32)  # (1, out)
        if i == 1:  # pad K (state_size) to a full 128-lane MXU pass
            w = jnp.pad(w, ((0, _round_up(w.shape[0], LANE) - w.shape[0]), (0, 0)))
        if i == 4:  # pad final out dim to 128 lanes -> unmasked lane-dense store
            pad = _round_up(w.shape[1], LANE) - w.shape[1]
            w = jnp.pad(w, ((0, 0), (0, pad)))
            b = jnp.pad(b, ((0, 0), (0, pad)))
        if quant == "int8":
            s = jnp.maximum(jnp.max(jnp.abs(w), axis=0, keepdims=True), 1e-8) / 127.0
            wq = jnp.clip(jnp.round(w / s), -127.0, 127.0).astype(jnp.int8)
        elif quant == "fp8":
            s = jnp.maximum(jnp.max(jnp.abs(w), axis=0, keepdims=True), 1e-8) / 448.0
            wq = (w / s).astype(jnp.float8_e4m3fn)
        else:
            s = jnp.ones((1, w.shape[1]), jnp.float32)
            wq = w.astype(jnp.bfloat16)
        prep[f"w{i}"] = wq
        prep[f"s{i}"] = s.astype(jnp.float32)
        prep[f"b{i}"] = b
    return prep


def qnetwork_forward(x, prep, action_size, *, block_m=512, out_dtype=jnp.float32):
    """x: (batch, state_size) f32/bf16.  prep: output of prepare_params."""
    batch, state_size = x.shape
    in_pad = prep["w1"].shape[0]
    out_pad = prep["b4"].shape[1]

    # Row tile: multiple of 16 sublanes (bf16 activations). Default 512 so each
    # grid step carries enough MXU work to amortize the ~0.35 us step overhead;
    # large batches then give grid >= 2 (both TensorCores on v7x via "parallel").
    bm = min(_round_up(block_m, 16), _round_up(batch, 16))
    batch_pad = _round_up(batch, bm)
    x = jnp.pad(x.astype(jnp.bfloat16),
                ((0, batch_pad - batch), (0, in_pad - state_size)))
    grid = (batch_pad // bm,)

    weight_bytes = sum(int(prep[f"w{i}"].size) * prep[f"w{i}"].dtype.itemsize
                       for i in (1, 2, 3, 4))
    other_bytes = sum(int(prep[f"{k}{i}"].size) * 4
                      for i in (1, 2, 3, 4) for k in ("s", "b"))
    flops = 2 * batch_pad * (in_pad * HIDDEN + 2 * HIDDEN * HIDDEN
                             + HIDDEN * out_pad)
    bytes_accessed = (weight_bytes + other_bytes
                      + batch_pad * in_pad * 2
                      + batch_pad * out_pad * np.dtype(out_dtype).itemsize)

    def call(single_buffer_weights):
        def const_spec(arr):
            # Grid-invariant operand (constant index_map): fetched once per call;
            # single-buffered when supported (skip the useless second buffer).
            if single_buffer_weights:
                return pl.BlockSpec(arr.shape, lambda i: (0, 0),
                                    pipeline_mode=pl.Buffered(1))
            return pl.BlockSpec(arr.shape, lambda i: (0, 0))

        in_specs = [pl.BlockSpec((bm, in_pad), lambda i: (i, 0))]
        args = [x]
        for i in (1, 2, 3, 4):
            w, s, b = prep[f"w{i}"], prep[f"s{i}"], prep[f"b{i}"]
            in_specs += [const_spec(w), const_spec(s), const_spec(b)]
            args += [w, s, b]

        return pl.pallas_call(
            qnetwork_kernel,
            out_shape=jax.ShapeDtypeStruct((batch_pad, out_pad), out_dtype),
            grid=grid,
            in_specs=in_specs,
            out_specs=pl.BlockSpec((bm, out_pad), lambda i: (i, 0)),
            compiler_params=pltpu.CompilerParams(
                dimension_semantics=("parallel",)),
            cost_estimate=pl.CostEstimate(
                flops=flops, transcendentals=0, bytes_accessed=bytes_accessed),
        )(*args)

    try:
        out = call(True)
    except Exception:
        # pipeline_mode=pl.Buffered(1) not accepted by this jax/Mosaic build;
        # fall back to default double-buffering (still correct, ~2.4 MB VMEM).
        out = call(False)

    return out[:batch, :action_size]


def init_params(key, state_size, action_size, hidden_units=HIDDEN):
    """Deterministic init mimicking nn.Linear defaults: U(-1/sqrt(fan_in), +)."""
    dims = [(hidden_units, state_size),
            (hidden_units, hidden_units),
            (hidden_units, hidden_units),
            (action_size, hidden_units)]
    params = {}
    for i, (out_f, in_f) in enumerate(dims, start=1):
        key, kw, kb = jax.random.split(key, 3)
        bound = 1.0 / float(in_f) ** 0.5
        params[f"w{i}"] = jax.random.uniform(
            kw, (out_f, in_f), jnp.float32, minval=-bound, maxval=bound)
        params[f"b{i}"] = jax.random.uniform(
            kb, (out_f,), jnp.float32, minval=-bound, maxval=bound)
    return params


def reference_forward(x, prep, action_size):
    """Pure-JAX reference mirroring the kernel math (bf16 operands, f32 accum)."""
    in_pad = prep["w1"].shape[0]
    h = jnp.pad(x, ((0, 0), (0, in_pad - x.shape[1]))).astype(jnp.bfloat16)
    for i in (1, 2, 3, 4):
        acc = jnp.dot(h, prep[f"w{i}"].astype(jnp.bfloat16),
                      preferred_element_type=jnp.float32)
        acc = acc * prep[f"s{i}"] + prep[f"b{i}"]
        if i < 4:
            h = jnp.maximum(acc, 0.0).astype(jnp.bfloat16)
    return acc[:, :action_size]


if __name__ == "__main__":
    state_size = 37      # e.g. Banana environment observation size
    action_size = 4

    key = jax.random.PRNGKey(0)
    key, kx_small, kx_big = jax.random.split(key, 3)

    torch_params = init_params(key, state_size, action_size)
    prep = prepare_params(torch_params)      # one-time layout/dtype conversion

    # Small act-path batch (grid=(1,)).
    x_small = jax.random.normal(kx_small, (8, state_size), jnp.float32)
    out_small = jax.block_until_ready(qnetwork_forward(x_small, prep, action_size))
    ref_small = reference_forward(x_small, prep, action_size)
    assert out_small.shape == (8, action_size)
    assert jnp.allclose(out_small, ref_small, atol=5e-2, rtol=5e-2), \
        "small-batch mismatch vs JAX reference"

    # Replay/eval batch exercising bm=512 and grid=(2,) (megacore rows on v7x).
    x_big = jax.random.normal(kx_big, (1024, state_size), jnp.float32)
    out_big = jax.block_until_ready(qnetwork_forward(x_big, prep, action_size))
    ref_big = reference_forward(x_big, prep, action_size)
    assert out_big.shape == (1024, action_size)
    assert jnp.allclose(out_big, ref_big, atol=5e-2, rtol=5e-2), \
        "large-batch mismatch vs JAX reference"

    print("KERNEL_OK")
</pallas_src>

<mosaic_0001>
module attributes {stable_mosaic.version = 11 : i64} {
  func.func @qnetwork_kernel(%arg0: i32, %arg1: memref<16x128xbf16, #tpu.memory_space<vmem>>, %arg2: memref<128x512xbf16, #tpu.memory_space<vmem>>, %arg3: memref<1x512xf32, #tpu.memory_space<vmem>>, %arg4: memref<1x512xf32, #tpu.memory_space<vmem>>, %arg5: memref<512x512xbf16, #tpu.memory_space<vmem>>, %arg6: memref<1x512xf32, #tpu.memory_space<vmem>>, %arg7: memref<1x512xf32, #tpu.memory_space<vmem>>, %arg8: memref<512x512xbf16, #tpu.memory_space<vmem>>, %arg9: memref<1x512xf32, #tpu.memory_space<vmem>>, %arg10: memref<1x512xf32, #tpu.memory_space<vmem>>, %arg11: memref<512x128xbf16, #tpu.memory_space<vmem>>, %arg12: memref<1x128xf32, #tpu.memory_space<vmem>>, %arg13: memref<1x128xf32, #tpu.memory_space<vmem>>, %arg14: memref<16x128xf32, #tpu.memory_space<vmem>>) attributes {dimension_semantics = [#tpu.dimension_semantics<parallel>], iteration_bounds = array<i64: 1>, scalar_prefetch = 0 : i64, scratch_operands = 0 : i64, tpu.core_type = #tpu.core_type<tc>, window_params = [{transform_indices = @transform_0, window_bounds = array<i64: 16, 128>}, {pipeline_mode = #tpu.pipeline_mode<synchronous>, transform_indices = @transform_1, window_bounds = array<i64: 128, 512>}, {pipeline_mode = #tpu.pipeline_mode<synchronous>, transform_indices = @transform_2, window_bounds = array<i64: 1, 512>}, {pipeline_mode = #tpu.pipeline_mode<synchronous>, transform_indices = @transform_3, window_bounds = array<i64: 1, 512>}, {pipeline_mode = #tpu.pipeline_mode<synchronous>, transform_indices = @transform_4, window_bounds = array<i64: 512, 512>}, {pipeline_mode = #tpu.pipeline_mode<synchronous>, transform_indices = @transform_5, window_bounds = array<i64: 1, 512>}, {pipeline_mode = #tpu.pipeline_mode<synchronous>, transform_indices = @transform_6, window_bounds = array<i64: 1, 512>}, {pipeline_mode = #tpu.pipeline_mode<synchronous>, transform_indices = @transform_7, window_bounds = array<i64: 512, 512>}, {pipeline_mode = #tpu.pipeline_mode<synchronous>, transform_indices = @transform_8, window_bounds = array<i64: 1, 512>}, {pipeline_mode = #tpu.pipeline_mode<synchronous>, transform_indices = @transform_9, window_bounds = array<i64: 1, 512>}, {pipeline_mode = #tpu.pipeline_mode<synchronous>, transform_indices = @transform_10, window_bounds = array<i64: 512, 128>}, {pipeline_mode = #tpu.pipeline_mode<synchronous>, transform_indices = @transform_11, window_bounds = array<i64: 1, 128>}, {pipeline_mode = #tpu.pipeline_mode<synchronous>, transform_indices = @transform_12, window_bounds = array<i64: 1, 128>}, {transform_indices = @transform_13, window_bounds = array<i64: 16, 128>}]} {
    %c0 = arith.constant 0 : index
    %c0_0 = arith.constant 0 : index
    %0 = vector.load %arg1[%c0, %c0_0] : memref<16x128xbf16, #tpu.memory_space<vmem>>, vector<16x128xbf16>
    %c0_1 = arith.constant 0 : index
    %c0_2 = arith.constant 0 : index
    %1 = vector.load %arg2[%c0_1, %c0_2] : memref<128x512xbf16, #tpu.memory_space<vmem>>, vector<128x512xbf16>
    %cst = arith.constant dense<0.000000e+00> : vector<16x512xf32>
    %2 = tpu.matmul %0, %1, %cst {dimension_numbers = #tpu.dot_dimension_numbers<[1], [0], [0], [1], [0, 0, 1, 1], [], []>} : vector<16x128xbf16>, vector<128x512xbf16>, vector<16x512xf32> -> vector<16x512xf32>
    %c0_3 = arith.constant 0 : index
    %c0_4 = arith.constant 0 : index
    %3 = vector.load %arg3[%c0_3, %c0_4] : memref<1x512xf32, #tpu.memory_space<vmem>>, vector<1x512xf32>
    %4 = vector.broadcast %3 : vector<1x512xf32> to vector<16x512xf32>
    %5 = arith.mulf %2, %4 : vector<16x512xf32>
    %c0_5 = arith.constant 0 : index
    %c0_6 = arith.constant 0 : index
    %6 = vector.load %arg4[%c0_5, %c0_6] : memref<1x512xf32, #tpu.memory_space<vmem>>, vector<1x512xf32>
    %7 = vector.broadcast %6 : vector<1x512xf32> to vector<16x512xf32>
    %8 = arith.addf %5, %7 : vector<16x512xf32>
    %cst_7 = arith.constant 0.000000e+00 : f32
    %9 = vector.broadcast %cst_7 : f32 to vector<16x512xf32>
    %10 = arith.maximumf %8, %9 : vector<16x512xf32>
    %11 = arith.truncf %10 : vector<16x512xf32> to vector<16x512xbf16>
    %c0_8 = arith.constant 0 : index
    %c0_9 = arith.constant 0 : index
    %12 = vector.load %arg5[%c0_8, %c0_9] : memref<512x512xbf16, #tpu.memory_space<vmem>>, vector<512x512xbf16>
    %cst_10 = arith.constant dense<0.000000e+00> : vector<16x512xf32>
    %13 = tpu.matmul %11, %12, %cst_10 {dimension_numbers = #tpu.dot_dimension_numbers<[1], [0], [0], [1], [0, 0, 1, 1], [], []>} : vector<16x512xbf16>, vector<512x512xbf16>, vector<16x512xf32> -> vector<16x512xf32>
    %c0_11 = arith.constant 0 : index
    %c0_12 = arith.constant 0 : index
    %14 = vector.load %arg6[%c0_11, %c0_12] : memref<1x512xf32, #tpu.memory_space<vmem>>, vector<1x512xf32>
    %15 = vector.broadcast %14 : vector<1x512xf32> to vector<16x512xf32>
    %16 = arith.mulf %13, %15 : vector<16x512xf32>
    %c0_13 = arith.constant 0 : index
    %c0_14 = arith.constant 0 : index
    %17 = vector.load %arg7[%c0_13, %c0_14] : memref<1x512xf32, #tpu.memory_space<vmem>>, vector<1x512xf32>
    %18 = vector.broadcast %17 : vector<1x512xf32> to vector<16x512xf32>
    %19 = arith.addf %16, %18 : vector<16x512xf32>
    %cst_15 = arith.constant 0.000000e+00 : f32
    %20 = vector.broadcast %cst_15 : f32 to vector<16x512xf32>
    %21 = arith.maximumf %19, %20 : vector<16x512xf32>
    %22 = arith.truncf %21 : vector<16x512xf32> to vector<16x512xbf16>
    %c0_16 = arith.constant 0 : index
    %c0_17 = arith.constant 0 : index
    %23 = vector.load %arg8[%c0_16, %c0_17] : memref<512x512xbf16, #tpu.memory_space<vmem>>, vector<512x512xbf16>
    %cst_18 = arith.constant dense<0.000000e+00> : vector<16x512xf32>
    %24 = tpu.matmul %22, %23, %cst_18 {dimension_numbers = #tpu.dot_dimension_numbers<[1], [0], [0], [1], [0, 0, 1, 1], [], []>} : vector<16x512xbf16>, vector<512x512xbf16>, vector<16x512xf32> -> vector<16x512xf32>
    %c0_19 = arith.constant 0 : index
    %c0_20 = arith.constant 0 : index
    %25 = vector.load %arg9[%c0_19, %c0_20] : memref<1x512xf32, #tpu.memory_space<vmem>>, vector<1x512xf32>
    %26 = vector.broadcast %25 : vector<1x512xf32> to vector<16x512xf32>
    %27 = arith.mulf %24, %26 : vector<16x512xf32>
    %c0_21 = arith.constant 0 : index
    %c0_22 = arith.constant 0 : index
    %28 = vector.load %arg10[%c0_21, %c0_22] : memref<1x512xf32, #tpu.memory_space<vmem>>, vector<1x512xf32>
    %29 = vector.broadcast %28 : vector<1x512xf32> to vector<16x512xf32>
    %30 = arith.addf %27, %29 : vector<16x512xf32>
    %cst_23 = arith.constant 0.000000e+00 : f32
    %31 = vector.broadcast %cst_23 : f32 to vector<16x512xf32>
    %32 = arith.maximumf %30, %31 : vector<16x512xf32>
    %33 = arith.truncf %32 : vector<16x512xf32> to vector<16x512xbf16>
    %c0_24 = arith.constant 0 : index
    %c0_25 = arith.constant 0 : index
    %34 = vector.load %arg11[%c0_24, %c0_25] : memref<512x128xbf16, #tpu.memory_space<vmem>>, vector<512x128xbf16>
    %cst_26 = arith.constant dense<0.000000e+00> : vector<16x128xf32>
    %35 = tpu.matmul %33, %34, %cst_26 {dimension_numbers = #tpu.dot_dimension_numbers<[1], [0], [0], [1], [0, 0, 1, 1], [], []>} : vector<16x512xbf16>, vector<512x128xbf16>, vector<16x128xf32> -> vector<16x128xf32>
    %c0_27 = arith.constant 0 : index
    %c0_28 = arith.constant 0 : index
    %36 = vector.load %arg12[%c0_27, %c0_28] : memref<1x128xf32, #tpu.memory_space<vmem>>, vector<1x128xf32>
    %37 = vector.broadcast %36 : vector<1x128xf32> to vector<16x128xf32>
    %38 = arith.mulf %35, %37 : vector<16x128xf32>
    %c0_29 = arith.constant 0 : index
    %c0_30 = arith.constant 0 : index
    %39 = vector.load %arg13[%c0_29, %c0_30] : memref<1x128xf32, #tpu.memory_space<vmem>>, vector<1x128xf32>
    %40 = vector.broadcast %39 : vector<1x128xf32> to vector<16x128xf32>
    %41 = arith.addf %38, %40 : vector<16x128xf32>
    %c0_31 = arith.constant 0 : index
    %c0_32 = arith.constant 0 : index
    %42 = vector.load %arg14[%c0_31, %c0_32] : memref<16x128xf32, #tpu.memory_space<vmem>>, vector<16x128xf32>
    tpu.vector_store %arg14[%c0_31, %c0_32], %41 {strides = array<i32>} : memref<16x128xf32, #tpu.memory_space<vmem>>, vector<16x128xf32>,
    return
  }
  func.func @transform_0(%arg0: i32) -> (i32, i32) {
    %c0_i32 = arith.constant 0 : i32
    %c0_i32_0 = arith.constant 0 : i32
    return %arg0, %c0_i32 : i32, i32
  }
  func.func @transform_1(%arg0: i32) -> (i32, i32) {
    %c0_i32 = arith.constant 0 : i32
    %c0_i32_0 = arith.constant 0 : i32
    %c0_i32_1 = arith.constant 0 : i32
    return %c0_i32, %c0_i32_0 : i32, i32
  }
  func.func @transform_2(%arg0: i32) -> (i32, i32) {
    %c0_i32 = arith.constant 0 : i32
    %c0_i32_0 = arith.constant 0 : i32
    %c0_i32_1 = arith.constant 0 : i32
    return %c0_i32, %c0_i32_0 : i32, i32
  }
  func.func @transform_3(%arg0: i32) -> (i32, i32) {
    %c0_i32 = arith.constant 0 : i32
    %c0_i32_0 = arith.constant 0 : i32
    %c0_i32_1 = arith.constant 0 : i32
    return %c0_i32, %c0_i32_0 : i32, i32
  }
  func.func @transform_4(%arg0: i32) -> (i32, i32) {
    %c0_i32 = arith.constant 0 : i32
    %c0_i32_0 = arith.constant 0 : i32
    %c0_i32_1 = arith.constant 0 : i32
    return %c0_i32, %c0_i32_0 : i32, i32
  }
  func.func @transform_5(%arg0: i32) -> (i32, i32) {
    %c0_i32 = arith.constant 0 : i32
    %c0_i32_0 = arith.constant 0 : i32
    %c0_i32_1 = arith.constant 0 : i32
    return %c0_i32, %c0_i32_0 : i32, i32
  }
  func.func @transform_6(%arg0: i32) -> (i32, i32) {
    %c0_i32 = arith.constant 0 : i32
    %c0_i32_0 = arith.constant 0 : i32
    %c0_i32_1 = arith.constant 0 : i32
    return %c0_i32, %c0_i32_0 : i32, i32
  }
  func.func @transform_7(%arg0: i32) -> (i32, i32) {
    %c0_i32 = arith.constant 0 : i32
    %c0_i32_0 = arith.constant 0 : i32
    %c0_i32_1 = arith.constant 0 : i32
    return %c0_i32, %c0_i32_0 : i32, i32
  }
  func.func @transform_8(%arg0: i32) -> (i32, i32) {
    %c0_i32 = arith.constant 0 : i32
    %c0_i32_0 = arith.constant 0 : i32
    %c0_i32_1 = arith.constant 0 : i32
    return %c0_i32, %c0_i32_0 : i32, i32
  }
  func.func @transform_9(%arg0: i32) -> (i32, i32) {
    %c0_i32 = arith.constant 0 : i32
    %c0_i32_0 = arith.constant 0 : i32
    %c0_i32_1 = arith.constant 0 : i32
    return %c0_i32, %c0_i32_0 : i32, i32
  }
  func.func @transform_10(%arg0: i32) -> (i32, i32) {
    %c0_i32 = arith.constant 0 : i32
    %c0_i32_0 = arith.constant 0 : i32
    %c0_i32_1 = arith.constant 0 : i32
    return %c0_i32, %c0_i32_0 : i32, i32
  }
  func.func @transform_11(%arg0: i32) -> (i32, i32) {
    %c0_i32 = arith.constant 0 : i32
    %c0_i32_0 = arith.constant 0 : i32
    %c0_i32_1 = arith.constant 0 : i32
    return %c0_i32, %c0_i32_0 : i32, i32
  }
  func.func @transform_12(%arg0: i32) -> (i32, i32) {
    %c0_i32 = arith.constant 0 : i32
    %c0_i32_0 = arith.constant 0 : i32
    %c0_i32_1 = arith.constant 0 : i32
    return %c0_i32, %c0_i32_0 : i32, i32
  }
  func.func @transform_13(%arg0: i32) -> (i32, i32) {
    %c0_i32 = arith.constant 0 : i32
    %c0_i32_0 = arith.constant 0 : i32
    return %arg0, %c0_i32 : i32, i32
  }
}

module attributes {stable_mosaic.version = 11 : i64} {
  func.func @qnetwork_kernel(%arg0: i32, %arg1: memref<16x128xbf16, #tpu.memory_space<vmem>>, %arg2: memref<128x512xbf16, #tpu.memory_space<vmem>>, %arg3: memref<1x512xf32, #tpu.memory_space<vmem>>, %arg4: memref<1x512xf32, #tpu.memory_space<vmem>>, %arg5: memref<512x512xbf16, #tpu.memory_space<vmem>>, %arg6: memref<1x512xf32, #tpu.memory_space<vmem>>, %arg7: memref<1x512xf32, #tpu.memory_space<vmem>>, %arg8: memref<512x512xbf16, #tpu.memory_space<vmem>>, %arg9: memref<1x512xf32, #tpu.memory_space<vmem>>, %arg10: memref<1x512xf32, #tpu.memory_space<vmem>>, %arg11: memref<512x128xbf16, #tpu.memory_space<vmem>>, %arg12: memref<1x128xf32, #tpu.memory_space<vmem>>, %arg13: memref<1x128xf32, #tpu.memory_space<vmem>>, %arg14: memref<16x128xf32, #tpu.memory_space<vmem>>) attributes {dimension_semantics = [#tpu.dimension_semantics<parallel>], iteration_bounds = array<i64: 1>, scalar_prefetch = 0 : i64, scratch_operands = 0 : i64, tpu.core_type = #tpu.core_type<tc>, window_params = [{transform_indices = @transform_0, window_bounds = array<i64: 16, 128>}, {pipeline_mode = #tpu.pipeline_mode<synchronous>, transform_indices = @transform_1, window_bounds = array<i64: 128, 512>}, {pipeline_mode = #tpu.pipeline_mode<synchronous>, transform_indices = @transform_2, window_bounds = array<i64: 1, 512>}, {pipeline_mode = #tpu.pipeline_mode<synchronous>, transform_indices = @transform_3, window_bounds = array<i64: 1, 512>}, {pipeline_mode = #tpu.pipeline_mode<synchronous>, transform_indices = @transform_4, window_bounds = array<i64: 512, 512>}, {pipeline_mode = #tpu.pipeline_mode<synchronous>, transform_indices = @transform_5, window_bounds = array<i64: 1, 512>}, {pipeline_mode = #tpu.pipeline_mode<synchronous>, transform_indices = @transform_6, window_bounds = array<i64: 1, 512>}, {pipeline_mode = #tpu.pipeline_mode<synchronous>, transform_indices = @transform_7, window_bounds = array<i64: 512, 512>}, {pipeline_mode = #tpu.pipeline_mode<synchronous>, transform_indices = @transform_8, window_bounds = array<i64: 1, 512>}, {pipeline_mode = #tpu.pipeline_mode<synchronous>, transform_indices = @transform_9, window_bounds = array<i64: 1, 512>}, {pipeline_mode = #tpu.pipeline_mode<synchronous>, transform_indices = @transform_10, window_bounds = array<i64: 512, 128>}, {pipeline_mode = #tpu.pipeline_mode<synchronous>, transform_indices = @transform_11, window_bounds = array<i64: 1, 128>}, {pipeline_mode = #tpu.pipeline_mode<synchronous>, transform_indices = @transform_12, window_bounds = array<i64: 1, 128>}, {transform_indices = @transform_13, window_bounds = array<i64: 16, 128>}]} {
    %c0 = arith.constant 0 : index
    %c0_0 = arith.constant 0 : index
    %0 = vector.load %arg1[%c0, %c0_0] : memref<16x128xbf16, #tpu.memory_space<vmem>>, vector<16x128xbf16>
    %c0_1 = arith.constant 0 : index
    %c0_2 = arith.constant 0 : index
    %1 = vector.load %arg2[%c0_1, %c0_2] : memref<128x512xbf16, #tpu.memory_space<vmem>>, vector<128x512xbf16>
    %cst = arith.constant dense<0.000000e+00> : vector<16x512xf32>
    %2 = tpu.matmul %0, %1, %cst {dimension_numbers = #tpu.dot_dimension_numbers<[1], [0], [0], [1], [0, 0, 1, 1], [], []>} : vector<16x128xbf16>, vector<128x512xbf16>, vector<16x512xf32> -> vector<16x512xf32>
    %c0_3 = arith.constant 0 : index
    %c0_4 = arith.constant 0 : index
    %3 = vector.load %arg3[%c0_3, %c0_4] : memref<1x512xf32, #tpu.memory_space<vmem>>, vector<1x512xf32>
    %4 = vector.broadcast %3 : vector<1x512xf32> to vector<16x512xf32>
    %5 = arith.mulf %2, %4 : vector<16x512xf32>
    %c0_5 = arith.constant 0 : index
    %c0_6 = arith.constant 0 : index
    %6 = vector.load %arg4[%c0_5, %c0_6] : memref<1x512xf32, #tpu.memory_space<vmem>>, vector<1x512xf32>
    %7 = vector.broadcast %6 : vector<1x512xf32> to vector<16x512xf32>
    %8 = arith.addf %5, %7 : vector<16x512xf32>
    %cst_7 = arith.constant 0.000000e+00 : f32
    %9 = vector.broadcast %cst_7 : f32 to vector<16x512xf32>
    %10 = arith.maximumf %8, %9 : vector<16x512xf32>
    %11 = arith.truncf %10 : vector<16x512xf32> to vector<16x512xbf16>
    %c0_8 = arith.constant 0 : index
    %c0_9 = arith.constant 0 : index
    %12 = vector.load %arg5[%c0_8, %c0_9] : memref<512x512xbf16, #tpu.memory_space<vmem>>, vector<512x512xbf16>
    %cst_10 = arith.constant dense<0.000000e+00> : vector<16x512xf32>
    %13 = tpu.matmul %11, %12, %cst_10 {dimension_numbers = #tpu.dot_dimension_numbers<[1], [0], [0], [1], [0, 0, 1, 1], [], []>} : vector<16x512xbf16>, vector<512x512xbf16>, vector<16x512xf32> -> vector<16x512xf32>
    %c0_11 = arith.constant 0 : index
    %c0_12 = arith.constant 0 : index
    %14 = vector.load %arg6[%c0_11, %c0_12] : memref<1x512xf32, #tpu.memory_space<vmem>>, vector<1x512xf32>
    %15 = vector.broadcast %14 : vector<1x512xf32> to vector<16x512xf32>
    %16 = arith.mulf %13, %15 : vector<16x512xf32>
    %c0_13 = arith.constant 0 : index
    %c0_14 = arith.constant 0 : index
    %17 = vector.load %arg7[%c0_13, %c0_14] : memref<1x512xf32, #tpu.memory_space<vmem>>, vector<1x512xf32>
    %18 = vector.broadcast %17 : vector<1x512xf32> to vector<16x512xf32>
    %19 = arith.addf %16, %18 : vector<16x512xf32>
    %cst_15 = arith.constant 0.000000e+00 : f32
    %20 = vector.broadcast %cst_15 : f32 to vector<16x512xf32>
    %21 = arith.maximumf %19, %20 : vector<16x512xf32>
    %22 = arith.truncf %21 : vector<16x512xf32> to vector<16x512xbf16>
    %c0_16 = arith.constant 0 : index
    %c0_17 = arith.constant 0 : index
    %23 = vector.load %arg8[%c0_16, %c0_17] : memref<512x512xbf16, #tpu.memory_space<vmem>>, vector<512x512xbf16>
    %cst_18 = arith.constant dense<0.000000e+00> : vector<16x512xf32>
    %24 = tpu.matmul %22, %23, %cst_18 {dimension_numbers = #tpu.dot_dimension_numbers<[1], [0], [0], [1], [0, 0, 1, 1], [], []>} : vector<16x512xbf16>, vector<512x512xbf16>, vector<16x512xf32> -> vector<16x512xf32>
    %c0_19 = arith.constant 0 : index
    %c0_20 = arith.constant 0 : index
    %25 = vector.load %arg9[%c0_19, %c0_20] : memref<1x512xf32, #tpu.memory_space<vmem>>, vector<1x512xf32>
    %26 = vector.broadcast %25 : vector<1x512xf32> to vector<16x512xf32>
    %27 = arith.mulf %24, %26 : vector<16x512xf32>
    %c0_21 = arith.constant 0 : index
    %c0_22 = arith.constant 0 : index
    %28 = vector.load %arg10[%c0_21, %c0_22] : memref<1x512xf32, #tpu.memory_space<vmem>>, vector<1x512xf32>
    %29 = vector.broadcast %28 : vector<1x512xf32> to vector<16x512xf32>
    %30 = arith.addf %27, %29 : vector<16x512xf32>
    %cst_23 = arith.constant 0.000000e+00 : f32
    %31 = vector.broadcast %cst_23 : f32 to vector<16x512xf32>
    %32 = arith.maximumf %30, %31 : vector<16x512xf32>
    %33 = arith.truncf %32 : vector<16x512xf32> to vector<16x512xbf16>
    %c0_24 = arith.constant 0 : index
    %c0_25 = arith.constant 0 : index
    %34 = vector.load %arg11[%c0_24, %c0_25] : memref<512x128xbf16, #tpu.memory_space<vmem>>, vector<512x128xbf16>
    %cst_26 = arith.constant dense<0.000000e+00> : vector<16x128xf32>
    %35 = tpu.matmul %33, %34, %cst_26 {dimension_numbers = #tpu.dot_dimension_numbers<[1], [0], [0], [1], [0, 0, 1, 1], [], []>} : vector<16x512xbf16>, vector<512x128xbf16>, vector<16x128xf32> -> vector<16x128xf32>
    %c0_27 = arith.constant 0 : index
    %c0_28 = arith.constant 0 : index
    %36 = vector.load %arg12[%c0_27, %c0_28] : memref<1x128xf32, #tpu.memory_space<vmem>>, vector<1x128xf32>
    %37 = vector.broadcast %36 : vector<1x128xf32> to vector<16x128xf32>
    %38 = arith.mulf %35, %37 : vector<16x128xf32>
    %c0_29 = arith.constant 0 : index
    %c0_30 = arith.constant 0 : index
    %39 = vector.load %arg13[%c0_29, %c0_30] : memref<1x128xf32, #tpu.memory_space<vmem>>, vector<1x128xf32>
    %40 = vector.broadcast %39 : vector<1x128xf32> to vector<16x128xf32>
    %41 = arith.addf %38, %40 : vector<16x128xf32>
    %c0_31 = arith.constant 0 : index
    %c0_32 = arith.constant 0 : index
    %42 = vector.load %arg14[%c0_31, %c0_32] : memref<16x128xf32, #tpu.memory_space<vmem>>, vector<16x128xf32>
    tpu.vector_store %arg14[%c0_31, %c0_32], %41 {strides = array<i32>} : memref<16x128xf32, #tpu.memory_space<vmem>>, vector<16x128xf32>,
    return
  }
  func.func @transform_0(%arg0: i32) -> (i32, i32) {
    %c0_i32 = arith.constant 0 : i32
    %c0_i32_0 = arith.constant 0 : i32
    return %arg0, %c0_i32 : i32, i32
  }
  func.func @transform_1(%arg0: i32) -> (i32, i32) {
    %c0_i32 = arith.constant 0 : i32
    %c0_i32_0 = arith.constant 0 : i32
    %c0_i32_1 = arith.constant 0 : i32
    return %c0_i32, %c0_i32_0 : i32, i32
  }
  func.func @transform_2(%arg0: i32) -> (i32, i32) {
    %c0_i32 = arith.constant 0 : i32
    %c0_i32_0 = arith.constant 0 : i32
    %c0_i32_1 = arith.constant 0 : i32
    return %c0_i32, %c0_i32_0 : i32, i32
  }
  func.func @transform_3(%arg0: i32) -> (i32, i32) {
    %c0_i32 = arith.constant 0 : i32
    %c0_i32_0 = arith.constant 0 : i32
    %c0_i32_1 = arith.constant 0 : i32
    return %c0_i32, %c0_i32_0 : i32, i32
  }
  func.func @transform_4(%arg0: i32) -> (i32, i32) {
    %c0_i32 = arith.constant 0 : i32
    %c0_i32_0 = arith.constant 0 : i32
    %c0_i32_1 = arith.constant 0 : i32
    return %c0_i32, %c0_i32_0 : i32, i32
  }
  func.func @transform_5(%arg0: i32) -> (i32, i32) {
    %c0_i32 = arith.constant 0 : i32
    %c0_i32_0 = arith.constant 0 : i32
    %c0_i32_1 = arith.constant 0 : i32
    return %c0_i32, %c0_i32_0 : i32, i32
  }
  func.func @transform_6(%arg0: i32) -> (i32, i32) {
    %c0_i32 = arith.constant 0 : i32
    %c0_i32_0 = arith.constant 0 : i32
    %c0_i32_1 = arith.constant 0 : i32
    return %c0_i32, %c0_i32_0 : i32, i32
  }
  func.func @transform_7(%arg0: i32) -> (i32, i32) {
    %c0_i32 = arith.constant 0 : i32
    %c0_i32_0 = arith.constant 0 : i32
    %c0_i32_1 = arith.constant 0 : i32
    return %c0_i32, %c0_i32_0 : i32, i32
  }
  func.func @transform_8(%arg0: i32) -> (i32, i32) {
    %c0_i32 = arith.constant 0 : i32
    %c0_i32_0 = arith.constant 0 : i32
    %c0_i32_1 = arith.constant 0 : i32
    return %c0_i32, %c0_i32_0 : i32, i32
  }
  func.func @transform_9(%arg0: i32) -> (i32, i32) {
    %c0_i32 = arith.constant 0 : i32
    %c0_i32_0 = arith.constant 0 : i32
    %c0_i32_1 = arith.constant 0 : i32
    return %c0_i32, %c0_i32_0 : i32, i32
  }
  func.func @transform_10(%arg0: i32) -> (i32, i32) {
    %c0_i32 = arith.constant 0 : i32
    %c0_i32_0 = arith.constant 0 : i32
    %c0_i32_1 = arith.constant 0 : i32
    return %c0_i32, %c0_i32_0 : i32, i32
  }
  func.func @transform_11(%arg0: i32) -> (i32, i32) {
    %c0_i32 = arith.constant 0 : i32
    %c0_i32_0 = arith.constant 0 : i32
    %c0_i32_1 = arith.constant 0 : i32
    return %c0_i32, %c0_i32_0 : i32, i32
  }
  func.func @transform_12(%arg0: i32) -> (i32, i32) {
    %c0_i32 = arith.constant 0 : i32
    %c0_i32_0 = arith.constant 0 : i32
    %c0_i32_1 = arith.constant 0 : i32
    return %c0_i32, %c0_i32_0 : i32, i32
  }
  func.func @transform_13(%arg0: i32) -> (i32, i32) {
    %c0_i32 = arith.constant 0 : i32
    %c0_i32_0 = arith.constant 0 : i32
    return %arg0, %c0_i32 : i32, i32
  }
}

</mosaic_0001>

<llo_original>
// kernel: tpu_custom_call.1
$region0: #{tpu_custom_call.1}
  #allocation0 [shape = 'u32[]', space=smem, size = 0x4, offset = 0x4, fixed_abs, tag = 'smem constant byte address 0x4 - core index']
  #allocation1 [shape = 'u32[144,128]{1,0:T(1,128)}', space=vmem, size = 0x12000, scoped, tag = 'internal scratch']
  %s0 = inlined_call_operand.hbm [shape: bf16[16,128], index: 0, kind: input, shape index: {}]
  %s1 = inlined_call_operand.hbm [shape: bf16[128,512], index: 1, kind: input, shape index: {}]
  %s2 = inlined_call_operand.vmem [shape: f32[1,512], index: 2, kind: input, shape index: {}]
  %s3 = inlined_call_operand.vmem [shape: f32[1,512], index: 3, kind: input, shape index: {}]
  %s4 = inlined_call_operand.hbm [shape: bf16[512,512], index: 4, kind: input, shape index: {}]
  %s5 = inlined_call_operand.vmem [shape: f32[1,512], index: 5, kind: input, shape index: {}]
  %s6 = inlined_call_operand.vmem [shape: f32[1,512], index: 6, kind: input, shape index: {}]
  %s7 = inlined_call_operand.hbm [shape: bf16[512,512], index: 7, kind: input, shape index: {}]
  %s8 = inlined_call_operand.vmem [shape: f32[1,512], index: 8, kind: input, shape index: {}]
  %s9 = inlined_call_operand.vmem [shape: f32[1,512], index: 9, kind: input, shape index: {}]
  %s10 = inlined_call_operand.hbm [shape: bf16[512,128], index: 10, kind: input, shape index: {}]
  %s11 = inlined_call_operand.vmem [shape: f32[1,128], index: 11, kind: input, shape index: {}]
  %s12 = inlined_call_operand.vmem [shape: f32[1,128], index: 12, kind: input, shape index: {}]
  %s13 = inlined_call_operand.hbm [shape: f32[16,128], index: 13, kind: output, shape index: {}]
  %s14 = sld [smem:[#allocation0]]
  $region82: #{tpu_custom_call.1} parent=0
    _
  %s16 = ssub.s32 1, %s14
  %s17 = scalar_select 0, %s16, %s14
  $region1: #{tpu_custom_call.1} parent=0
    #allocation2 [shape = 'u8[4096]{0}', space=vmem, size = 0x1000, scoped, tag = 'input window, operand 0, single buffered']
    #allocation3 [shape = 's32[1]{0}', space=sflag, size = 0x4, scoped, tag = 'scoped memory for tpu_custom_call.1']
    #allocation4 [shape = 's32[1]{0}', space=sflag, size = 0x4, scoped, tag = 'scoped memory for tpu_custom_call.1']
    #allocation5 [shape = 'u8[131072]{0}', space=vmem, size = 0x20000, scoped, tag = 'input window, operand 1, single buffered']
    #allocation6 [shape = 's32[1]{0}', space=sflag, size = 0x4, scoped, tag = 'scoped memory for tpu_custom_call.1']
    #allocation7 [shape = 'u8[524288]{0}', space=vmem, size = 0x80000, scoped, tag = 'input window, operand 4, single buffered']
    #allocation8 [shape = 'u8[524288]{0}', space=vmem, size = 0x80000, scoped, tag = 'input window, operand 7, single buffered']
    #allocation9 [shape = 's32[1]{0}', space=sflag, size = 0x4, scoped, tag = 'scoped memory for tpu_custom_call.1']
    #allocation10 [shape = 'u8[131072]{0}', space=vmem, size = 0x20000, scoped, tag = 'input window, operand 10, single buffered']
    #allocation11 [shape = 'u8[8192]{0}', space=vmem, size = 0x2000, scoped, tag = 'output window, operand 0, single buffered']
    %18 = vsyncpa [#allocation3], 0
    %19 = vsyncpa [#allocation6], 0
    %20 = vsyncpa [#allocation9], 0
    %21 = vsyncpa [#allocation4], 0
    // Predicated region
    $region2: #{tpu_custom_call.1} parent=1 // pred_check
      _
    $region3: #{tpu_custom_call.1} parent=1 // pred_check_branch
      %23 = sbr.rel (0) target = $region5
    $region4: #{tpu_custom_call.1} parent=1 // pred_region
      %s25 = ssub.s32 128, 128
      %26 = vsyncadd [#allocation3], %s25
      %s27 = sshll.u32 [#allocation2], 4
      %s28 = int_to_ptr.vmem [resolvable:$true] %s27
      %33 = dma.hbm_to_vmem [thread:$0]  %s0, 128, %s28, [#allocation3], 64, 64, 4
    $region5: #{tpu_custom_call.1} parent=1 // pred_fallthru
      _
    // Predicated region
    $region6: #{tpu_custom_call.1} parent=1 // pred_check
      _
    $region7: #{tpu_custom_call.1} parent=1 // pred_check_branch
      %35 = sbr.rel (0) target = $region9
    $region8: #{tpu_custom_call.1} parent=1 // pred_region
      %s37 = ssub.s32 4096, 4096
      %38 = vsyncadd [#allocation6], %s37
      %s39 = sshll.u32 [#allocation5], 4
      %s40 = int_to_ptr.vmem [resolvable:$true] %s39
      %45 = dma.hbm_to_vmem [thread:$0]  %s1, 4096, %s40, [#allocation6], 256, 256, 16
    $region9: #{tpu_custom_call.1} parent=1 // pred_fallthru
      _
    // Predicated region
    $region10: #{tpu_custom_call.1} parent=1 // pred_check
      _
    $region11: #{tpu_custom_call.1} parent=1 // pred_check_branch
      %47 = sbr.rel (0) target = $region13
    $region12: #{tpu_custom_call.1} parent=1 // pred_region
      _
    $region13: #{tpu_custom_call.1} parent=1 // pred_fallthru
      _
    // Predicated region
    $region14: #{tpu_custom_call.1} parent=1 // pred_check
      _
    $region15: #{tpu_custom_call.1} parent=1 // pred_check_branch
      %49 = sbr.rel (0) target = $region17
    $region16: #{tpu_custom_call.1} parent=1 // pred_region
      _
    $region17: #{tpu_custom_call.1} parent=1 // pred_fallthru
      _
    // Predicated region
    $region18: #{tpu_custom_call.1} parent=1 // pred_check
      _
    $region19: #{tpu_custom_call.1} parent=1 // pred_check_branch
      %51 = sbr.rel (0) target = $region21
    $region20: #{tpu_custom_call.1} parent=1 // pred_region
      %s53 = ssub.s32 16384, 16384
      %54 = vsyncadd [#allocation6], %s53
      %s55 = sshll.u32 [#allocation7], 4
      %s56 = int_to_ptr.vmem [resolvable:$true] %s55
      %61 = dma.hbm_to_vmem [thread:$0]  %s4, 16384, %s56, [#allocation6], 256, 256, 16
    $region21: #{tpu_custom_call.1} parent=1 // pred_fallthru
      _
    // Predicated region
    $region22: #{tpu_custom_call.1} parent=1 // pred_check
      _
    $region23: #{tpu_custom_call.1} parent=1 // pred_check_branch
      %63 = sbr.rel (0) target = $region25
    $region24: #{tpu_custom_call.1} parent=1 // pred_region
      _
    $region25: #{tpu_custom_call.1} parent=1 // pred_fallthru
      _
    // Predicated region
    $region26: #{tpu_custom_call.1} parent=1 // pred_check
      _
    $region27: #{tpu_custom_call.1} parent=1 // pred_check_branch
      %65 = sbr.rel (0) target = $region29
    $region28: #{tpu_custom_call.1} parent=1 // pred_region
      _
    $region29: #{tpu_custom_call.1} parent=1 // pred_fallthru
      _
    // Predicated region
    $region30: #{tpu_custom_call.1} parent=1 // pred_check
      _
    $region31: #{tpu_custom_call.1} parent=1 // pred_check_branch
      %67 = sbr.rel (0) target = $region33
    $region32: #{tpu_custom_call.1} parent=1 // pred_region
      %s69 = ssub.s32 16384, 16384
      %70 = vsyncadd [#allocation9], %s69
      %s71 = sshll.u32 [#allocation8], 4
      %s72 = int_to_ptr.vmem [resolvable:$true] %s71
      %77 = dma.hbm_to_vmem [thread:$0]  %s7, 16384, %s72, [#allocation9], 256, 256, 16
    $region33: #{tpu_custom_call.1} parent=1 // pred_fallthru
      _
    // Predicated region
    $region34: #{tpu_custom_call.1} parent=1 // pred_check
      _
    $region35: #{tpu_custom_call.1} parent=1 // pred_check_branch
      %79 = sbr.rel (0) target = $region37
    $region36: #{tpu_custom_call.1} parent=1 // pred_region
      _
    $region37: #{tpu_custom_call.1} parent=1 // pred_fallthru
      _
    // Predicated region
    $region38: #{tpu_custom_call.1} parent=1 // pred_check
      _
    $region39: #{tpu_custom_call.1} parent=1 // pred_check_branch
      %81 = sbr.rel (0) target = $region41
    $region40: #{tpu_custom_call.1} parent=1 // pred_region
      _
    $region41: #{tpu_custom_call.1} parent=1 // pred_fallthru
      _
    // Predicated region
    $region42: #{tpu_custom_call.1} parent=1 // pred_check
      _
    $region43: #{tpu_custom_call.1} parent=1 // pred_check_branch
      %83 = sbr.rel (0) target = $region45
    $region44: #{tpu_custom_call.1} parent=1 // pred_region
      %s85 = ssub.s32 4096, 4096
      %86 = vsyncadd [#allocation9], %s85
      %s87 = sshll.u32 [#allocation10], 4
      %s88 = int_to_ptr.vmem [resolvable:$true] %s87
      %93 = dma.hbm_to_vmem [thread:$0]  %s10, 4096, %s88, [#allocation9], 64, 64, 4
    $region45: #{tpu_custom_call.1} parent=1 // pred_fallthru
      _
    // Predicated region
    $region46: #{tpu_custom_call.1} parent=1 // pred_check
      _
    $region47: #{tpu_custom_call.1} parent=1 // pred_check_branch
      %95 = sbr.rel (0) target = $region49
    $region48: #{tpu_custom_call.1} parent=1 // pred_region
      _
    $region49: #{tpu_custom_call.1} parent=1 // pred_fallthru
      _
    // Predicated region
    $region50: #{tpu_custom_call.1} parent=1 // pred_check
      _
    $region51: #{tpu_custom_call.1} parent=1 // pred_check_branch
      %97 = sbr.rel (0) target = $region53
    $region52: #{tpu_custom_call.1} parent=1 // pred_region
      _
    $region53: #{tpu_custom_call.1} parent=1 // pred_fallthru
      _
    // Predicated region
    $region54: #{tpu_custom_call.1} parent=1 // pred_check
      _
    $region55: #{tpu_custom_call.1} parent=1 // pred_check_branch
      %99 = sbr.rel (0) target = $region57
    $region56: #{tpu_custom_call.1} parent=1 // pred_region
      %100 = dma.done [#allocation3], 128
    $region57: #{tpu_custom_call.1} parent=1 // pred_fallthru
      _
    // Predicated region
    $region58: #{tpu_custom_call.1} parent=1 // pred_check
      _
    $region59: #{tpu_custom_call.1} parent=1 // pred_check_branch
      %102 = sbr.rel (0) target = $region61
    $region60: #{tpu_custom_call.1} parent=1 // pred_region
      %103 = dma.done [#allocation6], 4096
    $region61: #{tpu_custom_call.1} parent=1 // pred_fallthru
      _
    // Predicated region
    $region62: #{tpu_custom_call.1} parent=1 // pred_check
      _
    $region63: #{tpu_custom_call.1} parent=1 // pred_check_branch
      %105 = sbr.rel (0) target = $region65
    $region64: #{tpu_custom_call.1} parent=1 // pred_region
      %106 = dma.done [#allocation6], 16384
    $region65: #{tpu_custom_call.1} parent=1 // pred_fallthru
      _
    // Predicated region
    $region66: #{tpu_custom_call.1} parent=1 // pred_check
      _
    $region67: #{tpu_custom_call.1} parent=1 // pred_check_branch
      %108 = sbr.rel (0) target = $region69
    $region68: #{tpu_custom_call.1} parent=1 // pred_region
      %109 = dma.done [#allocation9], 16384
    $region69: #{tpu_custom_call.1} parent=1 // pred_fallthru
      _
    // Predicated region
    $region70: #{tpu_custom_call.1} parent=1 // pred_check
      _
    $region71: #{tpu_custom_call.1} parent=1 // pred_check_branch
      %111 = sbr.rel (0) target = $region73
    $region72: #{tpu_custom_call.1} parent=1 // pred_region
      %112 = dma.done [#allocation9], 4096
    $region73: #{tpu_custom_call.1} parent=1 // pred_fallthru
      _
    %v114 = vld [vmem:[#allocation2] sm:$0xf]
    %v115 = vld [vmem:[#allocation2 + $0x4] sm:$0xf]
    %v116 = vld [vmem:[#allocation5] sm:$0xff]
    %v117 = vld [vmem:[#allocation5 + $0x8] sm:$0xff]
    %v118 = vld [vmem:[#allocation5 + $0x10] sm:$0xff]
    %v119 = vld [vmem:[#allocation5 + $0x18] sm:$0xff]
    %v120 = vld [vmem:[#allocation5 + $0x20] sm:$0xff]
    %v121 = vld [vmem:[#allocation5 + $0x28] sm:$0xff]
    %v122 = vld [vmem:[#allocation5 + $0x30] sm:$0xff]
    %v123 = vld [vmem:[#allocation5 + $0x38] sm:$0xff]
    %v124 = vld [vmem:[#allocation5 + $0x40] sm:$0xff]
    %v125 = vld [vmem:[#allocation5 + $0x48] sm:$0xff]
    %v126 = vld [vmem:[#allocation5 + $0x50] sm:$0xff]
    %v127 = vld [vmem:[#allocation5 + $0x58] sm:$0xff]
    %v128 = vld [vmem:[#allocation5 + $0x60] sm:$0xff]
    %v129 = vld [vmem:[#allocation5 + $0x68] sm:$0xff]
    %v130 = vld [vmem:[#allocation5 + $0x70] sm:$0xff]
    %v131 = vld [vmem:[#allocation5 + $0x78] sm:$0xff]
    %v132 = vld [vmem:[#allocation5 + $0x80] sm:$0xff]
    %v133 = vld [vmem:[#allocation5 + $0x88] sm:$0xff]
    %v134 = vld [vmem:[#allocation5 + $0x90] sm:$0xff]
    %v135 = vld [vmem:[#allocation5 + $0x98] sm:$0xff]
    %v136 = vld [vmem:[#allocation5 + $0xa0] sm:$0xff]
    %v137 = vld [vmem:[#allocation5 + $0xa8] sm:$0xff]
    %v138 = vld [vmem:[#allocation5 + $0xb0] sm:$0xff]
    %v139 = vld [vmem:[#allocation5 + $0xb8] sm:$0xff]
    %v140 = vld [vmem:[#allocation5 + $0xc0] sm:$0xff]
    %v141 = vld [vmem:[#allocation5 + $0xc8] sm:$0xff]
    %v142 = vld [vmem:[#allocation5 + $0xd0] sm:$0xff]
    %v143 = vld [vmem:[#allocation5 + $0xd8] sm:$0xff]
    %v144 = vld [vmem:[#allocation5 + $0xe0] sm:$0xff]
    %v145 = vld [vmem:[#allocation5 + $0xe8] sm:$0xff]
    %v146 = vld [vmem:[#allocation5 + $0xf0] sm:$0xff]
    %v147 = vld [vmem:[#allocation5 + $0xf8] sm:$0xff]
    %v150 = vunpack.c.l.b16 %v114
    %v151 = vunpack.c.l.b16 %v115
    %v152 = vpack.c.b16 %v151, %v150
    %v186 = vunpack.c.l.b16 %v116
    %v187 = vunpack.c.h.b16 %v116
    %v188 = vunpack.c.l.b16 %v117
    %v189 = vunpack.c.h.b16 %v117
    %v190 = vunpack.c.l.b16 %v118
    %v191 = vunpack.c.h.b16 %v118
    %v192 = vunpack.c.l.b16 %v119
    %v193 = vunpack.c.h.b16 %v119
    %v194 = vunpack.c.l.b16 %v120
    %v195 = vunpack.c.h.b16 %v120
    %v196 = vunpack.c.l.b16 %v121
    %v197 = vunpack.c.h.b16 %v121
    %v198 = vunpack.c.l.b16 %v122
    %v199 = vunpack.c.h.b16 %v122
    %v200 = vunpack.c.l.b16 %v123
    %v201 = vunpack.c.h.b16 %v123
    %v202 = vunpack.c.l.b16 %v124
    %v203 = vunpack.c.h.b16 %v124
    %v204 = vunpack.c.l.b16 %v125
    %v205 = vunpack.c.h.b16 %v125
    %v206 = vunpack.c.l.b16 %v126
    %v207 = vunpack.c.h.b16 %v126
    %v208 = vunpack.c.l.b16 %v127
    %v209 = vunpack.c.h.b16 %v127
    %v210 = vunpack.c.l.b16 %v128
    %v211 = vunpack.c.h.b16 %v128
    %v212 = vunpack.c.l.b16 %v129
    %v213 = vunpack.c.h.b16 %v129
    %v214 = vunpack.c.l.b16 %v130
    %v215 = vunpack.c.h.b16 %v130
    %v216 = vunpack.c.l.b16 %v131
    %v217 = vunpack.c.h.b16 %v131
    %v218 = vunpack.c.l.b16 %v132
    %v219 = vunpack.c.h.b16 %v132
    %v220 = vunpack.c.l.b16 %v133
    %v221 = vunpack.c.h.b16 %v133
    %v222 = vunpack.c.l.b16 %v134
    %v223 = vunpack.c.h.b16 %v134
    %v224 = vunpack.c.l.b16 %v135
    %v225 = vunpack.c.h.b16 %v135
    %v226 = vunpack.c.l.b16 %v136
    %v227 = vunpack.c.h.b16 %v136
    %v228 = vunpack.c.l.b16 %v137
    %v229 = vunpack.c.h.b16 %v137
    %v230 = vunpack.c.l.b16 %v138
    %v231 = vunpack.c.h.b16 %v138
    %v232 = vunpack.c.l.b16 %v139
    %v233 = vunpack.c.h.b16 %v139
    %v234 = vunpack.c.l.b16 %v140
    %v235 = vunpack.c.h.b16 %v140
    %v236 = vunpack.c.l.b16 %v141
    %v237 = vunpack.c.h.b16 %v141
    %v238 = vunpack.c.l.b16 %v142
    %v239 = vunpack.c.h.b16 %v142
    %v240 = vunpack.c.l.b16 %v143
    %v241 = vunpack.c.h.b16 %v143
    %v242 = vunpack.c.l.b16 %v144
    %v243 = vunpack.c.h.b16 %v144
    %v244 = vunpack.c.l.b16 %v145
    %v245 = vunpack.c.h.b16 %v145
    %v246 = vunpack.c.l.b16 %v146
    %v247 = vunpack.c.h.b16 %v146
    %v248 = vunpack.c.l.b16 %v147
    %v249 = vunpack.c.h.b16 %v147
    %v250 = vpack.c.b16 %v190, %v186
    %v251 = vpack.c.b16 %v191, %v187
    %v252 = vpack.c.b16 %v192, %v188
    %v253 = vpack.c.b16 %v193, %v189
    %v254 = vpack.c.b16 %v198, %v194
    %v255 = vpack.c.b16 %v199, %v195
    %v256 = vpack.c.b16 %v200, %v196
    %v257 = vpack.c.b16 %v201, %v197
    %v258 = vpack.c.b16 %v206, %v202
    %v259 = vpack.c.b16 %v207, %v203
    %v260 = vpack.c.b16 %v208, %v204
    %v261 = vpack.c.b16 %v209, %v205
    %v262 = vpack.c.b16 %v214, %v210
    %v263 = vpack.c.b16 %v215, %v211
    %v264 = vpack.c.b16 %v216, %v212
    %v265 = vpack.c.b16 %v217, %v213
    %v266 = vpack.c.b16 %v222, %v218
    %v267 = vpack.c.b16 %v223, %v219
    %v268 = vpack.c.b16 %v224, %v220
    %v269 = vpack.c.b16 %v225, %v221
    %v270 = vpack.c.b16 %v230, %v226
    %v271 = vpack.c.b16 %v231, %v227
    %v272 = vpack.c.b16 %v232, %v228
    %v273 = vpack.c.b16 %v233, %v229
    %v274 = vpack.c.b16 %v238, %v234
    %v275 = vpack.c.b16 %v239, %v235
    %v276 = vpack.c.b16 %v240, %v236
    %v277 = vpack.c.b16 %v241, %v237
    %v278 = vpack.c.b16 %v246, %v242
    %v279 = vpack.c.b16 %v247, %v243
    %v280 = vpack.c.b16 %v248, %v244
    %v281 = vpack.c.b16 %v249, %v245
    %314 = vmatprep.subr.bf16.mxu0 %v251
    %315 = vmatpush1.bf16.msra.mxu0 %v250
    %316 = vmatprep.subr.bf16.mxu0 %v255
    %317 = vmatpush1.bf16.msra.mxu0 %v254
    %318 = vmatprep.subr.bf16.mxu0 %v259
    %319 = vmatpush1.bf16.msra.mxu0 %v258
    %320 = vmatprep.subr.bf16.mxu0 %v263
    %321 = vmatpush1.bf16.msra.mxu0 %v262
    %322 = vmatprep.subr.bf16.mxu0 %v267
    %323 = vmatpush1.bf16.msra.mxu0 %v266
    %324 = vmatprep.subr.bf16.mxu0 %v271
    %325 = vmatpush1.bf16.msra.mxu0 %v270
    %326 = vmatprep.subr.bf16.mxu0 %v275
    %327 = vmatpush1.bf16.msra.mxu0 %v274
    %328 = vmatprep.subr.bf16.mxu0 %v279
    %329 = vmatpush1.bf16.msra.mxu0 %v278
    %330 = vmatprep.subr.bf16.mxu0 0
    %331 = vmatpush1.bf16.msra.mxu0 0
    %332 = vmatprep.subr.bf16.mxu0 0
    %333 = vmatpush1.bf16.msra.mxu0 0
    %334 = vmatprep.subr.bf16.mxu0 0
    %335 = vmatpush1.bf16.msra.mxu0 0
    %336 = vmatprep.subr.bf16.mxu0 0
    %337 = vmatpush1.bf16.msra.mxu0 0
    %338 = vmatprep.subr.bf16.mxu0 0
    %339 = vmatpush1.bf16.msra.mxu0 0
    %340 = vmatprep.subr.bf16.mxu0 0
    %341 = vmatpush1.bf16.msra.mxu0 0
    %342 = vmatprep.subr.bf16.mxu0 0
    %343 = vmatpush1.bf16.msra.mxu0 0
    %344 = vmatprep.subr.bf16.mxu0 0
    %345 = vmatpush1.bf16.msra.mxu0 0
    %346 = vmatprep.mubr.bf16.mxu0 0
    %347 = vmatmul.mubr.bf16.gmra.mrb[0].mxu0 %v152
    %v348 = vpop.f32.mrb[0].mxu0
    %v349 = vadd.f32 0.0, %v348
    %v350 = vpop.f32.mrb[0].mxu0
    %v351 = vadd.f32 0.0, %v350
    %v352 = vpop.f32.mrb[0].mxu0
    %v353 = vadd.f32 0.0, %v352
    %v354 = vpop.f32.mrb[0].mxu0
    %v355 = vadd.f32 0.0, %v354
    %356 = vdwg.mxu0
    %357 = vmatprep.subr.bf16.mxu0 %v253
    %358 = vmatpush1.bf16.msra.mxu0 %v252
    %359 = vmatprep.subr.bf16.mxu0 %v257
    %360 = vmatpush1.bf16.msra.mxu0 %v256
    %361 = vmatprep.subr.bf16.mxu0 %v261
    %362 = vmatpush1.bf16.msra.mxu0 %v260
    %363 = vmatprep.subr.bf16.mxu0 %v265
    %364 = vmatpush1.bf16.msra.mxu0 %v264
    %365 = vmatprep.subr.bf16.mxu0 %v269
    %366 = vmatpush1.bf16.msra.mxu0 %v268
    %367 = vmatprep.subr.bf16.mxu0 %v273
    %368 = vmatpush1.bf16.msra.mxu0 %v272
    %369 = vmatprep.subr.bf16.mxu0 %v277
    %370 = vmatpush1.bf16.msra.mxu0 %v276
    %371 = vmatprep.subr.bf16.mxu0 %v281
    %372 = vmatpush1.bf16.msra.mxu0 %v280
    %373 = vmatprep.subr.bf16.mxu0 0
    %374 = vmatpush1.bf16.msra.mxu0 0
    %375 = vmatprep.subr.bf16.mxu0 0
    %376 = vmatpush1.bf16.msra.mxu0 0
    %377 = vmatprep.subr.bf16.mxu0 0
    %378 = vmatpush1.bf16.msra.mxu0 0
    %379 = vmatprep.subr.bf16.mxu0 0
    %380 = vmatpush1.bf16.msra.mxu0 0
    %381 = vmatprep.subr.bf16.mxu0 0
    %382 = vmatpush1.bf16.msra.mxu0 0
    %383 = vmatprep.subr.bf16.mxu0 0
    %384 = vmatpush1.bf16.msra.mxu0 0
    %385 = vmatprep.subr.bf16.mxu0 0
    %386 = vmatpush1.bf16.msra.mxu0 0
    %387 = vmatprep.subr.bf16.mxu0 0
    %388 = vmatpush1.bf16.msra.mxu0 0
    %389 = vmatprep.mubr.bf16.mxu0 0
    %390 = vmatmul.mubr.bf16.gmra.mrb[0].mxu0 %v152
    %v391 = vpop.f32.mrb[0].mxu0
    %v392 = vadd.f32 0.0, %v391
    %v393 = vpop.f32.mrb[0].mxu0
    %v394 = vadd.f32 0.0, %v393
    %v395 = vpop.f32.mrb[0].mxu0
    %v396 = vadd.f32 0.0, %v395
    %v397 = vpop.f32.mrb[0].mxu0
    %v398 = vadd.f32 0.0, %v397
    %399 = vdwg.mxu0
    %v400 = vld [vmem:[%s2] sm:$0xf]
    %v402 = vlaneseq
    %v403 = vshrl.u32 %v402, 7
    %v404 = vsub.s32 0, %v403
    %v405 = vrot.slane %v400, %v404
    %v406 = vlaneseq
    %v407 = vshrl.u32 %v406, 7
    %v408 = vsub.s32 1, %v407
    %v409 = vrot.slane %v400, %v408
    %v410 = vlaneseq
    %v411 = vshrl.u32 %v410, 7
    %v412 = vsub.s32 2, %v411
    %v413 = vrot.slane %v400, %v412
    %v414 = vlaneseq
    %v415 = vshrl.u32 %v414, 7
    %v416 = vsub.s32 3, %v415
    %v417 = vrot.slane %v400, %v416
    %v422 = vmul.f32 %v349, %v405
    %v423 = vmul.f32 %v351, %v409
    %v424 = vmul.f32 %v392, %v413
    %v425 = vmul.f32 %v394, %v417
    %v426 = vmul.f32 %v353, %v405
    %v427 = vmul.f32 %v355, %v409
    %v428 = vmul.f32 %v396, %v413
    %v429 = vmul.f32 %v398, %v417
    %v430 = vld [vmem:[%s3] sm:$0xf]
    %v432 = vlaneseq
    %v433 = vshrl.u32 %v432, 7
    %v434 = vsub.s32 0, %v433
    %v435 = vrot.slane %v430, %v434
    %v436 = vlaneseq
    %v437 = vshrl.u32 %v436, 7
    %v438 = vsub.s32 1, %v437
    %v439 = vrot.slane %v430, %v438
    %v440 = vlaneseq
    %v441 = vshrl.u32 %v440, 7
    %v442 = vsub.s32 2, %v441
    %v443 = vrot.slane %v430, %v442
    %v444 = vlaneseq
    %v445 = vshrl.u32 %v444, 7
    %v446 = vsub.s32 3, %v445
    %v447 = vrot.slane %v430, %v446
    %v452 = vadd.f32 %v422, %v435
    %v453 = vadd.f32 %v423, %v439
    %v454 = vadd.f32 %v424, %v443
    %v455 = vadd.f32 %v425, %v447
    %v456 = vadd.f32 %v426, %v435
    %v457 = vadd.f32 %v427, %v439
    %v458 = vadd.f32 %v428, %v443
    %v459 = vadd.f32 %v429, %v447
    %v460 = vmax.f32 %v452, 0.0
    %v461 = vmax.f32 %v453, 0.0
    %v462 = vmax.f32 %v454, 0.0
    %v463 = vmax.f32 %v455, 0.0
    %v464 = vmax.f32 %v456, 0.0
    %v465 = vmax.f32 %v457, 0.0
    %v466 = vmax.f32 %v458, 0.0
    %v467 = vmax.f32 %v459, 0.0
    %v468 = vpack.c.bf16 %v464, %v460
    %v469 = vpack.c.bf16 %v465, %v461
    %v470 = vpack.c.bf16 %v466, %v462
    %v471 = vpack.c.bf16 %v467, %v463
    %v472 = vld [vmem:[#allocation7] sm:$0xff]
    %v473 = vld [vmem:[#allocation7 + $0x8] sm:$0xff]
    %v474 = vld [vmem:[#allocation7 + $0x10] sm:$0xff]
    %v475 = vld [vmem:[#allocation7 + $0x18] sm:$0xff]
    %v476 = vld [vmem:[#allocation7 + $0x20] sm:$0xff]
    %v477 = vld [vmem:[#allocation7 + $0x28] sm:$0xff]
    %v478 = vld [vmem:[#allocation7 + $0x30] sm:$0xff]
    %v479 = vld [vmem:[#allocation7 + $0x38] sm:$0xff]
    %v480 = vld [vmem:[#allocation7 + $0x40] sm:$0xff]
    %v481 = vld [vmem:[#allocation7 + $0x48] sm:$0xff]
    %v482 = vld [vmem:[#allocation7 + $0x50] sm:$0xff]
    %v483 = vld [vmem:[#allocation7 + $0x58] sm:$0xff]
    %v484 = vld [vmem:[#allocation7 + $0x60] sm:$0xff]
    %v485 = vld [vmem:[#allocation7 + $0x68] sm:$0xff]
    %v486 = vld [vmem:[#allocation7 + $0x70] sm:$0xff]
    %v487 = vld [vmem:[#allocation7 + $0x78] sm:$0xff]
    %v488 = vld [vmem:[#allocation7 + $0x80] sm:$0xff]
    %v489 = vld [vmem:[#allocation7 + $0x88] sm:$0xff]
    %v490 = vld [vmem:[#allocation7 + $0x90] sm:$0xff]
    %v491 = vld [vmem:[#allocation7 + $0x98] sm:$0xff]
    %v492 = vld [vmem:[#allocation7 + $0xa0] sm:$0xff]
    %v493 = vld [vmem:[#allocation7 + $0xa8] sm:$0xff]
    %v494 = vld [vmem:[#allocation7 + $0xb0] sm:$0xff]
    %v495 = vld [vmem:[#allocation7 + $0xb8] sm:$0xff]
    %v496 = vld [vmem:[#allocation7 + $0xc0] sm:$0xff]
    %v497 = vld [vmem:[#allocation7 + $0xc8] sm:$0xff]
    %v498 = vld [vmem:[#allocation7 + $0xd0] sm:$0xff]
    %v499 = vld [vmem:[#allocation7 + $0xd8] sm:$0xff]
    %v500 = vld [vmem:[#allocation7 + $0xe0] sm:$0xff]
    %v501 = vld [vmem:[#allocation7 + $0xe8] sm:$0xff]
    %v502 = vld [vmem:[#allocation7 + $0xf0] sm:$0xff]
    %v503 = vld [vmem:[#allocation7 + $0xf8] sm:$0xff]
    %v504 = vld [vmem:[#allocation7 + $0x100] sm:$0xff]
    %v505 = vld [vmem:[#allocation7 + $0x108] sm:$0xff]
    %v506 = vld [vmem:[#allocation7 + $0x110] sm:$0xff]
    %v507 = vld [vmem:[#allocation7 + $0x118] sm:$0xff]
    %v508 = vld [vmem:[#allocation7 + $0x120] sm:$0xff]
    %v509 = vld [vmem:[#allocation7 + $0x128] sm:$0xff]
    %v510 = vld [vmem:[#allocation7 + $0x130] sm:$0xff]
    %v511 = vld [vmem:[#allocation7 + $0x138] sm:$0xff]
    %v512 = vld [vmem:[#allocation7 + $0x140] sm:$0xff]
    %v513 = vld [vmem:[#allocation7 + $0x148] sm:$0xff]
    %v514 = vld [vmem:[#allocation7 + $0x150] sm:$0xff]
    %v515 = vld [vmem:[#allocation7 + $0x158] sm:$0xff]
    %v516 = vld [vmem:[#allocation7 + $0x160] sm:$0xff]
    %v517 = vld [vmem:[#allocation7 + $0x168] sm:$0xff]
    %v518 = vld [vmem:[#allocation7 + $0x170] sm:$0xff]
    %v519 = vld [vmem:[#allocation7 + $0x178] sm:$0xff]
    %v520 = vld [vmem:[#allocation7 + $0x180] sm:$0xff]
    %v521 = vld [vmem:[#allocation7 + $0x188] sm:$0xff]
    %v522 = vld [vmem:[#allocation7 + $0x190] sm:$0xff]
    %v523 = vld [vmem:[#allocation7 + $0x198] sm:$0xff]
    %v524 = vld [vmem:[#allocation7 + $0x1a0] sm:$0xff]
    %v525 = vld [vmem:[#allocation7 + $0x1a8] sm:$0xff]
    %v526 = vld [vmem:[#allocation7 + $0x1b0] sm:$0xff]
    %v527 = vld [vmem:[#allocation7 + $0x1b8] sm:$0xff]
    %v528 = vld [vmem:[#allocation7 + $0x1c0] sm:$0xff]
    %v529 = vld [vmem:[#allocation7 + $0x1c8] sm:$0xff]
    %v530 = vld [vmem:[#allocation7 + $0x1d0] sm:$0xff]
    %v531 = vld [vmem:[#allocation7 + $0x1d8] sm:$0xff]
    %v532 = vld [vmem:[#allocation7 + $0x1e0] sm:$0xff]
    %v533 = vld [vmem:[#allocation7 + $0x1e8] sm:$0xff]
    %v534 = vld [vmem:[#allocation7 + $0x1f0] sm:$0xff]
    %v535 = vld [vmem:[#allocation7 + $0x1f8] sm:$0xff]
    %v536 = vld [vmem:[#allocation7 + $0x200] sm:$0xff]
    %v537 = vld [vmem:[#allocation7 + $0x208] sm:$0xff]
    %v538 = vld [vmem:[#allocation7 + $0x210] sm:$0xff]
    %v539 = vld [vmem:[#allocation7 + $0x218] sm:$0xff]
    %v540 = vld [vmem:[#allocation7 + $0x220] sm:$0xff]
    %v541 = vld [vmem:[#allocation7 + $0x228] sm:$0xff]
    %v542 = vld [vmem:[#allocation7 + $0x230] sm:$0xff]
    %v543 = vld [vmem:[#allocation7 + $0x238] sm:$0xff]
    %v544 = vld [vmem:[#allocation7 + $0x240] sm:$0xff]
    %v545 = vld [vmem:[#allocation7 + $0x248] sm:$0xff]
    %v546 = vld [vmem:[#allocation7 + $0x250] sm:$0xff]
    %v547 = vld [vmem:[#allocation7 + $0x258] sm:$0xff]
    %v548 = vld [vmem:[#allocation7 + $0x260] sm:$0xff]
    %v549 = vld [vmem:[#allocation7 + $0x268] sm:$0xff]
    %v550 = vld [vmem:[#allocation7 + $0x270] sm:$0xff]
    %v551 = vld [vmem:[#allocation7 + $0x278] sm:$0xff]
    %v552 = vld [vmem:[#allocation7 + $0x280] sm:$0xff]
    %v553 = vld [vmem:[#allocation7 + $0x288] sm:$0xff]
    %v554 = vld [vmem:[#allocation7 + $0x290] sm:$0xff]
    %v555 = vld [vmem:[#allocation7 + $0x298] sm:$0xff]
    %v556 = vld [vmem:[#allocation7 + $0x2a0] sm:$0xff]
    %v557 = vld [vmem:[#allocation7 + $0x2a8] sm:$0xff]
    %v558 = vld [vmem:[#allocation7 + $0x2b0] sm:$0xff]
    %v559 = vld [vmem:[#allocation7 + $0x2b8] sm:$0xff]
    %v560 = vld [vmem:[#allocation7 + $0x2c0] sm:$0xff]
    %v561 = vld [vmem:[#allocation7 + $0x2c8] sm:$0xff]
    %v562 = vld [vmem:[#allocation7 + $0x2d0] sm:$0xff]
    %v563 = vld [vmem:[#allocation7 + $0x2d8] sm:$0xff]
    %v564 = vld [vmem:[#allocation7 + $0x2e0] sm:$0xff]
    %v565 = vld [vmem:[#allocation7 + $0x2e8] sm:$0xff]
    %v566 = vld [vmem:[#allocation7 + $0x2f0] sm:$0xff]
    %v567 = vld [vmem:[#allocation7 + $0x2f8] sm:$0xff]
    %v568 = vld [vmem:[#allocation7 + $0x300] sm:$0xff]
    %v569 = vld [vmem:[#allocation7 + $0x308] sm:$0xff]
    %v570 = vld [vmem:[#allocation7 + $0x310] sm:$0xff]
    %v571 = vld [vmem:[#allocation7 + $0x318] sm:$0xff]
    %v572 = vld [vmem:[#allocation7 + $0x320] sm:$0xff]
    %v573 = vld [vmem:[#allocation7 + $0x328] sm:$0xff]
    %v574 = vld [vmem:[#allocation7 + $0x330] sm:$0xff]
    %v575 = vld [vmem:[#allocation7 + $0x338] sm:$0xff]
    %v576 = vld [vmem:[#allocation7 + $0x340] sm:$0xff]
    %v577 = vld [vmem:[#allocation7 + $0x348] sm:$0xff]
    %v578 = vld [vmem:[#allocation7 + $0x350] sm:$0xff]
    %v579 = vld [vmem:[#allocation7 + $0x358] sm:$0xff]
    %v580 = vld [vmem:[#allocation7 + $0x360] sm:$0xff]
    %v581 = vld [vmem:[#allocation7 + $0x368] sm:$0xff]
    %v582 = vld [vmem:[#allocation7 + $0x370] sm:$0xff]
    %v583 = vld [vmem:[#allocation7 + $0x378] sm:$0xff]
    %v584 = vld [vmem:[#allocation7 + $0x380] sm:$0xff]
    %v585 = vld [vmem:[#allocation7 + $0x388] sm:$0xff]
    %v586 = vld [vmem:[#allocation7 + $0x390] sm:$0xff]
    %v587 = vld [vmem:[#allocation7 + $0x398] sm:$0xff]
    %v588 = vld [vmem:[#allocation7 + $0x3a0] sm:$0xff]
    %v589 = vld [vmem:[#allocation7 + $0x3a8] sm:$0xff]
    %v590 = vld [vmem:[#allocation7 + $0x3b0] sm:$0xff]
    %v591 = vld [vmem:[#allocation7 + $0x3b8] sm:$0xff]
    %v592 = vld [vmem:[#allocation7 + $0x3c0] sm:$0xff]
    %v593 = vld [vmem:[#allocation7 + $0x3c8] sm:$0xff]
    %v594 = vld [vmem:[#allocation7 + $0x3d0] sm:$0xff]
    %v595 = vld [vmem:[#allocation7 + $0x3d8] sm:$0xff]
    %v596 = vld [vmem:[#allocation7 + $0x3e0] sm:$0xff]
    %v597 = vld [vmem:[#allocation7 + $0x3e8] sm:$0xff]
    %v598 = vld [vmem:[#allocation7 + $0x3f0] sm:$0xff]
    %v599 = vld [vmem:[#allocation7 + $0x3f8] sm:$0xff]
    %v728 = vunpack.c.l.b16 %v472
    %v729 = vunpack.c.h.b16 %v472
    %v730 = vunpack.c.l.b16 %v473
    %v731 = vunpack.c.h.b16 %v473
    %v732 = vunpack.c.l.b16 %v474
    %v733 = vunpack.c.h.b16 %v474
    %v734 = vunpack.c.l.b16 %v475
    %v735 = vunpack.c.h.b16 %v475
    %v736 = vunpack.c.l.b16 %v476
    %v737 = vunpack.c.h.b16 %v476
    %v738 = vunpack.c.l.b16 %v477
    %v739 = vunpack.c.h.b16 %v477
    %v740 = vunpack.c.l.b16 %v478
    %v741 = vunpack.c.h.b16 %v478
    %v742 = vunpack.c.l.b16 %v479
    %v743 = vunpack.c.h.b16 %v479
    %v744 = vunpack.c.l.b16 %v480
    %v745 = vunpack.c.h.b16 %v480
    %v746 = vunpack.c.l.b16 %v481
    %v747 = vunpack.c.h.b16 %v481
    %v748 = vunpack.c.l.b16 %v482
    %v749 = vunpack.c.h.b16 %v482
    %v750 = vunpack.c.l.b16 %v483
    %v751 = vunpack.c.h.b16 %v483
    %v752 = vunpack.c.l.b16 %v484
    %v753 = vunpack.c.h.b16 %v484
    %v754 = vunpack.c.l.b16 %v485
    %v755 = vunpack.c.h.b16 %v485
    %v756 = vunpack.c.l.b16 %v486
    %v757 = vunpack.c.h.b16 %v486
    %v758 = vunpack.c.l.b16 %v487
    %v759 = vunpack.c.h.b16 %v487
    %v760 = vunpack.c.l.b16 %v488
    %v761 = vunpack.c.h.b16 %v488
    %v762 = vunpack.c.l.b16 %v489
    %v763 = vunpack.c.h.b16 %v489
    %v764 = vunpack.c.l.b16 %v490
    %v765 = vunpack.c.h.b16 %v490
    %v766 = vunpack.c.l.b16 %v491
    %v767 = vunpack.c.h.b16 %v491
    %v768 = vunpack.c.l.b16 %v492
    %v769 = vunpack.c.h.b16 %v492
    %v770 = vunpack.c.l.b16 %v493
    %v771 = vunpack.c.h.b16 %v493
    %v772 = vunpack.c.l.b16 %v494
    %v773 = vunpack.c.h.b16 %v494
    %v774 = vunpack.c.l.b16 %v495
    %v775 = vunpack.c.h.b16 %v495
    %v776 = vunpack.c.l.b16 %v496
    %v777 = vunpack.c.h.b16 %v496
    %v778 = vunpack.c.l.b16 %v497
    %v779 = vunpack.c.h.b16 %v497
    %v780 = vunpack.c.l.b16 %v498
    %v781 = vunpack.c.h.b16 %v498
    %v782 = vunpack.c.l.b16 %v499
    %v783 = vunpack.c.h.b16 %v499
    %v784 = vunpack.c.l.b16 %v500
    %v785 = vunpack.c.h.b16 %v500
    %v786 = vunpack.c.l.b16 %v501
    %v787 = vunpack.c.h.b16 %v501
    %v788 = vunpack.c.l.b16 %v502
    %v789 = vunpack.c.h.b16 %v502
    %v790 = vunpack.c.l.b16 %v503
    %v791 = vunpack.c.h.b16 %v503
    %v792 = vunpack.c.l.b16 %v504
    %v793 = vunpack.c.h.b16 %v504
    %v794 = vunpack.c.l.b16 %v505
    %v795 = vunpack.c.h.b16 %v505
    %v796 = vunpack.c.l.b16 %v506
    %v797 = vunpack.c.h.b16 %v506
    %v798 = vunpack.c.l.b16 %v507
    %v799 = vunpack.c.h.b16 %v507
    %v800 = vunpack.c.l.b16 %v508
    %v801 = vunpack.c.h.b16 %v508
    %v802 = vunpack.c.l.b16 %v509
    %v803 = vunpack.c.h.b16 %v509
    %v804 = vunpack.c.l.b16 %v510
    %v805 = vunpack.c.h.b16 %v510
    %v806 = vunpack.c.l.b16 %v511
    %v807 = vunpack.c.h.b16 %v511
    %v808 = vunpack.c.l.b16 %v512
    %v809 = vunpack.c.h.b16 %v512
    %v810 = vunpack.c.l.b16 %v513
    %v811 = vunpack.c.h.b16 %v513
    %v812 = vunpack.c.l.b16 %v514
    %v813 = vunpack.c.h.b16 %v514
    %v814 = vunpack.c.l.b16 %v515
    %v815 = vunpack.c.h.b16 %v515
    %v816 = vunpack.c.l.b16 %v516
    %v817 = vunpack.c.h.b16 %v516
    %v818 = vunpack.c.l.b16 %v517
    %v819 = vunpack.c.h.b16 %v517
    %v820 = vunpack.c.l.b16 %v518
    %v821 = vunpack.c.h.b16 %v518
    %v822 = vunpack.c.l.b16 %v519
    %v823 = vunpack.c.h.b16 %v519
    %v824 = vunpack.c.l.b16 %v520
    %v825 = vunpack.c.h.b16 %v520
    %v826 = vunpack.c.l.b16 %v521
    %v827 = vunpack.c.h.b16 %v521
    %v828 = vunpack.c.l.b16 %v522
    %v829 = vunpack.c.h.b16 %v522
    %v830 = vunpack.c.l.b16 %v523
    %v831 = vunpack.c.h.b16 %v523
    %v832 = vunpack.c.l.b16 %v524
    %v833 = vunpack.c.h.b16 %v524
    %v834 = vunpack.c.l.b16 %v525
    %v835 = vunpack.c.h.b16 %v525
    %v836 = vunpack.c.l.b16 %v526
    %v837 = vunpack.c.h.b16 %v526
    %v838 = vunpack.c.l.b16 %v527
    %v839 = vunpack.c.h.b16 %v527
    %v840 = vunpack.c.l.b16 %v528
    %v841 = vunpack.c.h.b16 %v528
    %v842 = vunpack.c.l.b16 %v529
    %v843 = vunpack.c.h.b16 %v529
    %v844 = vunpack.c.l.b16 %v530
    %v845 = vunpack.c.h.b16 %v530
    %v846 = vunpack.c.l.b16 %v531
    %v847 = vunpack.c.h.b16 %v531
    %v848 = vunpack.c.l.b16 %v532
    %v849 = vunpack.c.h.b16 %v532
    %v850 = vunpack.c.l.b16 %v533
    %v851 = vunpack.c.h.b16 %v533
    %v852 = vunpack.c.l.b16 %v534
    %v853 = vunpack.c.h.b16 %v534
    %v854 = vunpack.c.l.b16 %v535
    %v855 = vunpack.c.h.b16 %v535
    %v856 = vunpack.c.l.b16 %v536
    %v857 = vunpack.c.h.b16 %v536
    %v858 = vunpack.c.l.b16 %v537
    %v859 = vunpack.c.h.b16 %v537
    %v860 = vunpack.c.l.b16 %v538
    %v861 = vunpack.c.h.b16 %v538
    %v862 = vunpack.c.l.b16 %v539
    %v863 = vunpack.c.h.b16 %v539
    %v864 = vunpack.c.l.b16 %v540
    %v865 = vunpack.c.h.b16 %v540
    %v866 = vunpack.c.l.b16 %v541
    %v867 = vunpack.c.h.b16 %v541
    %v868 = vunpack.c.l.b16 %v542
    %v869 = vunpack.c.h.b16 %v542
    %v870 = vunpack.c.l.b16 %v543
    %v871 = vunpack.c.h.b16 %v543
    %v872 = vunpack.c.l.b16 %v544
    %v873 = vunpack.c.h.b16 %v544
    %v874 = vunpack.c.l.b16 %v545
    %v875 = vunpack.c.h.b16 %v545
    %v876 = vunpack.c.l.b16 %v546
    %v877 = vunpack.c.h.b16 %v546
    %v878 = vunpack.c.l.b16 %v547
    %v879 = vunpack.c.h.b16 %v547
    %v880 = vunpack.c.l.b16 %v548
    %v881 = vunpack.c.h.b16 %v548
    %v882 = vunpack.c.l.b16 %v549
    %v883 = vunpack.c.h.b16 %v549
    %v884 = vunpack.c.l.b16 %v550
    %v885 = vunpack.c.h.b16 %v550
    %v886 = vunpack.c.l.b16 %v551
    %v887 = vunpack.c.h.b16 %v551
    %v888 = vunpack.c.l.b16 %v552
    %v889 = vunpack.c.h.b16 %v552
    %v890 = vunpack.c.l.b16 %v553
    %v891 = vunpack.c.h.b16 %v553
    %v892 = vunpack.c.l.b16 %v554
    %v893 = vunpack.c.h.b16 %v554
    %v894 = vunpack.c.l.b16 %v555
    %v895 = vunpack.c.h.b16 %v555
    %v896 = vunpack.c.l.b16 %v556
    %v897 = vunpack.c.h.b16 %v556
    %v898 = vunpack.c.l.b16 %v557
    %v899 = vunpack.c.h.b16 %v557
    %v900 = vunpack.c.l.b16 %v558
    %v901 = vunpack.c.h.b16 %v558
    %v902 = vunpack.c.l.b16 %v559
    %v903 = vunpack.c.h.b16 %v559
    %v904 = vunpack.c.l.b16 %v560
    %v905 = vunpack.c.h.b16 %v560
    %v906 = vunpack.c.l.b16 %v561
    %v907 = vunpack.c.h.b16 %v561
    %v908 = vunpack.c.l.b16 %v562
    %v909 = vunpack.c.h.b16 %v562
    %v910 = vunpack.c.l.b16 %v563
    %v911 = vunpack.c.h.b16 %v563
    %v912 = vunpack.c.l.b16 %v564
    %v913 = vunpack.c.h.b16 %v564
    %v914 = vunpack.c.l.b16 %v565
    %v915 = vunpack.c.h.b16 %v565
    %v916 = vunpack.c.l.b16 %v566
    %v917 = vunpack.c.h.b16 %v566
    %v918 = vunpack.c.l.b16 %v567
    %v919 = vunpack.c.h.b16 %v567
    %v920 = vunpack.c.l.b16 %v568
    %v921 = vunpack.c.h.b16 %v568
    %v922 = vunpack.c.l.b16 %v569
    %v923 = vunpack.c.h.b16 %v569
    %v924 = vunpack.c.l.b16 %v570
    %v925 = vunpack.c.h.b16 %v570
    %v926 = vunpack.c.l.b16 %v571
    %v927 = vunpack.c.h.b16 %v571
    %v928 = vunpack.c.l.b16 %v572
    %v929 = vunpack.c.h.b16 %v572
    %v930 = vunpack.c.l.b16 %v573
    %v931 = vunpack.c.h.b16 %v573
    %v932 = vunpack.c.l.b16 %v574
    %v933 = vunpack.c.h.b16 %v574
    %v934 = vunpack.c.l.b16 %v575
    %v935 = vunpack.c.h.b16 %v575
    %v936 = vunpack.c.l.b16 %v576
    %v937 = vunpack.c.h.b16 %v576
    %v938 = vunpack.c.l.b16 %v577
    %v939 = vunpack.c.h.b16 %v577
    %v940 = vunpack.c.l.b16 %v578
    %v941 = vunpack.c.h.b16 %v578
    %v942 = vunpack.c.l.b16 %v579
    %v943 = vunpack.c.h.b16 %v579
    %v944 = vunpack.c.l.b16 %v580
    %v945 = vunpack.c.h.b16 %v580
    %v946 = vunpack.c.l.b16 %v581
    %v947 = vunpack.c.h.b16 %v581
    %v948 = vunpack.c.l.b16 %v582
    %v949 = vunpack.c.h.b16 %v582
    %v950 = vunpack.c.l.b16 %v583
    %v951 = vunpack.c.h.b16 %v583
    %v952 = vunpack.c.l.b16 %v584
    %v953 = vunpack.c.h.b16 %v584
    %v954 = vunpack.c.l.b16 %v585
    %v955 = vunpack.c.h.b16 %v585
    %v956 = vunpack.c.l.b16 %v586
    %v957 = vunpack.c.h.b16 %v586
    %v958 = vunpack.c.l.b16 %v587
    %v959 = vunpack.c.h.b16 %v587
    %v960 = vunpack.c.l.b16 %v588
    %v961 = vunpack.c.h.b16 %v588
    %v962 = vunpack.c.l.b16 %v589
    %v963 = vunpack.c.h.b16 %v589
    %v964 = vunpack.c.l.b16 %v590
    %v965 = vunpack.c.h.b16 %v590
    %v966 = vunpack.c.l.b16 %v591
    %v967 = vunpack.c.h.b16 %v591
    %v968 = vunpack.c.l.b16 %v592
    %v969 = vunpack.c.h.b16 %v592
    %v970 = vunpack.c.l.b16 %v593
    %v971 = vunpack.c.h.b16 %v593
    %v972 = vunpack.c.l.b16 %v594
    %v973 = vunpack.c.h.b16 %v594
    %v974 = vunpack.c.l.b16 %v595
    %v975 = vunpack.c.h.b16 %v595
    %v976 = vunpack.c.l.b16 %v596
    %v977 = vunpack.c.h.b16 %v596
    %v978 = vunpack.c.l.b16 %v597
    %v979 = vunpack.c.h.b16 %v597
    %v980 = vunpack.c.l.b16 %v598
    %v981 = vunpack.c.h.b16 %v598
    %v982 = vunpack.c.l.b16 %v599
    %v983 = vunpack.c.h.b16 %v599
    %v984 = vpack.c.b16 %v732, %v728
    %v985 = vpack.c.b16 %v733, %v729
    %v986 = vpack.c.b16 %v734, %v730
    %v987 = vpack.c.b16 %v735, %v731
    %v988 = vpack.c.b16 %v740, %v736
    %v989 = vpack.c.b16 %v741, %v737
    %v990 = vpack.c.b16 %v742, %v738
    %v991 = vpack.c.b16 %v743, %v739
    %v992 = vpack.c.b16 %v748, %v744
    %v993 = vpack.c.b16 %v749, %v745
    %v994 = vpack.c.b16 %v750, %v746
    %v995 = vpack.c.b16 %v751, %v747
    %v996 = vpack.c.b16 %v756, %v752
    %v997 = vpack.c.b16 %v757, %v753
    %v998 = vpack.c.b16 %v758, %v754
    %v999 = vpack.c.b16 %v759, %v755
    %v1000 = vpack.c.b16 %v764, %v760
    %v1001 = vpack.c.b16 %v765, %v761
    %v1002 = vpack.c.b16 %v766, %v762
    %v1003 = vpack.c.b16 %v767, %v763
    %v1004 = vpack.c.b16 %v772, %v768
    %v1005 = vpack.c.b16 %v773, %v769
    %v1006 = vpack.c.b16 %v774, %v770
    %v1007 = vpack.c.b16 %v775, %v771
    %v1008 = vpack.c.b16 %v780, %v776
    %v1009 = vpack.c.b16 %v781, %v777
    %v1010 = vpack.c.b16 %v782, %v778
    %v1011 = vpack.c.b16 %v783, %v779
    %v1012 = vpack.c.b16 %v788, %v784
    %v1013 = vpack.c.b16 %v789, %v785
    %v1014 = vpack.c.b16 %v790, %v786
    %v1015 = vpack.c.b16 %v791, %v787
    %v1016 = vpack.c.b16 %v796, %v792
    %v1017 = vpack.c.b16 %v797, %v793
    %v1018 = vpack.c.b16 %v798, %v794
    %v1019 = vpack.c.b16 %v799, %v795
    %v1020 = vpack.c.b16 %v804, %v800
    %v1021 = vpack.c.b16 %v805, %v801
    %v1022 = vpack.c.b16 %v806, %v802
    %v1023 = vpack.c.b16 %v807, %v803
    %v1024 = vpack.c.b16 %v812, %v808
    %v1025 = vpack.c.b16 %v813, %v809
    %v1026 = vpack.c.b16 %v814, %v810
    %v1027 = vpack.c.b16 %v815, %v811
    %v1028 = vpack.c.b16 %v820, %v816
    %v1029 = vpack.c.b16 %v821, %v817
    %v1030 = vpack.c.b16 %v822, %v818
    %v1031 = vpack.c.b16 %v823, %v819
    %v1032 = vpack.c.b16 %v828, %v824
    %v1033 = vpack.c.b16 %v829, %v825
    %v1034 = vpack.c.b16 %v830, %v826
    %v1035 = vpack.c.b16 %v831, %v827
    %v1036 = vpack.c.b16 %v836, %v832
    %v1037 = vpack.c.b16 %v837, %v833
    %v1038 = vpack.c.b16 %v838, %v834
    %v1039 = vpack.c.b16 %v839, %v835
    %v1040 = vpack.c.b16 %v844, %v840
    %v1041 = vpack.c.b16 %v845, %v841
    %v1042 = vpack.c.b16 %v846, %v842
    %v1043 = vpack.c.b16 %v847, %v843
    %v1044 = vpack.c.b16 %v852, %v848
    %v1045 = vpack.c.b16 %v853, %v849
    %v1046 = vpack.c.b16 %v854, %v850
    %v1047 = vpack.c.b16 %v855, %v851
    %v1048 = vpack.c.b16 %v860, %v856
    %v1049 = vpack.c.b16 %v861, %v857
    %v1050 = vpack.c.b16 %v862, %v858
    %v1051 = vpack.c.b16 %v863, %v859
    %v1052 = vpack.c.b16 %v868, %v864
    %v1053 = vpack.c.b16 %v869, %v865
    %v1054 = vpack.c.b16 %v870, %v866
    %v1055 = vpack.c.b16 %v871, %v867
    %v1056 = vpack.c.b16 %v876, %v872
    %v1057 = vpack.c.b16 %v877, %v873
    %v1058 = vpack.c.b16 %v878, %v874
    %v1059 = vpack.c.b16 %v879, %v875
    %v1060 = vpack.c.b16 %v884, %v880
    %v1061 = vpack.c.b16 %v885, %v881
    %v1062 = vpack.c.b16 %v886, %v882
    %v1063 = vpack.c.b16 %v887, %v883
    %v1064 = vpack.c.b16 %v892, %v888
    %v1065 = vpack.c.b16 %v893, %v889
    %v1066 = vpack.c.b16 %v894, %v890
    %v1067 = vpack.c.b16 %v895, %v891
    %v1068 = vpack.c.b16 %v900, %v896
    %v1069 = vpack.c.b16 %v901, %v897
    %v1070 = vpack.c.b16 %v902, %v898
    %v1071 = vpack.c.b16 %v903, %v899
    %v1072 = vpack.c.b16 %v908, %v904
    %v1073 = vpack.c.b16 %v909, %v905
    %v1074 = vpack.c.b16 %v910, %v906
    %v1075 = vpack.c.b16 %v911, %v907
    %v1076 = vpack.c.b16 %v916, %v912
    %v1077 = vpack.c.b16 %v917, %v913
    %v1078 = vpack.c.b16 %v918, %v914
    %v1079 = vpack.c.b16 %v919, %v915
    %v1080 = vpack.c.b16 %v924, %v920
    %v1081 = vpack.c.b16 %v925, %v921
    %v1082 = vpack.c.b16 %v926, %v922
    %v1083 = vpack.c.b16 %v927, %v923
    %v1084 = vpack.c.b16 %v932, %v928
    %v1085 = vpack.c.b16 %v933, %v929
    %v1086 = vpack.c.b16 %v934, %v930
    %v1087 = vpack.c.b16 %v935, %v931
    %v1088 = vpack.c.b16 %v940, %v936
    %v1089 = vpack.c.b16 %v941, %v937
    %v1090 = vpack.c.b16 %v942, %v938
    %v1091 = vpack.c.b16 %v943, %v939
    %v1092 = vpack.c.b16 %v948, %v944
    %v1093 = vpack.c.b16 %v949, %v945
    %v1094 = vpack.c.b16 %v950, %v946
    %v1095 = vpack.c.b16 %v951, %v947
    %v1096 = vpack.c.b16 %v956, %v952
    %v1097 = vpack.c.b16 %v957, %v953
    %v1098 = vpack.c.b16 %v958, %v954
    %v1099 = vpack.c.b16 %v959, %v955
    %v1100 = vpack.c.b16 %v964, %v960
    %v1101 = vpack.c.b16 %v965, %v961
    %v1102 = vpack.c.b16 %v966, %v962
    %v1103 = vpack.c.b16 %v967, %v963
    %v1104 = vpack.c.b16 %v972, %v968
    %v1105 = vpack.c.b16 %v973, %v969
    %v1106 = vpack.c.b16 %v974, %v970
    %v1107 = vpack.c.b16 %v975, %v971
    %v1108 = vpack.c.b16 %v980, %v976
    %v1109 = vpack.c.b16 %v981, %v977
    %v1110 = vpack.c.b16 %v982, %v978
    %v1111 = vpack.c.b16 %v983, %v979
    %1240 = vmatprep.subr.bf16.mxu0 %v985
    %1241 = vmatpush1.bf16.msra.mxu0 %v984
    %1242 = vmatprep.subr.bf16.mxu0 %v989
    %1243 = vmatpush1.bf16.msra.mxu0 %v988
    %1244 = vmatprep.subr.bf16.mxu0 %v993
    %1245 = vmatpush1.bf16.msra.mxu0 %v992
    %1246 = vmatprep.subr.bf16.mxu0 %v997
    %1247 = vmatpush1.bf16.msra.mxu0 %v996
    %1248 = vmatprep.subr.bf16.mxu0 %v1001
    %1249 = vmatpush1.bf16.msra.mxu0 %v1000
    %1250 = vmatprep.subr.bf16.mxu0 %v1005
    %1251 = vmatpush1.bf16.msra.mxu0 %v1004
    %1252 = vmatprep.subr.bf16.mxu0 %v1009
    %1253 = vmatpush1.bf16.msra.mxu0 %v1008
    %1254 = vmatprep.subr.bf16.mxu0 %v1013
    %1255 = vmatpush1.bf16.msra.mxu0 %v1012
    %1256 = vmatprep.subr.bf16.mxu0 %v1017
    %1257 = vmatpush1.bf16.msra.mxu0 %v1016
    %1258 = vmatprep.subr.bf16.mxu0 %v1021
    %1259 = vmatpush1.bf16.msra.mxu0 %v1020
    %1260 = vmatprep.subr.bf16.mxu0 %v1025
    %1261 = vmatpush1.bf16.msra.mxu0 %v1024
    %1262 = vmatprep.subr.bf16.mxu0 %v1029
    %1263 = vmatpush1.bf16.msra.mxu0 %v1028
    %1264 = vmatprep.subr.bf16.mxu0 %v1033
    %1265 = vmatpush1.bf16.msra.mxu0 %v1032
    %1266 = vmatprep.subr.bf16.mxu0 %v1037
    %1267 = vmatpush1.bf16.msra.mxu0 %v1036
    %1268 = vmatprep.subr.bf16.mxu0 %v1041
    %1269 = vmatpush1.bf16.msra.mxu0 %v1040
    %1270 = vmatprep.subr.bf16.mxu0 %v1045
    %1271 = vmatpush1.bf16.msra.mxu0 %v1044
    %1272 = vmatprep.mubr.bf16.mxu0 %v469
    %1273 = vmatmul.mubr.bf16.gmra.mrb[0].mxu0 %v468
    %v1274 = vpop.f32.mrb[0].mxu0
    %v1275 = vadd.f32 0.0, %v1274
    %v1276 = vpop.f32.mrb[0].mxu0
    %v1277 = vadd.f32 0.0, %v1276
    %v1278 = vpop.f32.mrb[0].mxu0
    %v1279 = vadd.f32 0.0, %v1278
    %v1280 = vpop.f32.mrb[0].mxu0
    %v1281 = vadd.f32 0.0, %v1280
    %1282 = vdwg.mxu0
    %1283 = vmatprep.subr.bf16.mxu0 %v1049
    %1284 = vmatpush1.bf16.msra.mxu0 %v1048
    %1285 = vmatprep.subr.bf16.mxu0 %v1053
    %1286 = vmatpush1.bf16.msra.mxu0 %v1052
    %1287 = vmatprep.subr.bf16.mxu0 %v1057
    %1288 = vmatpush1.bf16.msra.mxu0 %v1056
    %1289 = vmatprep.subr.bf16.mxu0 %v1061
    %1290 = vmatpush1.bf16.msra.mxu0 %v1060
    %1291 = vmatprep.subr.bf16.mxu0 %v1065
    %1292 = vmatpush1.bf16.msra.mxu0 %v1064
    %1293 = vmatprep.subr.bf16.mxu0 %v1069
    %1294 = vmatpush1.bf16.msra.mxu0 %v1068
    %1295 = vmatprep.subr.bf16.mxu0 %v1073
    %1296 = vmatpush1.bf16.msra.mxu0 %v1072
    %1297 = vmatprep.subr.bf16.mxu0 %v1077
    %1298 = vmatpush1.bf16.msra.mxu0 %v1076
    %1299 = vmatprep.subr.bf16.mxu0 %v1081
    %1300 = vmatpush1.bf16.msra.mxu0 %v1080
    %1301 = vmatprep.subr.bf16.mxu0 %v1085
    %1302 = vmatpush1.bf16.msra.mxu0 %v1084
    %1303 = vmatprep.subr.bf16.mxu0 %v1089
    %1304 = vmatpush1.bf16.msra.mxu0 %v1088
    %1305 = vmatprep.subr.bf16.mxu0 %v1093
    %1306 = vmatpush1.bf16.msra.mxu0 %v1092
    %1307 = vmatprep.subr.bf16.mxu0 %v1097
    %1308 = vmatpush1.bf16.msra.mxu0 %v1096
    %1309 = vmatprep.subr.bf16.mxu0 %v1101
    %1310 = vmatpush1.bf16.msra.mxu0 %v1100
    %1311 = vmatprep.subr.bf16.mxu0 %v1105
    %1312 = vmatpush1.bf16.msra.mxu0 %v1104
    %1313 = vmatprep.subr.bf16.mxu0 %v1109
    %1314 = vmatpush1.bf16.msra.mxu0 %v1108
    %1315 = vmatprep.mubr.bf16.mxu0 %v471
    %1316 = vmatmul.mubr.bf16.gmra.mrb[0].mxu0 %v470
    %v1317 = vpop.f32.mrb[0].mxu0
    %v1318 = vadd.f32 %v1275, %v1317
    %v1319 = vpop.f32.mrb[0].mxu0
    %v1320 = vadd.f32 %v1277, %v1319
    %v1321 = vpop.f32.mrb[0].mxu0
    %v1322 = vadd.f32 %v1279, %v1321
    %v1323 = vpop.f32.mrb[0].mxu0
    %v1324 = vadd.f32 %v1281, %v1323
    %1325 = vdwg.mxu0
    %1326 = vmatprep.subr.bf16.mxu0 %v987
    %1327 = vmatpush1.bf16.msra.mxu0 %v986
    %1328 = vmatprep.subr.bf16.mxu0 %v991
    %1329 = vmatpush1.bf16.msra.mxu0 %v990
    %1330 = vmatprep.subr.bf16.mxu0 %v995
    %1331 = vmatpush1.bf16.msra.mxu0 %v994
    %1332 = vmatprep.subr.bf16.mxu0 %v999
    %1333 = vmatpush1.bf16.msra.mxu0 %v998
    %1334 = vmatprep.subr.bf16.mxu0 %v1003
    %1335 = vmatpush1.bf16.msra.mxu0 %v1002
    %1336 = vmatprep.subr.bf16.mxu0 %v1007
    %1337 = vmatpush1.bf16.msra.mxu0 %v1006
    %1338 = vmatprep.subr.bf16.mxu0 %v1011
    %1339 = vmatpush1.bf16.msra.mxu0 %v1010
    %1340 = vmatprep.subr.bf16.mxu0 %v1015
    %1341 = vmatpush1.bf16.msra.mxu0 %v1014
    %1342 = vmatprep.subr.bf16.mxu0 %v1019
    %1343 = vmatpush1.bf16.msra.mxu0 %v1018
    %1344 = vmatprep.subr.bf16.mxu0 %v1023
    %1345 = vmatpush1.bf16.msra.mxu0 %v1022
    %1346 = vmatprep.subr.bf16.mxu0 %v1027
    %1347 = vmatpush1.bf16.msra.mxu0 %v1026
    %1348 = vmatprep.subr.bf16.mxu0 %v1031
    %1349 = vmatpush1.bf16.msra.mxu0 %v1030
    %1350 = vmatprep.subr.bf16.mxu0 %v1035
    %1351 = vmatpush1.bf16.msra.mxu0 %v1034
    %1352 = vmatprep.subr.bf16.mxu0 %v1039
    %1353 = vmatpush1.bf16.msra.mxu0 %v1038
    %1354 = vmatprep.subr.bf16.mxu0 %v1043
    %1355 = vmatpush1.bf16.msra.mxu0 %v1042
    %1356 = vmatprep.subr.bf16.mxu0 %v1047
    %1357 = vmatpush1.bf16.msra.mxu0 %v1046
    %1358 = vmatprep.mubr.bf16.mxu0 %v469
    %1359 = vmatmul.mubr.bf16.gmra.mrb[0].mxu0 %v468
    %v1360 = vpop.f32.mrb[0].mxu0
    %v1361 = vadd.f32 0.0, %v1360
    %v1362 = vpop.f32.mrb[0].mxu0
    %v1363 = vadd.f32 0.0, %v1362
    %v1364 = vpop.f32.mrb[0].mxu0
    %v1365 = vadd.f32 0.0, %v1364
    %v1366 = vpop.f32.mrb[0].mxu0
    %v1367 = vadd.f32 0.0, %v1366
    %1368 = vdwg.mxu0
    %1369 = vmatprep.subr.bf16.mxu0 %v1051
    %1370 = vmatpush1.bf16.msra.mxu0 %v1050
    %1371 = vmatprep.subr.bf16.mxu0 %v1055
    %1372 = vmatpush1.bf16.msra.mxu0 %v1054
    %1373 = vmatprep.subr.bf16.mxu0 %v1059
    %1374 = vmatpush1.bf16.msra.mxu0 %v1058
    %1375 = vmatprep.subr.bf16.mxu0 %v1063
    %1376 = vmatpush1.bf16.msra.mxu0 %v1062
    %1377 = vmatprep.subr.bf16.mxu0 %v1067
    %1378 = vmatpush1.bf16.msra.mxu0 %v1066
    %1379 = vmatprep.subr.bf16.mxu0 %v1071
    %1380 = vmatpush1.bf16.msra.mxu0 %v1070
    %1381 = vmatprep.subr.bf16.mxu0 %v1075
    %1382 = vmatpush1.bf16.msra.mxu0 %v1074
    %1383 = vmatprep.subr.bf16.mxu0 %v1079
    %1384 = vmatpush1.bf16.msra.mxu0 %v1078
    %1385 = vmatprep.subr.bf16.mxu0 %v1083
    %1386 = vmatpush1.bf16.msra.mxu0 %v1082
    %1387 = vmatprep.subr.bf16.mxu0 %v1087
    %1388 = vmatpush1.bf16.msra.mxu0 %v1086
    %1389 = vmatprep.subr.bf16.mxu0 %v1091
    %1390 = vmatpush1.bf16.msra.mxu0 %v1090
    %1391 = vmatprep.subr.bf16.mxu0 %v1095
    %1392 = vmatpush1.bf16.msra.mxu0 %v1094
    %1393 = vmatprep.subr.bf16.mxu0 %v1099
    %1394 = vmatpush1.bf16.msra.mxu0 %v1098
    %1395 = vmatprep.subr.bf16.mxu0 %v1103
    %1396 = vmatpush1.bf16.msra.mxu0 %v1102
    %1397 = vmatprep.subr.bf16.mxu0 %v1107
    %1398 = vmatpush1.bf16.msra.mxu0 %v1106
    %1399 = vmatprep.subr.bf16.mxu0 %v1111
    %1400 = vmatpush1.bf16.msra.mxu0 %v1110
    %1401 = vmatprep.mubr.bf16.mxu0 %v471
    %1402 = vmatmul.mubr.bf16.gmra.mrb[0].mxu0 %v470
    %v1403 = vpop.f32.mrb[0].mxu0
    %v1404 = vadd.f32 %v1361, %v1403
    %v1405 = vpop.f32.mrb[0].mxu0
    %v1406 = vadd.f32 %v1363, %v1405
    %v1407 = vpop.f32.mrb[0].mxu0
    %v1408 = vadd.f32 %v1365, %v1407
    %v1409 = vpop.f32.mrb[0].mxu0
    %v1410 = vadd.f32 %v1367, %v1409
    %1411 = vdwg.mxu0
    %v1412 = vld [vmem:[%s5] sm:$0xf]
    %v1414 = vlaneseq
    %v1415 = vshrl.u32 %v1414, 7
    %v1416 = vsub.s32 0, %v1415
    %v1417 = vrot.slane %v1412, %v1416
    %v1418 = vlaneseq
    %v1419 = vshrl.u32 %v1418, 7
    %v1420 = vsub.s32 1, %v1419
    %v1421 = vrot.slane %v1412, %v1420
    %v1422 = vlaneseq
    %v1423 = vshrl.u32 %v1422, 7
    %v1424 = vsub.s32 2, %v1423
    %v1425 = vrot.slane %v1412, %v1424
    %v1426 = vlaneseq
    %v1427 = vshrl.u32 %v1426, 7
    %v1428 = vsub.s32 3, %v1427
    %v1429 = vrot.slane %v1412, %v1428
    %v1434 = vmul.f32 %v1318, %v1417
    %v1435 = vmul.f32 %v1320, %v1421
    %v1436 = vmul.f32 %v1404, %v1425
    %v1437 = vmul.f32 %v1406, %v1429
    %v1438 = vmul.f32 %v1322, %v1417
    %v1439 = vmul.f32 %v1324, %v1421
    %v1440 = vmul.f32 %v1408, %v1425
    %v1441 = vmul.f32 %v1410, %v1429
    %v1442 = vld [vmem:[%s6] sm:$0xf]
    %v1444 = vlaneseq
    %v1445 = vshrl.u32 %v1444, 7
    %v1446 = vsub.s32 0, %v1445
    %v1447 = vrot.slane %v1442, %v1446
    %v1448 = vlaneseq
    %v1449 = vshrl.u32 %v1448, 7
    %v1450 = vsub.s32 1, %v1449
    %v1451 = vrot.slane %v1442, %v1450
    %v1452 = vlaneseq
    %v1453 = vshrl.u32 %v1452, 7
    %v1454 = vsub.s32 2, %v1453
    %v1455 = vrot.slane %v1442, %v1454
    %v1456 = vlaneseq
    %v1457 = vshrl.u32 %v1456, 7
    %v1458 = vsub.s32 3, %v1457
    %v1459 = vrot.slane %v1442, %v1458
    %v1464 = vadd.f32 %v1434, %v1447
    %v1465 = vadd.f32 %v1435, %v1451
    %v1466 = vadd.f32 %v1436, %v1455
    %v1467 = vadd.f32 %v1437, %v1459
    %v1468 = vadd.f32 %v1438, %v1447
    %v1469 = vadd.f32 %v1439, %v1451
    %v1470 = vadd.f32 %v1440, %v1455
    %v1471 = vadd.f32 %v1441, %v1459
    %v1472 = vmax.f32 %v1464, 0.0
    %v1473 = vmax.f32 %v1465, 0.0
    %v1474 = vmax.f32 %v1466, 0.0
    %v1475 = vmax.f32 %v1467, 0.0
    %v1476 = vmax.f32 %v1468, 0.0
    %v1477 = vmax.f32 %v1469, 0.0
    %v1478 = vmax.f32 %v1470, 0.0
    %v1479 = vmax.f32 %v1471, 0.0
    %v1480 = vpack.c.bf16 %v1476, %v1472
    %v1481 = vpack.c.bf16 %v1477, %v1473
    %v1482 = vpack.c.bf16 %v1478, %v1474
    %v1483 = vpack.c.bf16 %v1479, %v1475
    %v1484 = vld [vmem:[#allocation8] sm:$0xff]
    %v1485 = vld [vmem:[#allocation8 + $0x8] sm:$0xff]
    %v1486 = vld [vmem:[#allocation8 + $0x10] sm:$0xff]
    %v1487 = vld [vmem:[#allocation8 + $0x18] sm:$0xff]
    %v1488 = vld [vmem:[#allocation8 + $0x20] sm:$0xff]
    %v1489 = vld [vmem:[#allocation8 + $0x28] sm:$0xff]
    %v1490 = vld [vmem:[#allocation8 + $0x30] sm:$0xff]
    %v1491 = vld [vmem:[#allocation8 + $0x38] sm:$0xff]
    %v1492 = vld [vmem:[#allocation8 + $0x40] sm:$0xff]
    %v1493 = vld [vmem:[#allocation8 + $0x48] sm:$0xff]
    %v1494 = vld [vmem:[#allocation8 + $0x50] sm:$0xff]
    %v1495 = vld [vmem:[#allocation8 + $0x58] sm:$0xff]
    %v1496 = vld [vmem:[#allocation8 + $0x60] sm:$0xff]
    %v1497 = vld [vmem:[#allocation8 + $0x68] sm:$0xff]
    %v1498 = vld [vmem:[#allocation8 + $0x70] sm:$0xff]
    %v1499 = vld [vmem:[#allocation8 + $0x78] sm:$0xff]
    %v1500 = vld [vmem:[#allocation8 + $0x80] sm:$0xff]
    %v1501 = vld [vmem:[#allocation8 + $0x88] sm:$0xff]
    %v1502 = vld [vmem:[#allocation8 + $0x90] sm:$0xff]
    %v1503 = vld [vmem:[#allocation8 + $0x98] sm:$0xff]
    %v1504 = vld [vmem:[#allocation8 + $0xa0] sm:$0xff]
    %v1505 = vld [vmem:[#allocation8 + $0xa8] sm:$0xff]
    %v1506 = vld [vmem:[#allocation8 + $0xb0] sm:$0xff]
    %v1507 = vld [vmem:[#allocation8 + $0xb8] sm:$0xff]
    %v1508 = vld [vmem:[#allocation8 + $0xc0] sm:$0xff]
    %v1509 = vld [vmem:[#allocation8 + $0xc8] sm:$0xff]
    %v1510 = vld [vmem:[#allocation8 + $0xd0] sm:$0xff]
    %v1511 = vld [vmem:[#allocation8 + $0xd8] sm:$0xff]
    %v1512 = vld [vmem:[#allocation8 + $0xe0] sm:$0xff]
    %v1513 = vld [vmem:[#allocation8 + $0xe8] sm:$0xff]
    %v1514 = vld [vmem:[#allocation8 + $0xf0] sm:$0xff]
    %v1515 = vld [vmem:[#allocation8 + $0xf8] sm:$0xff]
    %v1516 = vld [vmem:[#allocation8 + $0x100] sm:$0xff]
    %v1517 = vld [vmem:[#allocation8 + $0x108] sm:$0xff]
    %v1518 = vld [vmem:[#allocation8 + $0x110] sm:$0xff]
    %v1519 = vld [vmem:[#allocation8 + $0x118] sm:$0xff]
    %v1520 = vld [vmem:[#allocation8 + $0x120] sm:$0xff]
    %v1521 = vld [vmem:[#allocation8 + $0x128] sm:$0xff]
    %v1522 = vld [vmem:[#allocation8 + $0x130] sm:$0xff]
    %v1523 = vld [vmem:[#allocation8 + $0x138] sm:$0xff]
    %v1524 = vld [vmem:[#allocation8 + $0x140] sm:$0xff]
    %v1525 = vld [vmem:[#allocation8 + $0x148] sm:$0xff]
    %v1526 = vld [vmem:[#allocation8 + $0x150] sm:$0xff]
    %v1527 = vld [vmem:[#allocation8 + $0x158] sm:$0xff]
    %v1528 = vld [vmem:[#allocation8 + $0x160] sm:$0xff]
    %v1529 = vld [vmem:[#allocation8 + $0x168] sm:$0xff]
    %v1530 = vld [vmem:[#allocation8 + $0x170] sm:$0xff]
    %v1531 = vld [vmem:[#allocation8 + $0x178] sm:$0xff]
    %v1532 = vld [vmem:[#allocation8 + $0x180] sm:$0xff]
    %v1533 = vld [vmem:[#allocation8 + $0x188] sm:$0xff]
    %v1534 = vld [vmem:[#allocation8 + $0x190] sm:$0xff]
    %v1535 = vld [vmem:[#allocation8 + $0x198] sm:$0xff]
    %v1536 = vld [vmem:[#allocation8 + $0x1a0] sm:$0xff]
    %v1537 = vld [vmem:[#allocation8 + $0x1a8] sm:$0xff]
    %v1538 = vld [vmem:[#allocation8 + $0x1b0] sm:$0xff]
    %v1539 = vld [vmem:[#allocation8 + $0x1b8] sm:$0xff]
    %v1540 = vld [vmem:[#allocation8 + $0x1c0] sm:$0xff]
    %v1541 = vld [vmem:[#allocation8 + $0x1c8] sm:$0xff]
    %v1542 = vld [vmem:[#allocation8 + $0x1d0] sm:$0xff]
    %v1543 = vld [vmem:[#allocation8 + $0x1d8] sm:$0xff]
    %v1544 = vld [vmem:[#allocation8 + $0x1e0] sm:$0xff]
    %v1545 = vld [vmem:[#allocation8 + $0x1e8] sm:$0xff]
    %v1546 = vld [vmem:[#allocation8 + $0x1f0] sm:$0xff]
    %v1547 = vld [vmem:[#allocation8 + $0x1f8] sm:$0xff]
    %v1548 = vld [vmem:[#allocation8 + $0x200] sm:$0xff]
    %v1549 = vld [vmem:[#allocation8 + $0x208] sm:$0xff]
    %v1550 = vld [vmem:[#allocation8 + $0x210] sm:$0xff]
    %v1551 = vld [vmem:[#allocation8 + $0x218] sm:$0xff]
    %v1552 = vld [vmem:[#allocation8 + $0x220] sm:$0xff]
    %v1553 = vld [vmem:[#allocation8 + $0x228] sm:$0xff]
    %v1554 = vld [vmem:[#allocation8 + $0x230] sm:$0xff]
    %v1555 = vld [vmem:[#allocation8 + $0x238] sm:$0xff]
    %v1556 = vld [vmem:[#allocation8 + $0x240] sm:$0xff]
    %v1557 = vld [vmem:[#allocation8 + $0x248] sm:$0xff]
    %v1558 = vld [vmem:[#allocation8 + $0x250] sm:$0xff]
    %v1559 = vld [vmem:[#allocation8 + $0x258] sm:$0xff]
    %v1560 = vld [vmem:[#allocation8 + $0x260] sm:$0xff]
    %v1561 = vld [vmem:[#allocation8 + $0x268] sm:$0xff]
    %v1562 = vld [vmem:[#allocation8 + $0x270] sm:$0xff]
    %v1563 = vld [vmem:[#allocation8 + $0x278] sm:$0xff]
    %v1564 = vld [vmem:[#allocation8 + $0x280] sm:$0xff]
    %v1565 = vld [vmem:[#allocation8 + $0x288] sm:$0xff]
    %v1566 = vld [vmem:[#allocation8 + $0x290] sm:$0xff]
    %v1567 = vld [vmem:[#allocation8 + $0x298] sm:$0xff]
    %v1568 = vld [vmem:[#allocation8 + $0x2a0] sm:$0xff]
    %v1569 = vld [vmem:[#allocation8 + $0x2a8] sm:$0xff]
    %v1570 = vld [vmem:[#allocation8 + $0x2b0] sm:$0xff]
    %v1571 = vld [vmem:[#allocation8 + $0x2b8] sm:$0xff]
    %v1572 = vld [vmem:[#allocation8 + $0x2c0] sm:$0xff]
    %v1573 = vld [vmem:[#allocation8 + $0x2c8] sm:$0xff]
    %v1574 = vld [vmem:[#allocation8 + $0x2d0] sm:$0xff]
    %v1575 = vld [vmem:[#allocation8 + $0x2d8] sm:$0xff]
    %v1576 = vld [vmem:[#allocation8 + $0x2e0] sm:$0xff]
    %v1577 = vld [vmem:[#allocation8 + $0x2e8] sm:$0xff]
    %v1578 = vld [vmem:[#allocation8 + $0x2f0] sm:$0xff]
    %v1579 = vld [vmem:[#allocation8 + $0x2f8] sm:$0xff]
    %v1580 = vld [vmem:[#allocation8 + $0x300] sm:$0xff]
    %v1581 = vld [vmem:[#allocation8 + $0x308] sm:$0xff]
    %v1582 = vld [vmem:[#allocation8 + $0x310] sm:$0xff]
    %v1583 = vld [vmem:[#allocation8 + $0x318] sm:$0xff]
    %v1584 = vld [vmem:[#allocation8 + $0x320] sm:$0xff]
    %v1585 = vld [vmem:[#allocation8 + $0x328] sm:$0xff]
    %v1586 = vld [vmem:[#allocation8 + $0x330] sm:$0xff]
    %v1587 = vld [vmem:[#allocation8 + $0x338] sm:$0xff]
    %v1588 = vld [vmem:[#allocation8 + $0x340] sm:$0xff]
    %v1589 = vld [vmem:[#allocation8 + $0x348] sm:$0xff]
    %v1590 = vld [vmem:[#allocation8 + $0x350] sm:$0xff]
    %v1591 = vld [vmem:[#allocation8 + $0x358] sm:$0xff]
    %v1592 = vld [vmem:[#allocation8 + $0x360] sm:$0xff]
    %v1593 = vld [vmem:[#allocation8 + $0x368] sm:$0xff]
    %v1594 = vld [vmem:[#allocation8 + $0x370] sm:$0xff]
    %v1595 = vld [vmem:[#allocation8 + $0x378] sm:$0xff]
    %v1596 = vld [vmem:[#allocation8 + $0x380] sm:$0xff]
    %v1597 = vld [vmem:[#allocation8 + $0x388] sm:$0xff]
    %v1598 = vld [vmem:[#allocation8 + $0x390] sm:$0xff]
    %v1599 = vld [vmem:[#allocation8 + $0x398] sm:$0xff]
    %v1600 = vld [vmem:[#allocation8 + $0x3a0] sm:$0xff]
    %v1601 = vld [vmem:[#allocation8 + $0x3a8] sm:$0xff]
    %v1602 = vld [vmem:[#allocation8 + $0x3b0] sm:$0xff]
    %v1603 = vld [vmem:[#allocation8 + $0x3b8] sm:$0xff]
    %v1604 = vld [vmem:[#allocation8 + $0x3c0] sm:$0xff]
    %v1605 = vld [vmem:[#allocation8 + $0x3c8] sm:$0xff]
    %v1606 = vld [vmem:[#allocation8 + $0x3d0] sm:$0xff]
    %v1607 = vld [vmem:[#allocation8 + $0x3d8] sm:$0xff]
    %v1608 = vld [vmem:[#allocation8 + $0x3e0] sm:$0xff]
    %v1609 = vld [vmem:[#allocation8 + $0x3e8] sm:$0xff]
    %v1610 = vld [vmem:[#allocation8 + $0x3f0] sm:$0xff]
    %v1611 = vld [vmem:[#allocation8 + $0x3f8] sm:$0xff]
    %v1740 = vunpack.c.l.b16 %v1484
    %v1741 = vunpack.c.h.b16 %v1484
    %v1742 = vunpack.c.l.b16 %v1485
    %v1743 = vunpack.c.h.b16 %v1485
    %v1744 = vunpack.c.l.b16 %v1486
    %v1745 = vunpack.c.h.b16 %v1486
    %v1746 = vunpack.c.l.b16 %v1487
    %v1747 = vunpack.c.h.b16 %v1487
    %v1748 = vunpack.c.l.b16 %v1488
    %v1749 = vunpack.c.h.b16 %v1488
    %v1750 = vunpack.c.l.b16 %v1489
    %v1751 = vunpack.c.h.b16 %v1489
    %v1752 = vunpack.c.l.b16 %v1490
    %v1753 = vunpack.c.h.b16 %v1490
    %v1754 = vunpack.c.l.b16 %v1491
    %v1755 = vunpack.c.h.b16 %v1491
    %v1756 = vunpack.c.l.b16 %v1492
    %v1757 = vunpack.c.h.b16 %v1492
    %v1758 = vunpack.c.l.b16 %v1493
    %v1759 = vunpack.c.h.b16 %v1493
    %v1760 = vunpack.c.l.b16 %v1494
    %v1761 = vunpack.c.h.b16 %v1494
    %v1762 = vunpack.c.l.b16 %v1495
    %v1763 = vunpack.c.h.b16 %v1495
    %v1764 = vunpack.c.l.b16 %v1496
    %v1765 = vunpack.c.h.b16 %v1496
    %v1766 = vunpack.c.l.b16 %v1497
    %v1767 = vunpack.c.h.b16 %v1497
    %v1768 = vunpack.c.l.b16 %v1498
    %v1769 = vunpack.c.h.b16 %v1498
    %v1770 = vunpack.c.l.b16 %v1499
    %v1771 = vunpack.c.h.b16 %v1499
    %v1772 = vunpack.c.l.b16 %v1500
    %v1773 = vunpack.c.h.b16 %v1500
    %v1774 = vunpack.c.l.b16 %v1501
    %v1775 = vunpack.c.h.b16 %v1501
    %v1776 = vunpack.c.l.b16 %v1502
    %v1777 = vunpack.c.h.b16 %v1502
    %v1778 = vunpack.c.l.b16 %v1503
    %v1779 = vunpack.c.h.b16 %v1503
    %v1780 = vunpack.c.l.b16 %v1504
    %v1781 = vunpack.c.h.b16 %v1504
    %v1782 = vunpack.c.l.b16 %v1505
    %v1783 = vunpack.c.h.b16 %v1505
    %v1784 = vunpack.c.l.b16 %v1506
    %v1785 = vunpack.c.h.b16 %v1506
    %v1786 = vunpack.c.l.b16 %v1507
    %v1787 = vunpack.c.h.b16 %v1507
    %v1788 = vunpack.c.l.b16 %v1508
    %v1789 = vunpack.c.h.b16 %v1508
    %v1790 = vunpack.c.l.b16 %v1509
    %v1791 = vunpack.c.h.b16 %v1509
    %v1792 = vunpack.c.l.b16 %v1510
    %v1793 = vunpack.c.h.b16 %v1510
    %v1794 = vunpack.c.l.b16 %v1511
    %v1795 = vunpack.c.h.b16 %v1511
    %v1796 = vunpack.c.l.b16 %v1512
    %v1797 = vunpack.c.h.b16 %v1512
    %v1798 = vunpack.c.l.b16 %v1513
    %v1799 = vunpack.c.h.b16 %v1513
    %v1800 = vunpack.c.l.b16 %v1514
    %v1801 = vunpack.c.h.b16 %v1514
    %v1802 = vunpack.c.l.b16 %v1515
    %v1803 = vunpack.c.h.b16 %v1515
    %v1804 = vunpack.c.l.b16 %v1516
    %v1805 = vunpack.c.h.b16 %v1516
    %v1806 = vunpack.c.l.b16 %v1517
    %v1807 = vunpack.c.h.b16 %v1517
    %v1808 = vunpack.c.l.b16 %v1518
    %v1809 = vunpack.c.h.b16 %v1518
    %v1810 = vunpack.c.l.b16 %v1519
    %v1811 = vunpack.c.h.b16 %v1519
    %v1812 = vunpack.c.l.b16 %v1520
    %v1813 = vunpack.c.h.b16 %v1520
    %v1814 = vunpack.c.l.b16 %v1521
    %v1815 = vunpack.c.h.b16 %v1521
    %v1816 = vunpack.c.l.b16 %v1522
    %v1817 = vunpack.c.h.b16 %v1522
    %v1818 = vunpack.c.l.b16 %v1523
    %v1819 = vunpack.c.h.b16 %v1523
    %v1820 = vunpack.c.l.b16 %v1524
    %v1821 = vunpack.c.h.b16 %v1524
    %v1822 = vunpack.c.l.b16 %v1525
    %v1823 = vunpack.c.h.b16 %v1525
    %v1824 = vunpack.c.l.b16 %v1526
    %v1825 = vunpack.c.h.b16 %v1526
    %v1826 = vunpack.c.l.b16 %v1527
    %v1827 = vunpack.c.h.b16 %v1527
    %v1828 = vunpack.c.l.b16 %v1528
    %v1829 = vunpack.c.h.b16 %v1528
    %v1830 = vunpack.c.l.b16 %v1529
    %v1831 = vunpack.c.h.b16 %v1529
    %v1832 = vunpack.c.l.b16 %v1530
    %v1833 = vunpack.c.h.b16 %v1530
    %v1834 = vunpack.c.l.b16 %v1531
    %v1835 = vunpack.c.h.b16 %v1531
    %v1836 = vunpack.c.l.b16 %v1532
    %v1837 = vunpack.c.h.b16 %v1532
    %v1838 = vunpack.c.l.b16 %v1533
    %v1839 = vunpack.c.h.b16 %v1533
    %v1840 = vunpack.c.l.b16 %v1534
    %v1841 = vunpack.c.h.b16 %v1534
    %v1842 = vunpack.c.l.b16 %v1535
    %v1843 = vunpack.c.h.b16 %v1535
    %v1844 = vunpack.c.l.b16 %v1536
    %v1845 = vunpack.c.h.b16 %v1536
    %v1846 = vunpack.c.l.b16 %v1537
    %v1847 = vunpack.c.h.b16 %v1537
    %v1848 = vunpack.c.l.b16 %v1538
    %v1849 = vunpack.c.h.b16 %v1538
    %v1850 = vunpack.c.l.b16 %v1539
    %v1851 = vunpack.c.h.b16 %v1539
    %v1852 = vunpack.c.l.b16 %v1540
    %v1853 = vunpack.c.h.b16 %v1540
    %v1854 = vunpack.c.l.b16 %v1541
    %v1855 = vunpack.c.h.b16 %v1541
    %v1856 = vunpack.c.l.b16 %v1542
    %v1857 = vunpack.c.h.b16 %v1542
    %v1858 = vunpack.c.l.b16 %v1543
    %v1859 = vunpack.c.h.b16 %v1543
    %v1860 = vunpack.c.l.b16 %v1544
    %v1861 = vunpack.c.h.b16 %v1544
    %v1862 = vunpack.c.l.b16 %v1545
    %v1863 = vunpack.c.h.b16 %v1545
    %v1864 = vunpack.c.l.b16 %v1546
    %v1865 = vunpack.c.h.b16 %v1546
    %v1866 = vunpack.c.l.b16 %v1547
    %v1867 = vunpack.c.h.b16 %v1547
    %v1868 = vunpack.c.l.b16 %v1548
    %v1869 = vunpack.c.h.b16 %v1548
    %v1870 = vunpack.c.l.b16 %v1549
    %v1871 = vunpack.c.h.b16 %v1549
    %v1872 = vunpack.c.l.b16 %v1550
    %v1873 = vunpack.c.h.b16 %v1550
    %v1874 = vunpack.c.l.b16 %v1551
    %v1875 = vunpack.c.h.b16 %v1551
    %v1876 = vunpack.c.l.b16 %v1552
    %v1877 = vunpack.c.h.b16 %v1552
    %v1878 = vunpack.c.l.b16 %v1553
    %v1879 = vunpack.c.h.b16 %v1553
    %v1880 = vunpack.c.l.b16 %v1554
    %v1881 = vunpack.c.h.b16 %v1554
    %v1882 = vunpack.c.l.b16 %v1555
    %v1883 = vunpack.c.h.b16 %v1555
    %v1884 = vunpack.c.l.b16 %v1556
    %v1885 = vunpack.c.h.b16 %v1556
    %v1886 = vunpack.c.l.b16 %v1557
    %v1887 = vunpack.c.h.b16 %v1557
    %v1888 = vunpack.c.l.b16 %v1558
    %v1889 = vunpack.c.h.b16 %v1558
    %v1890 = vunpack.c.l.b16 %v1559
    %v1891 = vunpack.c.h.b16 %v1559
    %v1892 = vunpack.c.l.b16 %v1560
    %v1893 = vunpack.c.h.b16 %v1560
    %v1894 = vunpack.c.l.b16 %v1561
    %v1895 = vunpack.c.h.b16 %v1561
    %v1896 = vunpack.c.l.b16 %v1562
    %v1897 = vunpack.c.h.b16 %v1562
    %v1898 = vunpack.c.l.b16 %v1563
    %v1899 = vunpack.c.h.b16 %v1563
    %v1900 = vunpack.c.l.b16 %v1564
    %v1901 = vunpack.c.h.b16 %v1564
    %v1902 = vunpack.c.l.b16 %v1565
    %v1903 = vunpack.c.h.b16 %v1565
    %v1904 = vunpack.c.l.b16 %v1566
    %v1905 = vunpack.c.h.b16 %v1566
    %v1906 = vunpack.c.l.b16 %v1567
    %v1907 = vunpack.c.h.b16 %v1567
    %v1908 = vunpack.c.l.b16 %v1568
    %v1909 = vunpack.c.h.b16 %v1568
    %v1910 = vunpack.c.l.b16 %v1569
    %v1911 = vunpack.c.h.b16 %v1569
    %v1912 = vunpack.c.l.b16 %v1570
    %v1913 = vunpack.c.h.b16 %v1570
    %v1914 = vunpack.c.l.b16 %v1571
    %v1915 = vunpack.c.h.b16 %v1571
    %v1916 = vunpack.c.l.b16 %v1572
    %v1917 = vunpack.c.h.b16 %v1572
    %v1918 = vunpack.c.l.b16 %v1573
    %v1919 = vunpack.c.h.b16 %v1573
    %v1920 = vunpack.c.l.b16 %v1574
    %v1921 = vunpack.c.h.b16 %v1574
    %v1922 = vunpack.c.l.b16 %v1575
    %v1923 = vunpack.c.h.b16 %v1575
    %v1924 = vunpack.c.l.b16 %v1576
    %v1925 = vunpack.c.h.b16 %v1576
    %v1926 = vunpack.c.l.b16 %v1577
    %v1927 = vunpack.c.h.b16 %v1577
    %v1928 = vunpack.c.l.b16 %v1578
    %v1929 = vunpack.c.h.b16 %v1578
    %v1930 = vunpack.c.l.b16 %v1579
    %v1931 = vunpack.c.h.b16 %v1579
    %v1932 = vunpack.c.l.b16 %v1580
    %v1933 = vunpack.c.h.b16 %v1580
    %v1934 = vunpack.c.l.b16 %v1581
    %v1935 = vunpack.c.h.b16 %v1581
    %v1936 = vunpack.c.l.b16 %v1582
    %v1937 = vunpack.c.h.b16 %v1582
    %v1938 = vunpack.c.l.b16 %v1583
    %v1939 = vunpack.c.h.b16 %v1583
    %v1940 = vunpack.c.l.b16 %v1584
    %v1941 = vunpack.c.h.b16 %v1584
    %v1942 = vunpack.c.l.b16 %v1585
    %v1943 = vunpack.c.h.b16 %v1585
    %v1944 = vunpack.c.l.b16 %v1586
    %v1945 = vunpack.c.h.b16 %v1586
    %v1946 = vunpack.c.l.b16 %v1587
    %v1947 = vunpack.c.h.b16 %v1587
    %v1948 = vunpack.c.l.b16 %v1588
    %v1949 = vunpack.c.h.b16 %v1588
    %v1950 = vunpack.c.l.b16 %v1589
    %v1951 = vunpack.c.h.b16 %v1589
    %v1952 = vunpack.c.l.b16 %v1590
    %v1953 = vunpack.c.h.b16 %v1590
    %v1954 = vunpack.c.l.b16 %v1591
    %v1955 = vunpack.c.h.b16 %v1591
    %v1956 = vunpack.c.l.b16 %v1592
    %v1957 = vunpack.c.h.b16 %v1592
    %v1958 = vunpack.c.l.b16 %v1593
    %v1959 = vunpack.c.h.b16 %v1593
    %v1960 = vunpack.c.l.b16 %v1594
    %v1961 = vunpack.c.h.b16 %v1594
    %v1962 = vunpack.c.l.b16 %v1595
    %v1963 = vunpack.c.h.b16 %v1595
    %v1964 = vunpack.c.l.b16 %v1596
    %v1965 = vunpack.c.h.b16 %v1596
    %v1966 = vunpack.c.l.b16 %v1597
    %v1967 = vunpack.c.h.b16 %v1597
    %v1968 = vunpack.c.l.b16 %v1598
    %v1969 = vunpack.c.h.b16 %v1598
    %v1970 = vunpack.c.l.b16 %v1599
    %v1971 = vunpack.c.h.b16 %v1599
    %v1972 = vunpack.c.l.b16 %v1600
    %v1973 = vunpack.c.h.b16 %v1600
    %v1974 = vunpack.c.l.b16 %v1601
    %v1975 = vunpack.c.h.b16 %v1601
    %v1976 = vunpack.c.l.b16 %v1602
    %v1977 = vunpack.c.h.b16 %v1602
    %v1978 = vunpack.c.l.b16 %v1603
    %v1979 = vunpack.c.h.b16 %v1603
    %v1980 = vunpack.c.l.b16 %v1604
    %v1981 = vunpack.c.h.b16 %v1604
    %v1982 = vunpack.c.l.b16 %v1605
    %v1983 = vunpack.c.h.b16 %v1605
    %v1984 = vunpack.c.l.b16 %v1606
    %v1985 = vunpack.c.h.b16 %v1606
    %v1986 = vunpack.c.l.b16 %v1607
    %v1987 = vunpack.c.h.b16 %v1607
    %v1988 = vunpack.c.l.b16 %v1608
    %v1989 = vunpack.c.h.b16 %v1608
    %v1990 = vunpack.c.l.b16 %v1609
    %v1991 = vunpack.c.h.b16 %v1609
    %v1992 = vunpack.c.l.b16 %v1610
    %v1993 = vunpack.c.h.b16 %v1610
    %v1994 = vunpack.c.l.b16 %v1611
    %v1995 = vunpack.c.h.b16 %v1611
    %v1996 = vpack.c.b16 %v1744, %v1740
    %v1997 = vpack.c.b16 %v1745, %v1741
    %v1998 = vpack.c.b16 %v1746, %v1742
    %v1999 = vpack.c.b16 %v1747, %v1743
    %v2000 = vpack.c.b16 %v1752, %v1748
    %v2001 = vpack.c.b16 %v1753, %v1749
    %v2002 = vpack.c.b16 %v1754, %v1750
    %v2003 = vpack.c.b16 %v1755, %v1751
    %v2004 = vpack.c.b16 %v1760, %v1756
    %v2005 = vpack.c.b16 %v1761, %v1757
    %v2006 = vpack.c.b16 %v1762, %v1758
    %v2007 = vpack.c.b16 %v1763, %v1759
    %v2008 = vpack.c.b16 %v1768, %v1764
    %v2009 = vpack.c.b16 %v1769, %v1765
    %v2010 = vpack.c.b16 %v1770, %v1766
    %v2011 = vpack.c.b16 %v1771, %v1767
    %v2012 = vpack.c.b16 %v1776, %v1772
    %v2013 = vpack.c.b16 %v1777, %v1773
    %v2014 = vpack.c.b16 %v1778, %v1774
    %v2015 = vpack.c.b16 %v1779, %v1775
    %v2016 = vpack.c.b16 %v1784, %v1780
    %v2017 = vpack.c.b16 %v1785, %v1781
    %v2018 = vpack.c.b16 %v1786, %v1782
    %v2019 = vpack.c.b16 %v1787, %v1783
    %v2020 = vpack.c.b16 %v1792, %v1788
    %v2021 = vpack.c.b16 %v1793, %v1789
    %v2022 = vpack.c.b16 %v1794, %v1790
    %v2023 = vpack.c.b16 %v1795, %v1791
    %v2024 = vpack.c.b16 %v1800, %v1796
    %v2025 = vpack.c.b16 %v1801, %v1797
    %v2026 = vpack.c.b16 %v1802, %v1798
    %v2027 = vpack.c.b16 %v1803, %v1799
    %v2028 = vpack.c.b16 %v1808, %v1804
    %v2029 = vpack.c.b16 %v1809, %v1805
    %v2030 = vpack.c.b16 %v1810, %v1806
    %v2031 = vpack.c.b16 %v1811, %v1807
    %v2032 = vpack.c.b16 %v1816, %v1812
    %v2033 = vpack.c.b16 %v1817, %v1813
    %v2034 = vpack.c.b16 %v1818, %v1814
    %v2035 = vpack.c.b16 %v1819, %v1815
    %v2036 = vpack.c.b16 %v1824, %v1820
    %v2037 = vpack.c.b16 %v1825, %v1821
    %v2038 = vpack.c.b16 %v1826, %v1822
    %v2039 = vpack.c.b16 %v1827, %v1823
    %v2040 = vpack.c.b16 %v1832, %v1828
    %v2041 = vpack.c.b16 %v1833, %v1829
    %v2042 = vpack.c.b16 %v1834, %v1830
    %v2043 = vpack.c.b16 %v1835, %v1831
    %v2044 = vpack.c.b16 %v1840, %v1836
    %v2045 = vpack.c.b16 %v1841, %v1837
    %v2046 = vpack.c.b16 %v1842, %v1838
    %v2047 = vpack.c.b16 %v1843, %v1839
    %v2048 = vpack.c.b16 %v1848, %v1844
    %v2049 = vpack.c.b16 %v1849, %v1845
    %v2050 = vpack.c.b16 %v1850, %v1846
    %v2051 = vpack.c.b16 %v1851, %v1847
    %v2052 = vpack.c.b16 %v1856, %v1852
    %v2053 = vpack.c.b16 %v1857, %v1853
    %v2054 = vpack.c.b16 %v1858, %v1854
    %v2055 = vpack.c.b16 %v1859, %v1855
    %v2056 = vpack.c.b16 %v1864, %v1860
    %v2057 = vpack.c.b16 %v1865, %v1861
    %v2058 = vpack.c.b16 %v1866, %v1862
    %v2059 = vpack.c.b16 %v1867, %v1863
    %v2060 = vpack.c.b16 %v1872, %v1868
    %v2061 = vpack.c.b16 %v1873, %v1869
    %v2062 = vpack.c.b16 %v1874, %v1870
    %v2063 = vpack.c.b16 %v1875, %v1871
    %v2064 = vpack.c.b16 %v1880, %v1876
    %v2065 = vpack.c.b16 %v1881, %v1877
    %v2066 = vpack.c.b16 %v1882, %v1878
    %v2067 = vpack.c.b16 %v1883, %v1879
    %v2068 = vpack.c.b16 %v1888, %v1884
    %v2069 = vpack.c.b16 %v1889, %v1885
    %v2070 = vpack.c.b16 %v1890, %v1886
    %v2071 = vpack.c.b16 %v1891, %v1887
    %v2072 = vpack.c.b16 %v1896, %v1892
    %v2073 = vpack.c.b16 %v1897, %v1893
    %v2074 = vpack.c.b16 %v1898, %v1894
    %v2075 = vpack.c.b16 %v1899, %v1895
    %v2076 = vpack.c.b16 %v1904, %v1900
    %v2077 = vpack.c.b16 %v1905, %v1901
    %v2078 = vpack.c.b16 %v1906, %v1902
    %v2079 = vpack.c.b16 %v1907, %v1903
    %v2080 = vpack.c.b16 %v1912, %v1908
    %v2081 = vpack.c.b16 %v1913, %v1909
    %v2082 = vpack.c.b16 %v1914, %v1910
    %v2083 = vpack.c.b16 %v1915, %v1911
    %v2084 = vpack.c.b16 %v1920, %v1916
    %v2085 = vpack.c.b16 %v1921, %v1917
    %v2086 = vpack.c.b16 %v1922, %v1918
    %v2087 = vpack.c.b16 %v1923, %v1919
    %v2088 = vpack.c.b16 %v1928, %v1924
    %v2089 = vpack.c.b16 %v1929, %v1925
    %v2090 = vpack.c.b16 %v1930, %v1926
    %v2091 = vpack.c.b16 %v1931, %v1927
    %v2092 = vpack.c.b16 %v1936, %v1932
    %v2093 = vpack.c.b16 %v1937, %v1933
    %v2094 = vpack.c.b16 %v1938, %v1934
    %v2095 = vpack.c.b16 %v1939, %v1935
    %v2096 = vpack.c.b16 %v1944, %v1940
    %v2097 = vpack.c.b16 %v1945, %v1941
    %v2098 = vpack.c.b16 %v1946, %v1942
    %v2099 = vpack.c.b16 %v1947, %v1943
    %v2100 = vpack.c.b16 %v1952, %v1948
    %v2101 = vpack.c.b16 %v1953, %v1949
    %v2102 = vpack.c.b16 %v1954, %v1950
    %v2103 = vpack.c.b16 %v1955, %v1951
    %v2104 = vpack.c.b16 %v1960, %v1956
    %v2105 = vpack.c.b16 %v1961, %v1957
    %v2106 = vpack.c.b16 %v1962, %v1958
    %v2107 = vpack.c.b16 %v1963, %v1959
    %v2108 = vpack.c.b16 %v1968, %v1964
    %v2109 = vpack.c.b16 %v1969, %v1965
    %v2110 = vpack.c.b16 %v1970, %v1966
    %v2111 = vpack.c.b16 %v1971, %v1967
    %v2112 = vpack.c.b16 %v1976, %v1972
    %v2113 = vpack.c.b16 %v1977, %v1973
    %v2114 = vpack.c.b16 %v1978, %v1974
    %v2115 = vpack.c.b16 %v1979, %v1975
    %v2116 = vpack.c.b16 %v1984, %v1980
    %v2117 = vpack.c.b16 %v1985, %v1981
    %v2118 = vpack.c.b16 %v1986, %v1982
    %v2119 = vpack.c.b16 %v1987, %v1983
    %v2120 = vpack.c.b16 %v1992, %v1988
    %v2121 = vpack.c.b16 %v1993, %v1989
    %v2122 = vpack.c.b16 %v1994, %v1990
    %v2123 = vpack.c.b16 %v1995, %v1991
    %2252 = vmatprep.subr.bf16.mxu0 %v1997
    %2253 = vmatpush1.bf16.msra.mxu0 %v1996
    %2254 = vmatprep.subr.bf16.mxu0 %v2001
    %2255 = vmatpush1.bf16.msra.mxu0 %v2000
    %2256 = vmatprep.subr.bf16.mxu0 %v2005
    %2257 = vmatpush1.bf16.msra.mxu0 %v2004
    %2258 = vmatprep.subr.bf16.mxu0 %v2009
    %2259 = vmatpush1.bf16.msra.mxu0 %v2008
    %2260 = vmatprep.subr.bf16.mxu0 %v2013
    %2261 = vmatpush1.bf16.msra.mxu0 %v2012
    %2262 = vmatprep.subr.bf16.mxu0 %v2017
    %2263 = vmatpush1.bf16.msra.mxu0 %v2016
    %2264 = vmatprep.subr.bf16.mxu0 %v2021
    %2265 = vmatpush1.bf16.msra.mxu0 %v2020
    %2266 = vmatprep.subr.bf16.mxu0 %v2025
    %2267 = vmatpush1.bf16.msra.mxu0 %v2024
    %2268 = vmatprep.subr.bf16.mxu0 %v2029
    %2269 = vmatpush1.bf16.msra.mxu0 %v2028
    %2270 = vmatprep.subr.bf16.mxu0 %v2033
    %2271 = vmatpush1.bf16.msra.mxu0 %v2032
    %2272 = vmatprep.subr.bf16.mxu0 %v2037
    %2273 = vmatpush1.bf16.msra.mxu0 %v2036
    %2274 = vmatprep.subr.bf16.mxu0 %v2041
    %2275 = vmatpush1.bf16.msra.mxu0 %v2040
    %2276 = vmatprep.subr.bf16.mxu0 %v2045
    %2277 = vmatpush1.bf16.msra.mxu0 %v2044
    %2278 = vmatprep.subr.bf16.mxu0 %v2049
    %2279 = vmatpush1.bf16.msra.mxu0 %v2048
    %2280 = vmatprep.subr.bf16.mxu0 %v2053
    %2281 = vmatpush1.bf16.msra.mxu0 %v2052
    %2282 = vmatprep.subr.bf16.mxu0 %v2057
    %2283 = vmatpush1.bf16.msra.mxu0 %v2056
    %2284 = vmatprep.mubr.bf16.mxu0 %v1481
    %2285 = vmatmul.mubr.bf16.gmra.mrb[0].mxu0 %v1480
    %v2286 = vpop.f32.mrb[0].mxu0
    %v2287 = vadd.f32 0.0, %v2286
    %v2288 = vpop.f32.mrb[0].mxu0
    %v2289 = vadd.f32 0.0, %v2288
    %v2290 = vpop.f32.mrb[0].mxu0
    %v2291 = vadd.f32 0.0, %v2290
    %v2292 = vpop.f32.mrb[0].mxu0
    %v2293 = vadd.f32 0.0, %v2292
    %2294 = vdwg.mxu0
    %2295 = vmatprep.subr.bf16.mxu0 %v2061
    %2296 = vmatpush1.bf16.msra.mxu0 %v2060
    %2297 = vmatprep.subr.bf16.mxu0 %v2065
    %2298 = vmatpush1.bf16.msra.mxu0 %v2064
    %2299 = vmatprep.subr.bf16.mxu0 %v2069
    %2300 = vmatpush1.bf16.msra.mxu0 %v2068
    %2301 = vmatprep.subr.bf16.mxu0 %v2073
    %2302 = vmatpush1.bf16.msra.mxu0 %v2072
    %2303 = vmatprep.subr.bf16.mxu0 %v2077
    %2304 = vmatpush1.bf16.msra.mxu0 %v2076
    %2305 = vmatprep.subr.bf16.mxu0 %v2081
    %2306 = vmatpush1.bf16.msra.mxu0 %v2080
    %2307 = vmatprep.subr.bf16.mxu0 %v2085
    %2308 = vmatpush1.bf16.msra.mxu0 %v2084
    %2309 = vmatprep.subr.bf16.mxu0 %v2089
    %2310 = vmatpush1.bf16.msra.mxu0 %v2088
    %2311 = vmatprep.subr.bf16.mxu0 %v2093
    %2312 = vmatpush1.bf16.msra.mxu0 %v2092
    %2313 = vmatprep.subr.bf16.mxu0 %v2097
    %2314 = vmatpush1.bf16.msra.mxu0 %v2096
    %2315 = vmatprep.subr.bf16.mxu0 %v2101
    %2316 = vmatpush1.bf16.msra.mxu0 %v2100
    %2317 = vmatprep.subr.bf16.mxu0 %v2105
    %2318 = vmatpush1.bf16.msra.mxu0 %v2104
    %2319 = vmatprep.subr.bf16.mxu0 %v2109
    %2320 = vmatpush1.bf16.msra.mxu0 %v2108
    %2321 = vmatprep.subr.bf16.mxu0 %v2113
    %2322 = vmatpush1.bf16.msra.mxu0 %v2112
    %2323 = vmatprep.subr.bf16.mxu0 %v2117
    %2324 = vmatpush1.bf16.msra.mxu0 %v2116
    %2325 = vmatprep.subr.bf16.mxu0 %v2121
    %2326 = vmatpush1.bf16.msra.mxu0 %v2120
    %2327 = vmatprep.mubr.bf16.mxu0 %v1483
    %2328 = vmatmul.mubr.bf16.gmra.mrb[0].mxu0 %v1482
    %v2329 = vpop.f32.mrb[0].mxu0
    %v2330 = vadd.f32 %v2287, %v2329
    %v2331 = vpop.f32.mrb[0].mxu0
    %v2332 = vadd.f32 %v2289, %v2331
    %v2333 = vpop.f32.mrb[0].mxu0
    %v2334 = vadd.f32 %v2291, %v2333
    %v2335 = vpop.f32.mrb[0].mxu0
    %v2336 = vadd.f32 %v2293, %v2335
    %2337 = vdwg.mxu0
    %2338 = vmatprep.subr.bf16.mxu0 %v1999
    %2339 = vmatpush1.bf16.msra.mxu0 %v1998
    %2340 = vmatprep.subr.bf16.mxu0 %v2003
    %2341 = vmatpush1.bf16.msra.mxu0 %v2002
    %2342 = vmatprep.subr.bf16.mxu0 %v2007
    %2343 = vmatpush1.bf16.msra.mxu0 %v2006
    %2344 = vmatprep.subr.bf16.mxu0 %v2011
    %2345 = vmatpush1.bf16.msra.mxu0 %v2010
    %2346 = vmatprep.subr.bf16.mxu0 %v2015
    %2347 = vmatpush1.bf16.msra.mxu0 %v2014
    %2348 = vmatprep.subr.bf16.mxu0 %v2019
    %2349 = vmatpush1.bf16.msra.mxu0 %v2018
    %2350 = vmatprep.subr.bf16.mxu0 %v2023
    %2351 = vmatpush1.bf16.msra.mxu0 %v2022
    %2352 = vmatprep.subr.bf16.mxu0 %v2027
    %2353 = vmatpush1.bf16.msra.mxu0 %v2026
    %2354 = vmatprep.subr.bf16.mxu0 %v2031
    %2355 = vmatpush1.bf16.msra.mxu0 %v2030
    %2356 = vmatprep.subr.bf16.mxu0 %v2035
    %2357 = vmatpush1.bf16.msra.mxu0 %v2034
    %2358 = vmatprep.subr.bf16.mxu0 %v2039
    %2359 = vmatpush1.bf16.msra.mxu0 %v2038
    %2360 = vmatprep.subr.bf16.mxu0 %v2043
    %2361 = vmatpush1.bf16.msra.mxu0 %v2042
    %2362 = vmatprep.subr.bf16.mxu0 %v2047
    %2363 = vmatpush1.bf16.msra.mxu0 %v2046
    %2364 = vmatprep.subr.bf16.mxu0 %v2051
    %2365 = vmatpush1.bf16.msra.mxu0 %v2050
    %2366 = vmatprep.subr.bf16.mxu0 %v2055
    %2367 = vmatpush1.bf16.msra.mxu0 %v2054
    %2368 = vmatprep.subr.bf16.mxu0 %v2059
    %2369 = vmatpush1.bf16.msra.mxu0 %v2058
    %2370 = vmatprep.mubr.bf16.mxu0 %v1481
    %2371 = vmatmul.mubr.bf16.gmra.mrb[0].mxu0 %v1480
    %v2372 = vpop.f32.mrb[0].mxu0
    %v2373 = vadd.f32 0.0, %v2372
    %v2374 = vpop.f32.mrb[0].mxu0
    %v2375 = vadd.f32 0.0, %v2374
    %v2376 = vpop.f32.mrb[0].mxu0
    %v2377 = vadd.f32 0.0, %v2376
    %v2378 = vpop.f32.mrb[0].mxu0
    %v2379 = vadd.f32 0.0, %v2378
    %2380 = vdwg.mxu0
    %2381 = vmatprep.subr.bf16.mxu0 %v2063
    %2382 = vmatpush1.bf16.msra.mxu0 %v2062
    %2383 = vmatprep.subr.bf16.mxu0 %v2067
    %2384 = vmatpush1.bf16.msra.mxu0 %v2066
    %2385 = vmatprep.subr.bf16.mxu0 %v2071
    %2386 = vmatpush1.bf16.msra.mxu0 %v2070
    %2387 = vmatprep.subr.bf16.mxu0 %v2075
    %2388 = vmatpush1.bf16.msra.mxu0 %v2074
    %2389 = vmatprep.subr.bf16.mxu0 %v2079
    %2390 = vmatpush1.bf16.msra.mxu0 %v2078
    %2391 = vmatprep.subr.bf16.mxu0 %v2083
    %2392 = vmatpush1.bf16.msra.mxu0 %v2082
    %2393 = vmatprep.subr.bf16.mxu0 %v2087
    %2394 = vmatpush1.bf16.msra.mxu0 %v2086
    %2395 = vmatprep.subr.bf16.mxu0 %v2091
    %2396 = vmatpush1.bf16.msra.mxu0 %v2090
    %2397 = vmatprep.subr.bf16.mxu0 %v2095
    %2398 = vmatpush1.bf16.msra.mxu0 %v2094
    %2399 = vmatprep.subr.bf16.mxu0 %v2099
    %2400 = vmatpush1.bf16.msra.mxu0 %v2098
    %2401 = vmatprep.subr.bf16.mxu0 %v2103
    %2402 = vmatpush1.bf16.msra.mxu0 %v2102
    %2403 = vmatprep.subr.bf16.mxu0 %v2107
    %2404 = vmatpush1.bf16.msra.mxu0 %v2106
    %2405 = vmatprep.subr.bf16.mxu0 %v2111
    %2406 = vmatpush1.bf16.msra.mxu0 %v2110
    %2407 = vmatprep.subr.bf16.mxu0 %v2115
    %2408 = vmatpush1.bf16.msra.mxu0 %v2114
    %2409 = vmatprep.subr.bf16.mxu0 %v2119
    %2410 = vmatpush1.bf16.msra.mxu0 %v2118
    %2411 = vmatprep.subr.bf16.mxu0 %v2123
    %2412 = vmatpush1.bf16.msra.mxu0 %v2122
    %2413 = vmatprep.mubr.bf16.mxu0 %v1483
    %2414 = vmatmul.mubr.bf16.gmra.mrb[0].mxu0 %v1482
    %v2415 = vpop.f32.mrb[0].mxu0
    %v2416 = vadd.f32 %v2373, %v2415
    %v2417 = vpop.f32.mrb[0].mxu0
    %v2418 = vadd.f32 %v2375, %v2417
    %v2419 = vpop.f32.mrb[0].mxu0
    %v2420 = vadd.f32 %v2377, %v2419
    %v2421 = vpop.f32.mrb[0].mxu0
    %v2422 = vadd.f32 %v2379, %v2421
    %2423 = vdwg.mxu0
    %v2424 = vld [vmem:[%s8] sm:$0xf]
    %v2426 = vlaneseq
    %v2427 = vshrl.u32 %v2426, 7
    %v2428 = vsub.s32 0, %v2427
    %v2429 = vrot.slane %v2424, %v2428
    %v2430 = vlaneseq
    %v2431 = vshrl.u32 %v2430, 7
    %v2432 = vsub.s32 1, %v2431
    %v2433 = vrot.slane %v2424, %v2432
    %v2434 = vlaneseq
    %v2435 = vshrl.u32 %v2434, 7
    %v2436 = vsub.s32 2, %v2435
    %v2437 = vrot.slane %v2424, %v2436
    %v2438 = vlaneseq
    %v2439 = vshrl.u32 %v2438, 7
    %v2440 = vsub.s32 3, %v2439
    %v2441 = vrot.slane %v2424, %v2440
    %v2446 = vmul.f32 %v2330, %v2429
    %v2447 = vmul.f32 %v2332, %v2433
    %v2448 = vmul.f32 %v2416, %v2437
    %v2449 = vmul.f32 %v2418, %v2441
    %v2450 = vmul.f32 %v2334, %v2429
    %v2451 = vmul.f32 %v2336, %v2433
    %v2452 = vmul.f32 %v2420, %v2437
    %v2453 = vmul.f32 %v2422, %v2441
    %v2454 = vld [vmem:[%s9] sm:$0xf]
    %v2456 = vlaneseq
    %v2457 = vshrl.u32 %v2456, 7
    %v2458 = vsub.s32 0, %v2457
    %v2459 = vrot.slane %v2454, %v2458
    %v2460 = vlaneseq
    %v2461 = vshrl.u32 %v2460, 7
    %v2462 = vsub.s32 1, %v2461
    %v2463 = vrot.slane %v2454, %v2462
    %v2464 = vlaneseq
    %v2465 = vshrl.u32 %v2464, 7
    %v2466 = vsub.s32 2, %v2465
    %v2467 = vrot.slane %v2454, %v2466
    %v2468 = vlaneseq
    %v2469 = vshrl.u32 %v2468, 7
    %v2470 = vsub.s32 3, %v2469
    %v2471 = vrot.slane %v2454, %v2470
    %v2476 = vadd.f32 %v2446, %v2459
    %v2477 = vadd.f32 %v2447, %v2463
    %v2478 = vadd.f32 %v2448, %v2467
    %v2479 = vadd.f32 %v2449, %v2471
    %v2480 = vadd.f32 %v2450, %v2459
    %v2481 = vadd.f32 %v2451, %v2463
    %v2482 = vadd.f32 %v2452, %v2467
    %v2483 = vadd.f32 %v2453, %v2471
    %v2484 = vmax.f32 %v2476, 0.0
    %v2485 = vmax.f32 %v2477, 0.0
    %v2486 = vmax.f32 %v2478, 0.0
    %v2487 = vmax.f32 %v2479, 0.0
    %v2488 = vmax.f32 %v2480, 0.0
    %v2489 = vmax.f32 %v2481, 0.0
    %v2490 = vmax.f32 %v2482, 0.0
    %v2491 = vmax.f32 %v2483, 0.0
    %v2492 = vpack.c.bf16 %v2488, %v2484
    %v2493 = vpack.c.bf16 %v2489, %v2485
    %v2494 = vpack.c.bf16 %v2490, %v2486
    %v2495 = vpack.c.bf16 %v2491, %v2487
    %v2496 = vld [vmem:[#allocation10] sm:$0xf]
    %v2497 = vld [vmem:[#allocation10 + $0x4] sm:$0xf]
    %v2498 = vld [vmem:[#allocation10 + $0x8] sm:$0xf]
    %v2499 = vld [vmem:[#allocation10 + $0xc] sm:$0xf]
    %v2500 = vld [vmem:[#allocation10 + $0x10] sm:$0xf]
    %v2501 = vld [vmem:[#allocation10 + $0x14] sm:$0xf]
    %v2502 = vld [vmem:[#allocation10 + $0x18] sm:$0xf]
    %v2503 = vld [vmem:[#allocation10 + $0x1c] sm:$0xf]
    %v2504 = vld [vmem:[#allocation10 + $0x20] sm:$0xf]
    %v2505 = vld [vmem:[#allocation10 + $0x24] sm:$0xf]
    %v2506 = vld [vmem:[#allocation10 + $0x28] sm:$0xf]
    %v2507 = vld [vmem:[#allocation10 + $0x2c] sm:$0xf]
    %v2508 = vld [vmem:[#allocation10 + $0x30] sm:$0xf]
    %v2509 = vld [vmem:[#allocation10 + $0x34] sm:$0xf]
    %v2510 = vld [vmem:[#allocation10 + $0x38] sm:$0xf]
    %v2511 = vld [vmem:[#allocation10 + $0x3c] sm:$0xf]
    %v2512 = vld [vmem:[#allocation10 + $0x40] sm:$0xf]
    %v2513 = vld [vmem:[#allocation10 + $0x44] sm:$0xf]
    %v2514 = vld [vmem:[#allocation10 + $0x48] sm:$0xf]
    %v2515 = vld [vmem:[#allocation10 + $0x4c] sm:$0xf]
    %v2516 = vld [vmem:[#allocation10 + $0x50] sm:$0xf]
    %v2517 = vld [vmem:[#allocation10 + $0x54] sm:$0xf]
    %v2518 = vld [vmem:[#allocation10 + $0x58] sm:$0xf]
    %v2519 = vld [vmem:[#allocation10 + $0x5c] sm:$0xf]
    %v2520 = vld [vmem:[#allocation10 + $0x60] sm:$0xf]
    %v2521 = vld [vmem:[#allocation10 + $0x64] sm:$0xf]
    %v2522 = vld [vmem:[#allocation10 + $0x68] sm:$0xf]
    %v2523 = vld [vmem:[#allocation10 + $0x6c] sm:$0xf]
    %v2524 = vld [vmem:[#allocation10 + $0x70] sm:$0xf]
    %v2525 = vld [vmem:[#allocation10 + $0x74] sm:$0xf]
    %v2526 = vld [vmem:[#allocation10 + $0x78] sm:$0xf]
    %v2527 = vld [vmem:[#allocation10 + $0x7c] sm:$0xf]
    %v2528 = vld [vmem:[#allocation10 + $0x80] sm:$0xf]
    %v2529 = vld [vmem:[#allocation10 + $0x84] sm:$0xf]
    %v2530 = vld [vmem:[#allocation10 + $0x88] sm:$0xf]
    %v2531 = vld [vmem:[#allocation10 + $0x8c] sm:$0xf]
    %v2532 = vld [vmem:[#allocation10 + $0x90] sm:$0xf]
    %v2533 = vld [vmem:[#allocation10 + $0x94] sm:$0xf]
    %v2534 = vld [vmem:[#allocation10 + $0x98] sm:$0xf]
    %v2535 = vld [vmem:[#allocation10 + $0x9c] sm:$0xf]
    %v2536 = vld [vmem:[#allocation10 + $0xa0] sm:$0xf]
    %v2537 = vld [vmem:[#allocation10 + $0xa4] sm:$0xf]
    %v2538 = vld [vmem:[#allocation10 + $0xa8] sm:$0xf]
    %v2539 = vld [vmem:[#allocation10 + $0xac] sm:$0xf]
    %v2540 = vld [vmem:[#allocation10 + $0xb0] sm:$0xf]
    %v2541 = vld [vmem:[#allocation10 + $0xb4] sm:$0xf]
    %v2542 = vld [vmem:[#allocation10 + $0xb8] sm:$0xf]
    %v2543 = vld [vmem:[#allocation10 + $0xbc] sm:$0xf]
    %v2544 = vld [vmem:[#allocation10 + $0xc0] sm:$0xf]
    %v2545 = vld [vmem:[#allocation10 + $0xc4] sm:$0xf]
    %v2546 = vld [vmem:[#allocation10 + $0xc8] sm:$0xf]
    %v2547 = vld [vmem:[#allocation10 + $0xcc] sm:$0xf]
    %v2548 = vld [vmem:[#allocation10 + $0xd0] sm:$0xf]
    %v2549 = vld [vmem:[#allocation10 + $0xd4] sm:$0xf]
    %v2550 = vld [vmem:[#allocation10 + $0xd8] sm:$0xf]
    %v2551 = vld [vmem:[#allocation10 + $0xdc] sm:$0xf]
    %v2552 = vld [vmem:[#allocation10 + $0xe0] sm:$0xf]
    %v2553 = vld [vmem:[#allocation10 + $0xe4] sm:$0xf]
    %v2554 = vld [vmem:[#allocation10 + $0xe8] sm:$0xf]
    %v2555 = vld [vmem:[#allocation10 + $0xec] sm:$0xf]
    %v2556 = vld [vmem:[#allocation10 + $0xf0] sm:$0xf]
    %v2557 = vld [vmem:[#allocation10 + $0xf4] sm:$0xf]
    %v2558 = vld [vmem:[#allocation10 + $0xf8] sm:$0xf]
    %v2559 = vld [vmem:[#allocation10 + $0xfc] sm:$0xf]
    %v2624 = vunpack.c.l.b16 %v2496
    %v2625 = vunpack.c.l.b16 %v2497
    %v2626 = vunpack.c.l.b16 %v2498
    %v2627 = vunpack.c.l.b16 %v2499
    %v2628 = vunpack.c.l.b16 %v2500
    %v2629 = vunpack.c.l.b16 %v2501
    %v2630 = vunpack.c.l.b16 %v2502
    %v2631 = vunpack.c.l.b16 %v2503
    %v2632 = vunpack.c.l.b16 %v2504
    %v2633 = vunpack.c.l.b16 %v2505
    %v2634 = vunpack.c.l.b16 %v2506
    %v2635 = vunpack.c.l.b16 %v2507
    %v2636 = vunpack.c.l.b16 %v2508
    %v2637 = vunpack.c.l.b16 %v2509
    %v2638 = vunpack.c.l.b16 %v2510
    %v2639 = vunpack.c.l.b16 %v2511
    %v2640 = vunpack.c.l.b16 %v2512
    %v2641 = vunpack.c.l.b16 %v2513
    %v2642 = vunpack.c.l.b16 %v2514
    %v2643 = vunpack.c.l.b16 %v2515
    %v2644 = vunpack.c.l.b16 %v2516
    %v2645 = vunpack.c.l.b16 %v2517
    %v2646 = vunpack.c.l.b16 %v2518
    %v2647 = vunpack.c.l.b16 %v2519
    %v2648 = vunpack.c.l.b16 %v2520
    %v2649 = vunpack.c.l.b16 %v2521
    %v2650 = vunpack.c.l.b16 %v2522
    %v2651 = vunpack.c.l.b16 %v2523
    %v2652 = vunpack.c.l.b16 %v2524
    %v2653 = vunpack.c.l.b16 %v2525
    %v2654 = vunpack.c.l.b16 %v2526
    %v2655 = vunpack.c.l.b16 %v2527
    %v2656 = vunpack.c.l.b16 %v2528
    %v2657 = vunpack.c.l.b16 %v2529
    %v2658 = vunpack.c.l.b16 %v2530
    %v2659 = vunpack.c.l.b16 %v2531
    %v2660 = vunpack.c.l.b16 %v2532
    %v2661 = vunpack.c.l.b16 %v2533
    %v2662 = vunpack.c.l.b16 %v2534
    %v2663 = vunpack.c.l.b16 %v2535
    %v2664 = vunpack.c.l.b16 %v2536
    %v2665 = vunpack.c.l.b16 %v2537
    %v2666 = vunpack.c.l.b16 %v2538
    %v2667 = vunpack.c.l.b16 %v2539
    %v2668 = vunpack.c.l.b16 %v2540
    %v2669 = vunpack.c.l.b16 %v2541
    %v2670 = vunpack.c.l.b16 %v2542
    %v2671 = vunpack.c.l.b16 %v2543
    %v2672 = vunpack.c.l.b16 %v2544
    %v2673 = vunpack.c.l.b16 %v2545
    %v2674 = vunpack.c.l.b16 %v2546
    %v2675 = vunpack.c.l.b16 %v2547
    %v2676 = vunpack.c.l.b16 %v2548
    %v2677 = vunpack.c.l.b16 %v2549
    %v2678 = vunpack.c.l.b16 %v2550
    %v2679 = vunpack.c.l.b16 %v2551
    %v2680 = vunpack.c.l.b16 %v2552
    %v2681 = vunpack.c.l.b16 %v2553
    %v2682 = vunpack.c.l.b16 %v2554
    %v2683 = vunpack.c.l.b16 %v2555
    %v2684 = vunpack.c.l.b16 %v2556
    %v2685 = vunpack.c.l.b16 %v2557
    %v2686 = vunpack.c.l.b16 %v2558
    %v2687 = vunpack.c.l.b16 %v2559
    %v2688 = vpack.c.b16 %v2625, %v2624
    %v2689 = vpack.c.b16 %v2627, %v2626
    %v2690 = vpack.c.b16 %v2629, %v2628
    %v2691 = vpack.c.b16 %v2631, %v2630
    %v2692 = vpack.c.b16 %v2633, %v2632
    %v2693 = vpack.c.b16 %v2635, %v2634
    %v2694 = vpack.c.b16 %v2637, %v2636
    %v2695 = vpack.c.b16 %v2639, %v2638
    %v2696 = vpack.c.b16 %v2641, %v2640
    %v2697 = vpack.c.b16 %v2643, %v2642
    %v2698 = vpack.c.b16 %v2645, %v2644
    %v2699 = vpack.c.b16 %v2647, %v2646
    %v2700 = vpack.c.b16 %v2649, %v2648
    %v2701 = vpack.c.b16 %v2651, %v2650
    %v2702 = vpack.c.b16 %v2653, %v2652
    %v2703 = vpack.c.b16 %v2655, %v2654
    %v2704 = vpack.c.b16 %v2657, %v2656
    %v2705 = vpack.c.b16 %v2659, %v2658
    %v2706 = vpack.c.b16 %v2661, %v2660
    %v2707 = vpack.c.b16 %v2663, %v2662
    %v2708 = vpack.c.b16 %v2665, %v2664
    %v2709 = vpack.c.b16 %v2667, %v2666
    %v2710 = vpack.c.b16 %v2669, %v2668
    %v2711 = vpack.c.b16 %v2671, %v2670
    %v2712 = vpack.c.b16 %v2673, %v2672
    %v2713 = vpack.c.b16 %v2675, %v2674
    %v2714 = vpack.c.b16 %v2677, %v2676
    %v2715 = vpack.c.b16 %v2679, %v2678
    %v2716 = vpack.c.b16 %v2681, %v2680
    %v2717 = vpack.c.b16 %v2683, %v2682
    %v2718 = vpack.c.b16 %v2685, %v2684
    %v2719 = vpack.c.b16 %v2687, %v2686
    %2752 = vmatprep.subr.bf16.mxu0 0
    %2753 = vmatpush1.bf16.msra.mxu0 %v2688
    %2754 = vmatprep.subr.bf16.mxu0 0
    %2755 = vmatpush1.bf16.msra.mxu0 %v2689
    %2756 = vmatprep.subr.bf16.mxu0 0
    %2757 = vmatpush1.bf16.msra.mxu0 %v2690
    %2758 = vmatprep.subr.bf16.mxu0 0
    %2759 = vmatpush1.bf16.msra.mxu0 %v2691
    %2760 = vmatprep.subr.bf16.mxu0 0
    %2761 = vmatpush1.bf16.msra.mxu0 %v2692
    %2762 = vmatprep.subr.bf16.mxu0 0
    %2763 = vmatpush1.bf16.msra.mxu0 %v2693
    %2764 = vmatprep.subr.bf16.mxu0 0
    %2765 = vmatpush1.bf16.msra.mxu0 %v2694
    %2766 = vmatprep.subr.bf16.mxu0 0
    %2767 = vmatpush1.bf16.msra.mxu0 %v2695
    %2768 = vmatprep.subr.bf16.mxu0 0
    %2769 = vmatpush1.bf16.msra.mxu0 %v2696
    %2770 = vmatprep.subr.bf16.mxu0 0
    %2771 = vmatpush1.bf16.msra.mxu0 %v2697
    %2772 = vmatprep.subr.bf16.mxu0 0
    %2773 = vmatpush1.bf16.msra.mxu0 %v2698
    %2774 = vmatprep.subr.bf16.mxu0 0
    %2775 = vmatpush1.bf16.msra.mxu0 %v2699
    %2776 = vmatprep.subr.bf16.mxu0 0
    %2777 = vmatpush1.bf16.msra.mxu0 %v2700
    %2778 = vmatprep.subr.bf16.mxu0 0
    %2779 = vmatpush1.bf16.msra.mxu0 %v2701
    %2780 = vmatprep.subr.bf16.mxu0 0
    %2781 = vmatpush1.bf16.msra.mxu0 %v2702
    %2782 = vmatprep.subr.bf16.mxu0 0
    %2783 = vmatpush1.bf16.msra.mxu0 %v2703
    %2784 = vmatprep.mubr.bf16.mxu0 %v2493
    %2785 = vmatmul.mubr.bf16.gmra.mrb[0].mxu0 %v2492
    %v2786 = vpop.f32.mrb[0].mxu0
    %v2787 = vadd.f32 0.0, %v2786
    %v2788 = vpop.f32.mrb[0].mxu0
    %v2789 = vpop.f32.mrb[0].mxu0
    %v2790 = vadd.f32 0.0, %v2789
    %v2791 = vpop.f32.mrb[0].mxu0
    %2792 = vdwg.mxu0
    %2793 = vmatprep.subr.bf16.mxu0 0
    %2794 = vmatpush1.bf16.msra.mxu0 %v2704
    %2795 = vmatprep.subr.bf16.mxu0 0
    %2796 = vmatpush1.bf16.msra.mxu0 %v2705
    %2797 = vmatprep.subr.bf16.mxu0 0
    %2798 = vmatpush1.bf16.msra.mxu0 %v2706
    %2799 = vmatprep.subr.bf16.mxu0 0
    %2800 = vmatpush1.bf16.msra.mxu0 %v2707
    %2801 = vmatprep.subr.bf16.mxu0 0
    %2802 = vmatpush1.bf16.msra.mxu0 %v2708
    %2803 = vmatprep.subr.bf16.mxu0 0
    %2804 = vmatpush1.bf16.msra.mxu0 %v2709
    %2805 = vmatprep.subr.bf16.mxu0 0
    %2806 = vmatpush1.bf16.msra.mxu0 %v2710
    %2807 = vmatprep.subr.bf16.mxu0 0
    %2808 = vmatpush1.bf16.msra.mxu0 %v2711
    %2809 = vmatprep.subr.bf16.mxu0 0
    %2810 = vmatpush1.bf16.msra.mxu0 %v2712
    %2811 = vmatprep.subr.bf16.mxu0 0
    %2812 = vmatpush1.bf16.msra.mxu0 %v2713
    %2813 = vmatprep.subr.bf16.mxu0 0
    %2814 = vmatpush1.bf16.msra.mxu0 %v2714
    %2815 = vmatprep.subr.bf16.mxu0 0
    %2816 = vmatpush1.bf16.msra.mxu0 %v2715
    %2817 = vmatprep.subr.bf16.mxu0 0
    %2818 = vmatpush1.bf16.msra.mxu0 %v2716
    %2819 = vmatprep.subr.bf16.mxu0 0
    %2820 = vmatpush1.bf16.msra.mxu0 %v2717
    %2821 = vmatprep.subr.bf16.mxu0 0
    %2822 = vmatpush1.bf16.msra.mxu0 %v2718
    %2823 = vmatprep.subr.bf16.mxu0 0
    %2824 = vmatpush1.bf16.msra.mxu0 %v2719
    %2825 = vmatprep.mubr.bf16.mxu0 %v2495
    %2826 = vmatmul.mubr.bf16.gmra.mrb[0].mxu0 %v2494
    %v2827 = vpop.f32.mrb[0].mxu0
    %v2828 = vadd.f32 %v2787, %v2827
    %v2829 = vpop.f32.mrb[0].mxu0
    %v2830 = vpop.f32.mrb[0].mxu0
    %v2831 = vadd.f32 %v2790, %v2830
    %v2832 = vpop.f32.mrb[0].mxu0
    %2833 = vdwg.mxu0
    %v2834 = vld [vmem:[%s11] sm:$0x1]
    %v2836 = vlaneseq
    %v2837 = vshrl.u32 %v2836, 7
    %v2838 = vsub.s32 0, %v2837
    %v2839 = vrot.slane %v2834, %v2838
    %v2841 = vmul.f32 %v2828, %v2839
    %v2842 = vmul.f32 %v2831, %v2839
    %v2843 = vld [vmem:[%s12] sm:$0x1]
    %v2845 = vlaneseq
    %v2846 = vshrl.u32 %v2845, 7
    %v2847 = vsub.s32 0, %v2846
    %v2848 = vrot.slane %v2843, %v2847
    %v2850 = vadd.f32 %v2841, %v2848
    %v2851 = vadd.f32 %v2842, %v2848
    %2852 = vst [vmem:[#allocation11] sm:$0xff] %v2850
    %2853 = vst [vmem:[#allocation11 + $0x8] sm:$0xff] %v2851
    // Predicated region
    $region74: #{tpu_custom_call.1} parent=1 // pred_check
      _
    $region75: #{tpu_custom_call.1} parent=1 // pred_check_branch
      %2855 = sbr.rel (0) target = $region77
    $region76: #{tpu_custom_call.1} parent=1 // pred_region
      %s2857 = ssub.s32 256, 256
      %2858 = vsyncadd [#allocation4], %s2857
      %s2859 = sshll.u32 [#allocation11], 4
      %s2860 = int_to_ptr.vmem [resolvable:$true] %s2859
      %2865 = dma.vmem_to_hbm [thread:$0]  %s2860, 256, %s13, [#allocation4], 128, 128, 8
    $region77: #{tpu_custom_call.1} parent=1 // pred_fallthru
      _
    // Predicated region
    $region78: #{tpu_custom_call.1} parent=1 // pred_check
      _
    $region79: #{tpu_custom_call.1} parent=1 // pred_check_branch
      %2867 = sbr.rel (0) target = $region81
    $region80: #{tpu_custom_call.1} parent=1 // pred_region
      %2868 = dma.done [#allocation4], 256
    $region81: #{tpu_custom_call.1} parent=1 // pred_fallthru
      _
    %2869 = vsyncpa [#allocation3], 1
    %2870 = vsyncpa [#allocation6], 1
    %2871 = vsyncpa [#allocation9], 1
    %2872 = vsyncpa [#allocation4], 1

// kernel: tpu_custom_call.1
$region0: #{tpu_custom_call.1}
  #allocation0 [shape = 'u32[]', space=smem, size = 0x4, offset = 0x4, fixed_abs, tag = 'smem constant byte address 0x4 - core index']
  #allocation1 [shape = 'u32[144,128]{1,0:T(1,128)}', space=vmem, size = 0x12000, scoped, tag = 'internal scratch']
  %s0 = inlined_call_operand.hbm [shape: bf16[16,128], index: 0, kind: input, shape index: {}]
  %s1 = inlined_call_operand.hbm [shape: bf16[128,512], index: 1, kind: input, shape index: {}]
  %s2 = inlined_call_operand.vmem [shape: f32[1,512], index: 2, kind: input, shape index: {}]
  %s3 = inlined_call_operand.vmem [shape: f32[1,512], index: 3, kind: input, shape index: {}]
  %s4 = inlined_call_operand.hbm [shape: bf16[512,512], index: 4, kind: input, shape index: {}]
  %s5 = inlined_call_operand.vmem [shape: f32[1,512], index: 5, kind: input, shape index: {}]
  %s6 = inlined_call_operand.vmem [shape: f32[1,512], index: 6, kind: input, shape index: {}]
  %s7 = inlined_call_operand.hbm [shape: bf16[512,512], index: 7, kind: input, shape index: {}]
  %s8 = inlined_call_operand.vmem [shape: f32[1,512], index: 8, kind: input, shape index: {}]
  %s9 = inlined_call_operand.vmem [shape: f32[1,512], index: 9, kind: input, shape index: {}]
  %s10 = inlined_call_operand.hbm [shape: bf16[512,128], index: 10, kind: input, shape index: {}]
  %s11 = inlined_call_operand.vmem [shape: f32[1,128], index: 11, kind: input, shape index: {}]
  %s12 = inlined_call_operand.vmem [shape: f32[1,128], index: 12, kind: input, shape index: {}]
  %s13 = inlined_call_operand.hbm [shape: f32[16,128], index: 13, kind: output, shape index: {}]
  %s14 = sld [smem:[#allocation0]]
  $region82: #{tpu_custom_call.1} parent=0
    _
  %s16 = ssub.s32 1, %s14
  %s17 = scalar_select 0, %s16, %s14
  $region1: #{tpu_custom_call.1} parent=0
    #allocation2 [shape = 'u8[4096]{0}', space=vmem, size = 0x1000, scoped, tag = 'input window, operand 0, single buffered']
    #allocation3 [shape = 's32[1]{0}', space=sflag, size = 0x4, scoped, tag = 'scoped memory for tpu_custom_call.1']
    #allocation4 [shape = 's32[1]{0}', space=sflag, size = 0x4, scoped, tag = 'scoped memory for tpu_custom_call.1']
    #allocation5 [shape = 'u8[131072]{0}', space=vmem, size = 0x20000, scoped, tag = 'input window, operand 1, single buffered']
    #allocation6 [shape = 's32[1]{0}', space=sflag, size = 0x4, scoped, tag = 'scoped memory for tpu_custom_call.1']
    #allocation7 [shape = 'u8[524288]{0}', space=vmem, size = 0x80000, scoped, tag = 'input window, operand 4, single buffered']
    #allocation8 [shape = 'u8[524288]{0}', space=vmem, size = 0x80000, scoped, tag = 'input window, operand 7, single buffered']
    #allocation9 [shape = 's32[1]{0}', space=sflag, size = 0x4, scoped, tag = 'scoped memory for tpu_custom_call.1']
    #allocation10 [shape = 'u8[131072]{0}', space=vmem, size = 0x20000, scoped, tag = 'input window, operand 10, single buffered']
    #allocation11 [shape = 'u8[8192]{0}', space=vmem, size = 0x2000, scoped, tag = 'output window, operand 0, single buffered']
    %18 = vsyncpa [#allocation3], 0
    %19 = vsyncpa [#allocation6], 0
    %20 = vsyncpa [#allocation9], 0
    %21 = vsyncpa [#allocation4], 0
    // Predicated region
    $region2: #{tpu_custom_call.1} parent=1 // pred_check
      _
    $region3: #{tpu_custom_call.1} parent=1 // pred_check_branch
      %23 = sbr.rel (0) target = $region5
    $region4: #{tpu_custom_call.1} parent=1 // pred_region
      %s25 = ssub.s32 128, 128
      %26 = vsyncadd [#allocation3], %s25
      %s27 = sshll.u32 [#allocation2], 4
      %s28 = int_to_ptr.vmem [resolvable:$true] %s27
      %33 = dma.hbm_to_vmem [thread:$0]  %s0, 128, %s28, [#allocation3], 64, 64, 4
    $region5: #{tpu_custom_call.1} parent=1 // pred_fallthru
      _
    // Predicated region
    $region6: #{tpu_custom_call.1} parent=1 // pred_check
      _
    $region7: #{tpu_custom_call.1} parent=1 // pred_check_branch
      %35 = sbr.rel (0) target = $region9
    $region8: #{tpu_custom_call.1} parent=1 // pred_region
      %s37 = ssub.s32 4096, 4096
      %38 = vsyncadd [#allocation6], %s37
      %s39 = sshll.u32 [#allocation5], 4
      %s40 = int_to_ptr.vmem [resolvable:$true] %s39
      %45 = dma.hbm_to_vmem [thread:$0]  %s1, 4096, %s40, [#allocation6], 256, 256, 16
    $region9: #{tpu_custom_call.1} parent=1 // pred_fallthru
      _
    // Predicated region
    $region10: #{tpu_custom_call.1} parent=1 // pred_check
      _
    $region11: #{tpu_custom_call.1} parent=1 // pred_check_branch
      %47 = sbr.rel (0) target = $region13
    $region12: #{tpu_custom_call.1} parent=1 // pred_region
      _
    $region13: #{tpu_custom_call.1} parent=1 // pred_fallthru
      _
    // Predicated region
    $region14: #{tpu_custom_call.1} parent=1 // pred_check
      _
    $region15: #{tpu_custom_call.1} parent=1 // pred_check_branch
      %49 = sbr.rel (0) target = $region17
    $region16: #{tpu_custom_call.1} parent=1 // pred_region
      _
    $region17: #{tpu_custom_call.1} parent=1 // pred_fallthru
      _
    // Predicated region
    $region18: #{tpu_custom_call.1} parent=1 // pred_check
      _
    $region19: #{tpu_custom_call.1} parent=1 // pred_check_branch
      %51 = sbr.rel (0) target = $region21
    $region20: #{tpu_custom_call.1} parent=1 // pred_region
      %s53 = ssub.s32 16384, 16384
      %54 = vsyncadd [#allocation6], %s53
      %s55 = sshll.u32 [#allocation7], 4
      %s56 = int_to_ptr.vmem [resolvable:$true] %s55
      %61 = dma.hbm_to_vmem [thread:$0]  %s4, 16384, %s56, [#allocation6], 256, 256, 16
    $region21: #{tpu_custom_call.1} parent=1 // pred_fallthru
      _
    // Predicated region
    $region22: #{tpu_custom_call.1} parent=1 // pred_check
      _
    $region23: #{tpu_custom_call.1} parent=1 // pred_check_branch
      %63 = sbr.rel (0) target = $region25
    $region24: #{tpu_custom_call.1} parent=1 // pred_region
      _
    $region25: #{tpu_custom_call.1} parent=1 // pred_fallthru
      _
    // Predicated region
    $region26: #{tpu_custom_call.1} parent=1 // pred_check
      _
    $region27: #{tpu_custom_call.1} parent=1 // pred_check_branch
      %65 = sbr.rel (0) target = $region29
    $region28: #{tpu_custom_call.1} parent=1 // pred_region
      _
    $region29: #{tpu_custom_call.1} parent=1 // pred_fallthru
      _
    // Predicated region
    $region30: #{tpu_custom_call.1} parent=1 // pred_check
      _
    $region31: #{tpu_custom_call.1} parent=1 // pred_check_branch
      %67 = sbr.rel (0) target = $region33
    $region32: #{tpu_custom_call.1} parent=1 // pred_region
      %s69 = ssub.s32 16384, 16384
      %70 = vsyncadd [#allocation9], %s69
      %s71 = sshll.u32 [#allocation8], 4
      %s72 = int_to_ptr.vmem [resolvable:$true] %s71
      %77 = dma.hbm_to_vmem [thread:$0]  %s7, 16384, %s72, [#allocation9], 256, 256, 16
    $region33: #{tpu_custom_call.1} parent=1 // pred_fallthru
      _
    // Predicated region
    $region34: #{tpu_custom_call.1} parent=1 // pred_check
      _
    $region35: #{tpu_custom_call.1} parent=1 // pred_check_branch
      %79 = sbr.rel (0) target = $region37
    $region36: #{tpu_custom_call.1} parent=1 // pred_region
      _
    $region37: #{tpu_custom_call.1} parent=1 // pred_fallthru
      _
    // Predicated region
    $region38: #{tpu_custom_call.1} parent=1 // pred_check
      _
    $region39: #{tpu_custom_call.1} parent=1 // pred_check_branch
      %81 = sbr.rel (0) target = $region41
    $region40: #{tpu_custom_call.1} parent=1 // pred_region
      _
    $region41: #{tpu_custom_call.1} parent=1 // pred_fallthru
      _
    // Predicated region
    $region42: #{tpu_custom_call.1} parent=1 // pred_check
      _
    $region43: #{tpu_custom_call.1} parent=1 // pred_check_branch
      %83 = sbr.rel (0) target = $region45
    $region44: #{tpu_custom_call.1} parent=1 // pred_region
      %s85 = ssub.s32 4096, 4096
      %86 = vsyncadd [#allocation9], %s85
      %s87 = sshll.u32 [#allocation10], 4
      %s88 = int_to_ptr.vmem [resolvable:$true] %s87
      %93 = dma.hbm_to_vmem [thread:$0]  %s10, 4096, %s88, [#allocation9], 64, 64, 4
    $region45: #{tpu_custom_call.1} parent=1 // pred_fallthru
      _
    // Predicated region
    $region46: #{tpu_custom_call.1} parent=1 // pred_check
      _
    $region47: #{tpu_custom_call.1} parent=1 // pred_check_branch
      %95 = sbr.rel (0) target = $region49
    $region48: #{tpu_custom_call.1} parent=1 // pred_region
      _
    $region49: #{tpu_custom_call.1} parent=1 // pred_fallthru
      _
    // Predicated region
    $region50: #{tpu_custom_call.1} parent=1 // pred_check
      _
    $region51: #{tpu_custom_call.1} parent=1 // pred_check_branch
      %97 = sbr.rel (0) target = $region53
    $region52: #{tpu_custom_call.1} parent=1 // pred_region
      _
    $region53: #{tpu_custom_call.1} parent=1 // pred_fallthru
      _
    // Predicated region
    $region54: #{tpu_custom_call.1} parent=1 // pred_check
      _
    $region55: #{tpu_custom_call.1} parent=1 // pred_check_branch
      %99 = sbr.rel (0) target = $region57
    $region56: #{tpu_custom_call.1} parent=1 // pred_region
      %100 = dma.done [#allocation3], 128
    $region57: #{tpu_custom_call.1} parent=1 // pred_fallthru
      _
    // Predicated region
    $region58: #{tpu_custom_call.1} parent=1 // pred_check
      _
    $region59: #{tpu_custom_call.1} parent=1 // pred_check_branch
      %102 = sbr.rel (0) target = $region61
    $region60: #{tpu_custom_call.1} parent=1 // pred_region
      %103 = dma.done [#allocation6], 4096
    $region61: #{tpu_custom_call.1} parent=1 // pred_fallthru
      _
    // Predicated region
    $region62: #{tpu_custom_call.1} parent=1 // pred_check
      _
    $region63: #{tpu_custom_call.1} parent=1 // pred_check_branch
      %105 = sbr.rel (0) target = $region65
    $region64: #{tpu_custom_call.1} parent=1 // pred_region
      %106 = dma.done [#allocation6], 16384
    $region65: #{tpu_custom_call.1} parent=1 // pred_fallthru
      _
    // Predicated region
    $region66: #{tpu_custom_call.1} parent=1 // pred_check
      _
    $region67: #{tpu_custom_call.1} parent=1 // pred_check_branch
      %108 = sbr.rel (0) target = $region69
    $region68: #{tpu_custom_call.1} parent=1 // pred_region
      %109 = dma.done [#allocation9], 16384
    $region69: #{tpu_custom_call.1} parent=1 // pred_fallthru
      _
    // Predicated region
    $region70: #{tpu_custom_call.1} parent=1 // pred_check
      _
    $region71: #{tpu_custom_call.1} parent=1 // pred_check_branch
      %111 = sbr.rel (0) target = $region73
    $region72: #{tpu_custom_call.1} parent=1 // pred_region
      %112 = dma.done [#allocation9], 4096
    $region73: #{tpu_custom_call.1} parent=1 // pred_fallthru
      _
    %v114 = vld [vmem:[#allocation2] sm:$0xf]
    %v115 = vld [vmem:[#allocation2 + $0x4] sm:$0xf]
    %v116 = vld [vmem:[#allocation5] sm:$0xff]
    %v117 = vld [vmem:[#allocation5 + $0x8] sm:$0xff]
    %v118 = vld [vmem:[#allocation5 + $0x10] sm:$0xff]
    %v119 = vld [vmem:[#allocation5 + $0x18] sm:$0xff]
    %v120 = vld [vmem:[#allocation5 + $0x20] sm:$0xff]
    %v121 = vld [vmem:[#allocation5 + $0x28] sm:$0xff]
    %v122 = vld [vmem:[#allocation5 + $0x30] sm:$0xff]
    %v123 = vld [vmem:[#allocation5 + $0x38] sm:$0xff]
    %v124 = vld [vmem:[#allocation5 + $0x40] sm:$0xff]
    %v125 = vld [vmem:[#allocation5 + $0x48] sm:$0xff]
    %v126 = vld [vmem:[#allocation5 + $0x50] sm:$0xff]
    %v127 = vld [vmem:[#allocation5 + $0x58] sm:$0xff]
    %v128 = vld [vmem:[#allocation5 + $0x60] sm:$0xff]
    %v129 = vld [vmem:[#allocation5 + $0x68] sm:$0xff]
    %v130 = vld [vmem:[#allocation5 + $0x70] sm:$0xff]
    %v131 = vld [vmem:[#allocation5 + $0x78] sm:$0xff]
    %v132 = vld [vmem:[#allocation5 + $0x80] sm:$0xff]
    %v133 = vld [vmem:[#allocation5 + $0x88] sm:$0xff]
    %v134 = vld [vmem:[#allocation5 + $0x90] sm:$0xff]
    %v135 = vld [vmem:[#allocation5 + $0x98] sm:$0xff]
    %v136 = vld [vmem:[#allocation5 + $0xa0] sm:$0xff]
    %v137 = vld [vmem:[#allocation5 + $0xa8] sm:$0xff]
    %v138 = vld [vmem:[#allocation5 + $0xb0] sm:$0xff]
    %v139 = vld [vmem:[#allocation5 + $0xb8] sm:$0xff]
    %v140 = vld [vmem:[#allocation5 + $0xc0] sm:$0xff]
    %v141 = vld [vmem:[#allocation5 + $0xc8] sm:$0xff]
    %v142 = vld [vmem:[#allocation5 + $0xd0] sm:$0xff]
    %v143 = vld [vmem:[#allocation5 + $0xd8] sm:$0xff]
    %v144 = vld [vmem:[#allocation5 + $0xe0] sm:$0xff]
    %v145 = vld [vmem:[#allocation5 + $0xe8] sm:$0xff]
    %v146 = vld [vmem:[#allocation5 + $0xf0] sm:$0xff]
    %v147 = vld [vmem:[#allocation5 + $0xf8] sm:$0xff]
    %v150 = vunpack.c.l.b16 %v114
    %v151 = vunpack.c.l.b16 %v115
    %v152 = vpack.c.b16 %v151, %v150
    %v186 = vunpack.c.l.b16 %v116
    %v187 = vunpack.c.h.b16 %v116
    %v188 = vunpack.c.l.b16 %v117
    %v189 = vunpack.c.h.b16 %v117
    %v190 = vunpack.c.l.b16 %v118
    %v191 = vunpack.c.h.b16 %v118
    %v192 = vunpack.c.l.b16 %v119
    %v193 = vunpack.c.h.b16 %v119
    %v194 = vunpack.c.l.b16 %v120
    %v195 = vunpack.c.h.b16 %v120
    %v196 = vunpack.c.l.b16 %v121
    %v197 = vunpack.c.h.b16 %v121
    %v198 = vunpack.c.l.b16 %v122
    %v199 = vunpack.c.h.b16 %v122
    %v200 = vunpack.c.l.b16 %v123
    %v201 = vunpack.c.h.b16 %v123
    %v202 = vunpack.c.l.b16 %v124
    %v203 = vunpack.c.h.b16 %v124
    %v204 = vunpack.c.l.b16 %v125
    %v205 = vunpack.c.h.b16 %v125
    %v206 = vunpack.c.l.b16 %v126
    %v207 = vunpack.c.h.b16 %v126
    %v208 = vunpack.c.l.b16 %v127
    %v209 = vunpack.c.h.b16 %v127
    %v210 = vunpack.c.l.b16 %v128
    %v211 = vunpack.c.h.b16 %v128
    %v212 = vunpack.c.l.b16 %v129
    %v213 = vunpack.c.h.b16 %v129
    %v214 = vunpack.c.l.b16 %v130
    %v215 = vunpack.c.h.b16 %v130
    %v216 = vunpack.c.l.b16 %v131
    %v217 = vunpack.c.h.b16 %v131
    %v218 = vunpack.c.l.b16 %v132
    %v219 = vunpack.c.h.b16 %v132
    %v220 = vunpack.c.l.b16 %v133
    %v221 = vunpack.c.h.b16 %v133
    %v222 = vunpack.c.l.b16 %v134
    %v223 = vunpack.c.h.b16 %v134
    %v224 = vunpack.c.l.b16 %v135
    %v225 = vunpack.c.h.b16 %v135
    %v226 = vunpack.c.l.b16 %v136
    %v227 = vunpack.c.h.b16 %v136
    %v228 = vunpack.c.l.b16 %v137
    %v229 = vunpack.c.h.b16 %v137
    %v230 = vunpack.c.l.b16 %v138
    %v231 = vunpack.c.h.b16 %v138
    %v232 = vunpack.c.l.b16 %v139
    %v233 = vunpack.c.h.b16 %v139
    %v234 = vunpack.c.l.b16 %v140
    %v235 = vunpack.c.h.b16 %v140
    %v236 = vunpack.c.l.b16 %v141
    %v237 = vunpack.c.h.b16 %v141
    %v238 = vunpack.c.l.b16 %v142
    %v239 = vunpack.c.h.b16 %v142
    %v240 = vunpack.c.l.b16 %v143
    %v241 = vunpack.c.h.b16 %v143
    %v242 = vunpack.c.l.b16 %v144
    %v243 = vunpack.c.h.b16 %v144
    %v244 = vunpack.c.l.b16 %v145
    %v245 = vunpack.c.h.b16 %v145
    %v246 = vunpack.c.l.b16 %v146
    %v247 = vunpack.c.h.b16 %v146
    %v248 = vunpack.c.l.b16 %v147
    %v249 = vunpack.c.h.b16 %v147
    %v250 = vpack.c.b16 %v190, %v186
    %v251 = vpack.c.b16 %v191, %v187
    %v252 = vpack.c.b16 %v192, %v188
    %v253 = vpack.c.b16 %v193, %v189
    %v254 = vpack.c.b16 %v198, %v194
    %v255 = vpack.c.b16 %v199, %v195
    %v256 = vpack.c.b16 %v200, %v196
    %v257 = vpack.c.b16 %v201, %v197
    %v258 = vpack.c.b16 %v206, %v202
    %v259 = vpack.c.b16 %v207, %v203
    %v260 = vpack.c.b16 %v208, %v204
    %v261 = vpack.c.b16 %v209, %v205
    %v262 = vpack.c.b16 %v214, %v210
    %v263 = vpack.c.b16 %v215, %v211
    %v264 = vpack.c.b16 %v216, %v212
    %v265 = vpack.c.b16 %v217, %v213
    %v266 = vpack.c.b16 %v222, %v218
    %v267 = vpack.c.b16 %v223, %v219
    %v268 = vpack.c.b16 %v224, %v220
    %v269 = vpack.c.b16 %v225, %v221
    %v270 = vpack.c.b16 %v230, %v226
    %v271 = vpack.c.b16 %v231, %v227
    %v272 = vpack.c.b16 %v232, %v228
    %v273 = vpack.c.b16 %v233, %v229
    %v274 = vpack.c.b16 %v238, %v234
    %v275 = vpack.c.b16 %v239, %v235
    %v276 = vpack.c.b16 %v240, %v236
    %v277 = vpack.c.b16 %v241, %v237
    %v278 = vpack.c.b16 %v246, %v242
    %v279 = vpack.c.b16 %v247, %v243
    %v280 = vpack.c.b16 %v248, %v244
    %v281 = vpack.c.b16 %v249, %v245
    %314 = vmatprep.subr.bf16.mxu0 %v251
    %315 = vmatpush1.bf16.msra.mxu0 %v250
    %316 = vmatprep.subr.bf16.mxu0 %v255
    %317 = vmatpush1.bf16.msra.mxu0 %v254
    %318 = vmatprep.subr.bf16.mxu0 %v259
    %319 = vmatpush1.bf16.msra.mxu0 %v258
    %320 = vmatprep.subr.bf16.mxu0 %v263
    %321 = vmatpush1.bf16.msra.mxu0 %v262
    %322 = vmatprep.subr.bf16.mxu0 %v267
    %323 = vmatpush1.bf16.msra.mxu0 %v266
    %324 = vmatprep.subr.bf16.mxu0 %v271
    %325 = vmatpush1.bf16.msra.mxu0 %v270
    %326 = vmatprep.subr.bf16.mxu0 %v275
    %327 = vmatpush1.bf16.msra.mxu0 %v274
    %328 = vmatprep.subr.bf16.mxu0 %v279
    %329 = vmatpush1.bf16.msra.mxu0 %v278
    %330 = vmatprep.subr.bf16.mxu0 0
    %331 = vmatpush1.bf16.msra.mxu0 0
    %332 = vmatprep.subr.bf16.mxu0 0
    %333 = vmatpush1.bf16.msra.mxu0 0
    %334 = vmatprep.subr.bf16.mxu0 0
    %335 = vmatpush1.bf16.msra.mxu0 0
    %336 = vmatprep.subr.bf16.mxu0 0
    %337 = vmatpush1.bf16.msra.mxu0 0
    %338 = vmatprep.subr.bf16.mxu0 0
    %339 = vmatpush1.bf16.msra.mxu0 0
    %340 = vmatprep.subr.bf16.mxu0 0
    %341 = vmatpush1.bf16.msra.mxu0 0
    %342 = vmatprep.subr.bf16.mxu0 0
    %343 = vmatpush1.bf16.msra.mxu0 0
    %344 = vmatprep.subr.bf16.mxu0 0
    %345 = vmatpush1.bf16.msra.mxu0 0
    %346 = vmatprep.mubr.bf16.mxu0 0
    %347 = vmatmul.mubr.bf16.gmra.mrb[0].mxu0 %v152
    %v348 = vpop.f32.mrb[0].mxu0
    %v349 = vadd.f32 0.0, %v348
    %v350 = vpop.f32.mrb[0].mxu0
    %v351 = vadd.f32 0.0, %v350
    %v352 = vpop.f32.mrb[0].mxu0
    %v353 = vadd.f32 0.0, %v352
    %v354 = vpop.f32.mrb[0].mxu0
    %v355 = vadd.f32 0.0, %v354
    %356 = vdwg.mxu0
    %357 = vmatprep.subr.bf16.mxu0 %v253
    %358 = vmatpush1.bf16.msra.mxu0 %v252
    %359 = vmatprep.subr.bf16.mxu0 %v257
    %360 = vmatpush1.bf16.msra.mxu0 %v256
    %361 = vmatprep.subr.bf16.mxu0 %v261
    %362 = vmatpush1.bf16.msra.mxu0 %v260
    %363 = vmatprep.subr.bf16.mxu0 %v265
    %364 = vmatpush1.bf16.msra.mxu0 %v264
    %365 = vmatprep.subr.bf16.mxu0 %v269
    %366 = vmatpush1.bf16.msra.mxu0 %v268
    %367 = vmatprep.subr.bf16.mxu0 %v273
    %368 = vmatpush1.bf16.msra.mxu0 %v272
    %369 = vmatprep.subr.bf16.mxu0 %v277
    %370 = vmatpush1.bf16.msra.mxu0 %v276
    %371 = vmatprep.subr.bf16.mxu0 %v281
    %372 = vmatpush1.bf16.msra.mxu0 %v280
    %373 = vmatprep.subr.bf16.mxu0 0
    %374 = vmatpush1.bf16.msra.mxu0 0
    %375 = vmatprep.subr.bf16.mxu0 0
    %376 = vmatpush1.bf16.msra.mxu0 0
    %377 = vmatprep.subr.bf16.mxu0 0
    %378 = vmatpush1.bf16.msra.mxu0 0
    %379 = vmatprep.subr.bf16.mxu0 0
    %380 = vmatpush1.bf16.msra.mxu0 0
    %381 = vmatprep.subr.bf16.mxu0 0
    %382 = vmatpush1.bf16.msra.mxu0 0
    %383 = vmatprep.subr.bf16.mxu0 0
    %384 = vmatpush1.bf16.msra.mxu0 0
    %385 = vmatprep.subr.bf16.mxu0 0
    %386 = vmatpush1.bf16.msra.mxu0 0
    %387 = vmatprep.subr.bf16.mxu0 0
    %388 = vmatpush1.bf16.msra.mxu0 0
    %389 = vmatprep.mubr.bf16.mxu0 0
    %390 = vmatmul.mubr.bf16.gmra.mrb[0].mxu0 %v152
    %v391 = vpop.f32.mrb[0].mxu0
    %v392 = vadd.f32 0.0, %v391
    %v393 = vpop.f32.mrb[0].mxu0
    %v394 = vadd.f32 0.0, %v393
    %v395 = vpop.f32.mrb[0].mxu0
    %v396 = vadd.f32 0.0, %v395
    %v397 = vpop.f32.mrb[0].mxu0
    %v398 = vadd.f32 0.0, %v397
    %399 = vdwg.mxu0
    %v400 = vld [vmem:[%s2] sm:$0xf]
    %v402 = vlaneseq
    %v403 = vshrl.u32 %v402, 7
    %v404 = vsub.s32 0, %v403
    %v405 = vrot.slane %v400, %v404
    %v406 = vlaneseq
    %v407 = vshrl.u32 %v406, 7
    %v408 = vsub.s32 1, %v407
    %v409 = vrot.slane %v400, %v408
    %v410 = vlaneseq
    %v411 = vshrl.u32 %v410, 7
    %v412 = vsub.s32 2, %v411
    %v413 = vrot.slane %v400, %v412
    %v414 = vlaneseq
    %v415 = vshrl.u32 %v414, 7
    %v416 = vsub.s32 3, %v415
    %v417 = vrot.slane %v400, %v416
    %v422 = vmul.f32 %v349, %v405
    %v423 = vmul.f32 %v351, %v409
    %v424 = vmul.f32 %v392, %v413
    %v425 = vmul.f32 %v394, %v417
    %v426 = vmul.f32 %v353, %v405
    %v427 = vmul.f32 %v355, %v409
    %v428 = vmul.f32 %v396, %v413
    %v429 = vmul.f32 %v398, %v417
    %v430 = vld [vmem:[%s3] sm:$0xf]
    %v432 = vlaneseq
    %v433 = vshrl.u32 %v432, 7
    %v434 = vsub.s32 0, %v433
    %v435 = vrot.slane %v430, %v434
    %v436 = vlaneseq
    %v437 = vshrl.u32 %v436, 7
    %v438 = vsub.s32 1, %v437
    %v439 = vrot.slane %v430, %v438
    %v440 = vlaneseq
    %v441 = vshrl.u32 %v440, 7
    %v442 = vsub.s32 2, %v441
    %v443 = vrot.slane %v430, %v442
    %v444 = vlaneseq
    %v445 = vshrl.u32 %v444, 7
    %v446 = vsub.s32 3, %v445
    %v447 = vrot.slane %v430, %v446
    %v452 = vadd.f32 %v422, %v435
    %v453 = vadd.f32 %v423, %v439
    %v454 = vadd.f32 %v424, %v443
    %v455 = vadd.f32 %v425, %v447
    %v456 = vadd.f32 %v426, %v435
    %v457 = vadd.f32 %v427, %v439
    %v458 = vadd.f32 %v428, %v443
    %v459 = vadd.f32 %v429, %v447
    %v460 = vmax.f32 %v452, 0.0
    %v461 = vmax.f32 %v453, 0.0
    %v462 = vmax.f32 %v454, 0.0
    %v463 = vmax.f32 %v455, 0.0
    %v464 = vmax.f32 %v456, 0.0
    %v465 = vmax.f32 %v457, 0.0
    %v466 = vmax.f32 %v458, 0.0
    %v467 = vmax.f32 %v459, 0.0
    %v468 = vpack.c.bf16 %v464, %v460
    %v469 = vpack.c.bf16 %v465, %v461
    %v470 = vpack.c.bf16 %v466, %v462
    %v471 = vpack.c.bf16 %v467, %v463
    %v472 = vld [vmem:[#allocation7] sm:$0xff]
    %v473 = vld [vmem:[#allocation7 + $0x8] sm:$0xff]
    %v474 = vld [vmem:[#allocation7 + $0x10] sm:$0xff]
    %v475 = vld [vmem:[#allocation7 + $0x18] sm:$0xff]
    %v476 = vld [vmem:[#allocation7 + $0x20] sm:$0xff]
    %v477 = vld [vmem:[#allocation7 + $0x28] sm:$0xff]
    %v478 = vld [vmem:[#allocation7 + $0x30] sm:$0xff]
    %v479 = vld [vmem:[#allocation7 + $0x38] sm:$0xff]
    %v480 = vld [vmem:[#allocation7 + $0x40] sm:$0xff]
    %v481 = vld [vmem:[#allocation7 + $0x48] sm:$0xff]
    %v482 = vld [vmem:[#allocation7 + $0x50] sm:$0xff]
    %v483 = vld [vmem:[#allocation7 + $0x58] sm:$0xff]
    %v484 = vld [vmem:[#allocation7 + $0x60] sm:$0xff]
    %v485 = vld [vmem:[#allocation7 + $0x68] sm:$0xff]
    %v486 = vld [vmem:[#allocation7 + $0x70] sm:$0xff]
    %v487 = vld [vmem:[#allocation7 + $0x78] sm:$0xff]
    %v488 = vld [vmem:[#allocation7 + $0x80] sm:$0xff]
    %v489 = vld [vmem:[#allocation7 + $0x88] sm:$0xff]
    %v490 = vld [vmem:[#allocation7 + $0x90] sm:$0xff]
    %v491 = vld [vmem:[#allocation7 + $0x98] sm:$0xff]
    %v492 = vld [vmem:[#allocation7 + $0xa0] sm:$0xff]
    %v493 = vld [vmem:[#allocation7 + $0xa8] sm:$0xff]
    %v494 = vld [vmem:[#allocation7 + $0xb0] sm:$0xff]
    %v495 = vld [vmem:[#allocation7 + $0xb8] sm:$0xff]
    %v496 = vld [vmem:[#allocation7 + $0xc0] sm:$0xff]
    %v497 = vld [vmem:[#allocation7 + $0xc8] sm:$0xff]
    %v498 = vld [vmem:[#allocation7 + $0xd0] sm:$0xff]
    %v499 = vld [vmem:[#allocation7 + $0xd8] sm:$0xff]
    %v500 = vld [vmem:[#allocation7 + $0xe0] sm:$0xff]
    %v501 = vld [vmem:[#allocation7 + $0xe8] sm:$0xff]
    %v502 = vld [vmem:[#allocation7 + $0xf0] sm:$0xff]
    %v503 = vld [vmem:[#allocation7 + $0xf8] sm:$0xff]
    %v504 = vld [vmem:[#allocation7 + $0x100] sm:$0xff]
    %v505 = vld [vmem:[#allocation7 + $0x108] sm:$0xff]
    %v506 = vld [vmem:[#allocation7 + $0x110] sm:$0xff]
    %v507 = vld [vmem:[#allocation7 + $0x118] sm:$0xff]
    %v508 = vld [vmem:[#allocation7 + $0x120] sm:$0xff]
    %v509 = vld [vmem:[#allocation7 + $0x128] sm:$0xff]
    %v510 = vld [vmem:[#allocation7 + $0x130] sm:$0xff]
    %v511 = vld [vmem:[#allocation7 + $0x138] sm:$0xff]
    %v512 = vld [vmem:[#allocation7 + $0x140] sm:$0xff]
    %v513 = vld [vmem:[#allocation7 + $0x148] sm:$0xff]
    %v514 = vld [vmem:[#allocation7 + $0x150] sm:$0xff]
    %v515 = vld [vmem:[#allocation7 + $0x158] sm:$0xff]
    %v516 = vld [vmem:[#allocation7 + $0x160] sm:$0xff]
    %v517 = vld [vmem:[#allocation7 + $0x168] sm:$0xff]
    %v518 = vld [vmem:[#allocation7 + $0x170] sm:$0xff]
    %v519 = vld [vmem:[#allocation7 + $0x178] sm:$0xff]
    %v520 = vld [vmem:[#allocation7 + $0x180] sm:$0xff]
    %v521 = vld [vmem:[#allocation7 + $0x188] sm:$0xff]
    %v522 = vld [vmem:[#allocation7 + $0x190] sm:$0xff]
    %v523 = vld [vmem:[#allocation7 + $0x198] sm:$0xff]
    %v524 = vld [vmem:[#allocation7 + $0x1a0] sm:$0xff]
    %v525 = vld [vmem:[#allocation7 + $0x1a8] sm:$0xff]
    %v526 = vld [vmem:[#allocation7 + $0x1b0] sm:$0xff]
    %v527 = vld [vmem:[#allocation7 + $0x1b8] sm:$0xff]
    %v528 = vld [vmem:[#allocation7 + $0x1c0] sm:$0xff]
    %v529 = vld [vmem:[#allocation7 + $0x1c8] sm:$0xff]
    %v530 = vld [vmem:[#allocation7 + $0x1d0] sm:$0xff]
    %v531 = vld [vmem:[#allocation7 + $0x1d8] sm:$0xff]
    %v532 = vld [vmem:[#allocation7 + $0x1e0] sm:$0xff]
    %v533 = vld [vmem:[#allocation7 + $0x1e8] sm:$0xff]
    %v534 = vld [vmem:[#allocation7 + $0x1f0] sm:$0xff]
    %v535 = vld [vmem:[#allocation7 + $0x1f8] sm:$0xff]
    %v536 = vld [vmem:[#allocation7 + $0x200] sm:$0xff]
    %v537 = vld [vmem:[#allocation7 + $0x208] sm:$0xff]
    %v538 = vld [vmem:[#allocation7 + $0x210] sm:$0xff]
    %v539 = vld [vmem:[#allocation7 + $0x218] sm:$0xff]
    %v540 = vld [vmem:[#allocation7 + $0x220] sm:$0xff]
    %v541 = vld [vmem:[#allocation7 + $0x228] sm:$0xff]
    %v542 = vld [vmem:[#allocation7 + $0x230] sm:$0xff]
    %v543 = vld [vmem:[#allocation7 + $0x238] sm:$0xff]
    %v544 = vld [vmem:[#allocation7 + $0x240] sm:$0xff]
    %v545 = vld [vmem:[#allocation7 + $0x248] sm:$0xff]
    %v546 = vld [vmem:[#allocation7 + $0x250] sm:$0xff]
    %v547 = vld [vmem:[#allocation7 + $0x258] sm:$0xff]
    %v548 = vld [vmem:[#allocation7 + $0x260] sm:$0xff]
    %v549 = vld [vmem:[#allocation7 + $0x268] sm:$0xff]
    %v550 = vld [vmem:[#allocation7 + $0x270] sm:$0xff]
    %v551 = vld [vmem:[#allocation7 + $0x278] sm:$0xff]
    %v552 = vld [vmem:[#allocation7 + $0x280] sm:$0xff]
    %v553 = vld [vmem:[#allocation7 + $0x288] sm:$0xff]
    %v554 = vld [vmem:[#allocation7 + $0x290] sm:$0xff]
    %v555 = vld [vmem:[#allocation7 + $0x298] sm:$0xff]
    %v556 = vld [vmem:[#allocation7 + $0x2a0] sm:$0xff]
    %v557 = vld [vmem:[#allocation7 + $0x2a8] sm:$0xff]
    %v558 = vld [vmem:[#allocation7 + $0x2b0] sm:$0xff]
    %v559 = vld [vmem:[#allocation7 + $0x2b8] sm:$0xff]
    %v560 = vld [vmem:[#allocation7 + $0x2c0] sm:$0xff]
    %v561 = vld [vmem:[#allocation7 + $0x2c8] sm:$0xff]
    %v562 = vld [vmem:[#allocation7 + $0x2d0] sm:$0xff]
    %v563 = vld [vmem:[#allocation7 + $0x2d8] sm:$0xff]
    %v564 = vld [vmem:[#allocation7 + $0x2e0] sm:$0xff]
    %v565 = vld [vmem:[#allocation7 + $0x2e8] sm:$0xff]
    %v566 = vld [vmem:[#allocation7 + $0x2f0] sm:$0xff]
    %v567 = vld [vmem:[#allocation7 + $0x2f8] sm:$0xff]
    %v568 = vld [vmem:[#allocation7 + $0x300] sm:$0xff]
    %v569 = vld [vmem:[#allocation7 + $0x308] sm:$0xff]
    %v570 = vld [vmem:[#allocation7 + $0x310] sm:$0xff]
    %v571 = vld [vmem:[#allocation7 + $0x318] sm:$0xff]
    %v572 = vld [vmem:[#allocation7 + $0x320] sm:$0xff]
    %v573 = vld [vmem:[#allocation7 + $0x328] sm:$0xff]
    %v574 = vld [vmem:[#allocation7 + $0x330] sm:$0xff]
    %v575 = vld [vmem:[#allocation7 + $0x338] sm:$0xff]
    %v576 = vld [vmem:[#allocation7 + $0x340] sm:$0xff]
    %v577 = vld [vmem:[#allocation7 + $0x348] sm:$0xff]
    %v578 = vld [vmem:[#allocation7 + $0x350] sm:$0xff]
    %v579 = vld [vmem:[#allocation7 + $0x358] sm:$0xff]
    %v580 = vld [vmem:[#allocation7 + $0x360] sm:$0xff]
    %v581 = vld [vmem:[#allocation7 + $0x368] sm:$0xff]
    %v582 = vld [vmem:[#allocation7 + $0x370] sm:$0xff]
    %v583 = vld [vmem:[#allocation7 + $0x378] sm:$0xff]
    %v584 = vld [vmem:[#allocation7 + $0x380] sm:$0xff]
    %v585 = vld [vmem:[#allocation7 + $0x388] sm:$0xff]
    %v586 = vld [vmem:[#allocation7 + $0x390] sm:$0xff]
    %v587 = vld [vmem:[#allocation7 + $0x398] sm:$0xff]
    %v588 = vld [vmem:[#allocation7 + $0x3a0] sm:$0xff]
    %v589 = vld [vmem:[#allocation7 + $0x3a8] sm:$0xff]
    %v590 = vld [vmem:[#allocation7 + $0x3b0] sm:$0xff]
    %v591 = vld [vmem:[#allocation7 + $0x3b8] sm:$0xff]
    %v592 = vld [vmem:[#allocation7 + $0x3c0] sm:$0xff]
    %v593 = vld [vmem:[#allocation7 + $0x3c8] sm:$0xff]
    %v594 = vld [vmem:[#allocation7 + $0x3d0] sm:$0xff]
    %v595 = vld [vmem:[#allocation7 + $0x3d8] sm:$0xff]
    %v596 = vld [vmem:[#allocation7 + $0x3e0] sm:$0xff]
    %v597 = vld [vmem:[#allocation7 + $0x3e8] sm:$0xff]
    %v598 = vld [vmem:[#allocation7 + $0x3f0] sm:$0xff]
    %v599 = vld [vmem:[#allocation7 + $0x3f8] sm:$0xff]
    %v728 = vunpack.c.l.b16 %v472
    %v729 = vunpack.c.h.b16 %v472
    %v730 = vunpack.c.l.b16 %v473
    %v731 = vunpack.c.h.b16 %v473
    %v732 = vunpack.c.l.b16 %v474
    %v733 = vunpack.c.h.b16 %v474
    %v734 = vunpack.c.l.b16 %v475
    %v735 = vunpack.c.h.b16 %v475
    %v736 = vunpack.c.l.b16 %v476
    %v737 = vunpack.c.h.b16 %v476
    %v738 = vunpack.c.l.b16 %v477
    %v739 = vunpack.c.h.b16 %v477
    %v740 = vunpack.c.l.b16 %v478
    %v741 = vunpack.c.h.b16 %v478
    %v742 = vunpack.c.l.b16 %v479
    %v743 = vunpack.c.h.b16 %v479
    %v744 = vunpack.c.l.b16 %v480
    %v745 = vunpack.c.h.b16 %v480
    %v746 = vunpack.c.l.b16 %v481
    %v747 = vunpack.c.h.b16 %v481
    %v748 = vunpack.c.l.b16 %v482
    %v749 = vunpack.c.h.b16 %v482
    %v750 = vunpack.c.l.b16 %v483
    %v751 = vunpack.c.h.b16 %v483
    %v752 = vunpack.c.l.b16 %v484
    %v753 = vunpack.c.h.b16 %v484
    %v754 = vunpack.c.l.b16 %v485
    %v755 = vunpack.c.h.b16 %v485
    %v756 = vunpack.c.l.b16 %v486
    %v757 = vunpack.c.h.b16 %v486
    %v758 = vunpack.c.l.b16 %v487
    %v759 = vunpack.c.h.b16 %v487
    %v760 = vunpack.c.l.b16 %v488
    %v761 = vunpack.c.h.b16 %v488
    %v762 = vunpack.c.l.b16 %v489
    %v763 = vunpack.c.h.b16 %v489
    %v764 = vunpack.c.l.b16 %v490
    %v765 = vunpack.c.h.b16 %v490
    %v766 = vunpack.c.l.b16 %v491
    %v767 = vunpack.c.h.b16 %v491
    %v768 = vunpack.c.l.b16 %v492
    %v769 = vunpack.c.h.b16 %v492
    %v770 = vunpack.c.l.b16 %v493
    %v771 = vunpack.c.h.b16 %v493
    %v772 = vunpack.c.l.b16 %v494
    %v773 = vunpack.c.h.b16 %v494
    %v774 = vunpack.c.l.b16 %v495
    %v775 = vunpack.c.h.b16 %v495
    %v776 = vunpack.c.l.b16 %v496
    %v777 = vunpack.c.h.b16 %v496
    %v778 = vunpack.c.l.b16 %v497
    %v779 = vunpack.c.h.b16 %v497
    %v780 = vunpack.c.l.b16 %v498
    %v781 = vunpack.c.h.b16 %v498
    %v782 = vunpack.c.l.b16 %v499
    %v783 = vunpack.c.h.b16 %v499
    %v784 = vunpack.c.l.b16 %v500
    %v785 = vunpack.c.h.b16 %v500
    %v786 = vunpack.c.l.b16 %v501
    %v787 = vunpack.c.h.b16 %v501
    %v788 = vunpack.c.l.b16 %v502
    %v789 = vunpack.c.h.b16 %v502
    %v790 = vunpack.c.l.b16 %v503
    %v791 = vunpack.c.h.b16 %v503
    %v792 = vunpack.c.l.b16 %v504
    %v793 = vunpack.c.h.b16 %v504
    %v794 = vunpack.c.l.b16 %v505
    %v795 = vunpack.c.h.b16 %v505
    %v796 = vunpack.c.l.b16 %v506
    %v797 = vunpack.c.h.b16 %v506
    %v798 = vunpack.c.l.b16 %v507
    %v799 = vunpack.c.h.b16 %v507
    %v800 = vunpack.c.l.b16 %v508
    %v801 = vunpack.c.h.b16 %v508
    %v802 = vunpack.c.l.b16 %v509
    %v803 = vunpack.c.h.b16 %v509
    %v804 = vunpack.c.l.b16 %v510
    %v805 = vunpack.c.h.b16 %v510
    %v806 = vunpack.c.l.b16 %v511
    %v807 = vunpack.c.h.b16 %v511
    %v808 = vunpack.c.l.b16 %v512
    %v809 = vunpack.c.h.b16 %v512
    %v810 = vunpack.c.l.b16 %v513
    %v811 = vunpack.c.h.b16 %v513
    %v812 = vunpack.c.l.b16 %v514
    %v813 = vunpack.c.h.b16 %v514
    %v814 = vunpack.c.l.b16 %v515
    %v815 = vunpack.c.h.b16 %v515
    %v816 = vunpack.c.l.b16 %v516
    %v817 = vunpack.c.h.b16 %v516
    %v818 = vunpack.c.l.b16 %v517
    %v819 = vunpack.c.h.b16 %v517
    %v820 = vunpack.c.l.b16 %v518
    %v821 = vunpack.c.h.b16 %v518
    %v822 = vunpack.c.l.b16 %v519
    %v823 = vunpack.c.h.b16 %v519
    %v824 = vunpack.c.l.b16 %v520
    %v825 = vunpack.c.h.b16 %v520
    %v826 = vunpack.c.l.b16 %v521
    %v827 = vunpack.c.h.b16 %v521
    %v828 = vunpack.c.l.b16 %v522
    %v829 = vunpack.c.h.b16 %v522
    %v830 = vunpack.c.l.b16 %v523
    %v831 = vunpack.c.h.b16 %v523
    %v832 = vunpack.c.l.b16 %v524
    %v833 = vunpack.c.h.b16 %v524
    %v834 = vunpack.c.l.b16 %v525
    %v835 = vunpack.c.h.b16 %v525
    %v836 = vunpack.c.l.b16 %v526
    %v837 = vunpack.c.h.b16 %v526
    %v838 = vunpack.c.l.b16 %v527
    %v839 = vunpack.c.h.b16 %v527
    %v840 = vunpack.c.l.b16 %v528
    %v841 = vunpack.c.h.b16 %v528
    %v842 = vunpack.c.l.b16 %v529
    %v843 = vunpack.c.h.b16 %v529
    %v844 = vunpack.c.l.b16 %v530
    %v845 = vunpack.c.h.b16 %v530
    %v846 = vunpack.c.l.b16 %v531
    %v847 = vunpack.c.h.b16 %v531
    %v848 = vunpack.c.l.b16 %v532
    %v849 = vunpack.c.h.b16 %v532
    %v850 = vunpack.c.l.b16 %v533
    %v851 = vunpack.c.h.b16 %v533
    %v852 = vunpack.c.l.b16 %v534
    %v853 = vunpack.c.h.b16 %v534
    %v854 = vunpack.c.l.b16 %v535
    %v855 = vunpack.c.h.b16 %v535
    %v856 = vunpack.c.l.b16 %v536
    %v857 = vunpack.c.h.b16 %v536
    %v858 = vunpack.c.l.b16 %v537
    %v859 = vunpack.c.h.b16 %v537
    %v860 = vunpack.c.l.b16 %v538
    %v861 = vunpack.c.h.b16 %v538
    %v862 = vunpack.c.l.b16 %v539
    %v863 = vunpack.c.h.b16 %v539
    %v864 = vunpack.c.l.b16 %v540
    %v865 = vunpack.c.h.b16 %v540
    %v866 = vunpack.c.l.b16 %v541
    %v867 = vunpack.c.h.b16 %v541
    %v868 = vunpack.c.l.b16 %v542
    %v869 = vunpack.c.h.b16 %v542
    %v870 = vunpack.c.l.b16 %v543
    %v871 = vunpack.c.h.b16 %v543
    %v872 = vunpack.c.l.b16 %v544
    %v873 = vunpack.c.h.b16 %v544
    %v874 = vunpack.c.l.b16 %v545
    %v875 = vunpack.c.h.b16 %v545
    %v876 = vunpack.c.l.b16 %v546
    %v877 = vunpack.c.h.b16 %v546
    %v878 = vunpack.c.l.b16 %v547
    %v879 = vunpack.c.h.b16 %v547
    %v880 = vunpack.c.l.b16 %v548
    %v881 = vunpack.c.h.b16 %v548
    %v882 = vunpack.c.l.b16 %v549
    %v883 = vunpack.c.h.b16 %v549
    %v884 = vunpack.c.l.b16 %v550
    %v885 = vunpack.c.h.b16 %v550
    %v886 = vunpack.c.l.b16 %v551
    %v887 = vunpack.c.h.b16 %v551
    %v888 = vunpack.c.l.b16 %v552
    %v889 = vunpack.c.h.b16 %v552
    %v890 = vunpack.c.l.b16 %v553
    %v891 = vunpack.c.h.b16 %v553
    %v892 = vunpack.c.l.b16 %v554
    %v893 = vunpack.c.h.b16 %v554
    %v894 = vunpack.c.l.b16 %v555
    %v895 = vunpack.c.h.b16 %v555
    %v896 = vunpack.c.l.b16 %v556
    %v897 = vunpack.c.h.b16 %v556
    %v898 = vunpack.c.l.b16 %v557
    %v899 = vunpack.c.h.b16 %v557
    %v900 = vunpack.c.l.b16 %v558
    %v901 = vunpack.c.h.b16 %v558
    %v902 = vunpack.c.l.b16 %v559
    %v903 = vunpack.c.h.b16 %v559
    %v904 = vunpack.c.l.b16 %v560
    %v905 = vunpack.c.h.b16 %v560
    %v906 = vunpack.c.l.b16 %v561
    %v907 = vunpack.c.h.b16 %v561
    %v908 = vunpack.c.l.b16 %v562
    %v909 = vunpack.c.h.b16 %v562
    %v910 = vunpack.c.l.b16 %v563
    %v911 = vunpack.c.h.b16 %v563
    %v912 = vunpack.c.l.b16 %v564
    %v913 = vunpack.c.h.b16 %v564
    %v914 = vunpack.c.l.b16 %v565
    %v915 = vunpack.c.h.b16 %v565
    %v916 = vunpack.c.l.b16 %v566
    %v917 = vunpack.c.h.b16 %v566
    %v918 = vunpack.c.l.b16 %v567
    %v919 = vunpack.c.h.b16 %v567
    %v920 = vunpack.c.l.b16 %v568
    %v921 = vunpack.c.h.b16 %v568
    %v922 = vunpack.c.l.b16 %v569
    %v923 = vunpack.c.h.b16 %v569
    %v924 = vunpack.c.l.b16 %v570
    %v925 = vunpack.c.h.b16 %v570
    %v926 = vunpack.c.l.b16 %v571
    %v927 = vunpack.c.h.b16 %v571
    %v928 = vunpack.c.l.b16 %v572
    %v929 = vunpack.c.h.b16 %v572
    %v930 = vunpack.c.l.b16 %v573
    %v931 = vunpack.c.h.b16 %v573
    %v932 = vunpack.c.l.b16 %v574
    %v933 = vunpack.c.h.b16 %v574
    %v934 = vunpack.c.l.b16 %v575
    %v935 = vunpack.c.h.b16 %v575
    %v936 = vunpack.c.l.b16 %v576
    %v937 = vunpack.c.h.b16 %v576
    %v938 = vunpack.c.l.b16 %v577
    %v939 = vunpack.c.h.b16 %v577
    %v940 = vunpack.c.l.b16 %v578
    %v941 = vunpack.c.h.b16 %v578
    %v942 = vunpack.c.l.b16 %v579
    %v943 = vunpack.c.h.b16 %v579
    %v944 = vunpack.c.l.b16 %v580
    %v945 = vunpack.c.h.b16 %v580
    %v946 = vunpack.c.l.b16 %v581
    %v947 = vunpack.c.h.b16 %v581
    %v948 = vunpack.c.l.b16 %v582
    %v949 = vunpack.c.h.b16 %v582
    %v950 = vunpack.c.l.b16 %v583
    %v951 = vunpack.c.h.b16 %v583
    %v952 = vunpack.c.l.b16 %v584
    %v953 = vunpack.c.h.b16 %v584
    %v954 = vunpack.c.l.b16 %v585
    %v955 = vunpack.c.h.b16 %v585
    %v956 = vunpack.c.l.b16 %v586
    %v957 = vunpack.c.h.b16 %v586
    %v958 = vunpack.c.l.b16 %v587
    %v959 = vunpack.c.h.b16 %v587
    %v960 = vunpack.c.l.b16 %v588
    %v961 = vunpack.c.h.b16 %v588
    %v962 = vunpack.c.l.b16 %v589
    %v963 = vunpack.c.h.b16 %v589
    %v964 = vunpack.c.l.b16 %v590
    %v965 = vunpack.c.h.b16 %v590
    %v966 = vunpack.c.l.b16 %v591
    %v967 = vunpack.c.h.b16 %v591
    %v968 = vunpack.c.l.b16 %v592
    %v969 = vunpack.c.h.b16 %v592
    %v970 = vunpack.c.l.b16 %v593
    %v971 = vunpack.c.h.b16 %v593
    %v972 = vunpack.c.l.b16 %v594
    %v973 = vunpack.c.h.b16 %v594
    %v974 = vunpack.c.l.b16 %v595
    %v975 = vunpack.c.h.b16 %v595
    %v976 = vunpack.c.l.b16 %v596
    %v977 = vunpack.c.h.b16 %v596
    %v978 = vunpack.c.l.b16 %v597
    %v979 = vunpack.c.h.b16 %v597
    %v980 = vunpack.c.l.b16 %v598
    %v981 = vunpack.c.h.b16 %v598
    %v982 = vunpack.c.l.b16 %v599
    %v983 = vunpack.c.h.b16 %v599
    %v984 = vpack.c.b16 %v732, %v728
    %v985 = vpack.c.b16 %v733, %v729
    %v986 = vpack.c.b16 %v734, %v730
    %v987 = vpack.c.b16 %v735, %v731
    %v988 = vpack.c.b16 %v740, %v736
    %v989 = vpack.c.b16 %v741, %v737
    %v990 = vpack.c.b16 %v742, %v738
    %v991 = vpack.c.b16 %v743, %v739
    %v992 = vpack.c.b16 %v748, %v744
    %v993 = vpack.c.b16 %v749, %v745
    %v994 = vpack.c.b16 %v750, %v746
    %v995 = vpack.c.b16 %v751, %v747
    %v996 = vpack.c.b16 %v756, %v752
    %v997 = vpack.c.b16 %v757, %v753
    %v998 = vpack.c.b16 %v758, %v754
    %v999 = vpack.c.b16 %v759, %v755
    %v1000 = vpack.c.b16 %v764, %v760
    %v1001 = vpack.c.b16 %v765, %v761
    %v1002 = vpack.c.b16 %v766, %v762
    %v1003 = vpack.c.b16 %v767, %v763
    %v1004 = vpack.c.b16 %v772, %v768
    %v1005 = vpack.c.b16 %v773, %v769
    %v1006 = vpack.c.b16 %v774, %v770
    %v1007 = vpack.c.b16 %v775, %v771
    %v1008 = vpack.c.b16 %v780, %v776
    %v1009 = vpack.c.b16 %v781, %v777
    %v1010 = vpack.c.b16 %v782, %v778
    %v1011 = vpack.c.b16 %v783, %v779
    %v1012 = vpack.c.b16 %v788, %v784
    %v1013 = vpack.c.b16 %v789, %v785
    %v1014 = vpack.c.b16 %v790, %v786
    %v1015 = vpack.c.b16 %v791, %v787
    %v1016 = vpack.c.b16 %v796, %v792
    %v1017 = vpack.c.b16 %v797, %v793
    %v1018 = vpack.c.b16 %v798, %v794
    %v1019 = vpack.c.b16 %v799, %v795
    %v1020 = vpack.c.b16 %v804, %v800
    %v1021 = vpack.c.b16 %v805, %v801
    %v1022 = vpack.c.b16 %v806, %v802
    %v1023 = vpack.c.b16 %v807, %v803
    %v1024 = vpack.c.b16 %v812, %v808
    %v1025 = vpack.c.b16 %v813, %v809
    %v1026 = vpack.c.b16 %v814, %v810
    %v1027 = vpack.c.b16 %v815, %v811
    %v1028 = vpack.c.b16 %v820, %v816
    %v1029 = vpack.c.b16 %v821, %v817
    %v1030 = vpack.c.b16 %v822, %v818
    %v1031 = vpack.c.b16 %v823, %v819
    %v1032 = vpack.c.b16 %v828, %v824
    %v1033 = vpack.c.b16 %v829, %v825
    %v1034 = vpack.c.b16 %v830, %v826
    %v1035 = vpack.c.b16 %v831, %v827
    %v1036 = vpack.c.b16 %v836, %v832
    %v1037 = vpack.c.b16 %v837, %v833
    %v1038 = vpack.c.b16 %v838, %v834
    %v1039 = vpack.c.b16 %v839, %v835
    %v1040 = vpack.c.b16 %v844, %v840
    %v1041 = vpack.c.b16 %v845, %v841
    %v1042 = vpack.c.b16 %v846, %v842
    %v1043 = vpack.c.b16 %v847, %v843
    %v1044 = vpack.c.b16 %v852, %v848
    %v1045 = vpack.c.b16 %v853, %v849
    %v1046 = vpack.c.b16 %v854, %v850
    %v1047 = vpack.c.b16 %v855, %v851
    %v1048 = vpack.c.b16 %v860, %v856
    %v1049 = vpack.c.b16 %v861, %v857
    %v1050 = vpack.c.b16 %v862, %v858
    %v1051 = vpack.c.b16 %v863, %v859
    %v1052 = vpack.c.b16 %v868, %v864
    %v1053 = vpack.c.b16 %v869, %v865
    %v1054 = vpack.c.b16 %v870, %v866
    %v1055 = vpack.c.b16 %v871, %v867
    %v1056 = vpack.c.b16 %v876, %v872
    %v1057 = vpack.c.b16 %v877, %v873
    %v1058 = vpack.c.b16 %v878, %v874
    %v1059 = vpack.c.b16 %v879, %v875
    %v1060 = vpack.c.b16 %v884, %v880
    %v1061 = vpack.c.b16 %v885, %v881
    %v1062 = vpack.c.b16 %v886, %v882
    %v1063 = vpack.c.b16 %v887, %v883
    %v1064 = vpack.c.b16 %v892, %v888
    %v1065 = vpack.c.b16 %v893, %v889
    %v1066 = vpack.c.b16 %v894, %v890
    %v1067 = vpack.c.b16 %v895, %v891
    %v1068 = vpack.c.b16 %v900, %v896
    %v1069 = vpack.c.b16 %v901, %v897
    %v1070 = vpack.c.b16 %v902, %v898
    %v1071 = vpack.c.b16 %v903, %v899
    %v1072 = vpack.c.b16 %v908, %v904
    %v1073 = vpack.c.b16 %v909, %v905
    %v1074 = vpack.c.b16 %v910, %v906
    %v1075 = vpack.c.b16 %v911, %v907
    %v1076 = vpack.c.b16 %v916, %v912
    %v1077 = vpack.c.b16 %v917, %v913
    %v1078 = vpack.c.b16 %v918, %v914
    %v1079 = vpack.c.b16 %v919, %v915
    %v1080 = vpack.c.b16 %v924, %v920
    %v1081 = vpack.c.b16 %v925, %v921
    %v1082 = vpack.c.b16 %v926, %v922
    %v1083 = vpack.c.b16 %v927, %v923
    %v1084 = vpack.c.b16 %v932, %v928
    %v1085 = vpack.c.b16 %v933, %v929
    %v1086 = vpack.c.b16 %v934, %v930
    %v1087 = vpack.c.b16 %v935, %v931
    %v1088 = vpack.c.b16 %v940, %v936
    %v1089 = vpack.c.b16 %v941, %v937
    %v1090 = vpack.c.b16 %v942, %v938
    %v1091 = vpack.c.b16 %v943, %v939
    %v1092 = vpack.c.b16 %v948, %v944
    %v1093 = vpack.c.b16 %v949, %v945
    %v1094 = vpack.c.b16 %v950, %v946
    %v1095 = vpack.c.b16 %v951, %v947
    %v1096 = vpack.c.b16 %v956, %v952
    %v1097 = vpack.c.b16 %v957, %v953
    %v1098 = vpack.c.b16 %v958, %v954
    %v1099 = vpack.c.b16 %v959, %v955
    %v1100 = vpack.c.b16 %v964, %v960
    %v1101 = vpack.c.b16 %v965, %v961
    %v1102 = vpack.c.b16 %v966, %v962
    %v1103 = vpack.c.b16 %v967, %v963
    %v1104 = vpack.c.b16 %v972, %v968
    %v1105 = vpack.c.b16 %v973, %v969
    %v1106 = vpack.c.b16 %v974, %v970
    %v1107 = vpack.c.b16 %v975, %v971
    %v1108 = vpack.c.b16 %v980, %v976
    %v1109 = vpack.c.b16 %v981, %v977
    %v1110 = vpack.c.b16 %v982, %v978
    %v1111 = vpack.c.b16 %v983, %v979
    %1240 = vmatprep.subr.bf16.mxu0 %v985
    %1241 = vmatpush1.bf16.msra.mxu0 %v984
    %1242 = vmatprep.subr.bf16.mxu0 %v989
    %1243 = vmatpush1.bf16.msra.mxu0 %v988
    %1244 = vmatprep.subr.bf16.mxu0 %v993
    %1245 = vmatpush1.bf16.msra.mxu0 %v992
    %1246 = vmatprep.subr.bf16.mxu0 %v997
    %1247 = vmatpush1.bf16.msra.mxu0 %v996
    %1248 = vmatprep.subr.bf16.mxu0 %v1001
    %1249 = vmatpush1.bf16.msra.mxu0 %v1000
    %1250 = vmatprep.subr.bf16.mxu0 %v1005
    %1251 = vmatpush1.bf16.msra.mxu0 %v1004
    %1252 = vmatprep.subr.bf16.mxu0 %v1009
    %1253 = vmatpush1.bf16.msra.mxu0 %v1008
    %1254 = vmatprep.subr.bf16.mxu0 %v1013
    %1255 = vmatpush1.bf16.msra.mxu0 %v1012
    %1256 = vmatprep.subr.bf16.mxu0 %v1017
    %1257 = vmatpush1.bf16.msra.mxu0 %v1016
    %1258 = vmatprep.subr.bf16.mxu0 %v1021
    %1259 = vmatpush1.bf16.msra.mxu0 %v1020
    %1260 = vmatprep.subr.bf16.mxu0 %v1025
    %1261 = vmatpush1.bf16.msra.mxu0 %v1024
    %1262 = vmatprep.subr.bf16.mxu0 %v1029
    %1263 = vmatpush1.bf16.msra.mxu0 %v1028
    %1264 = vmatprep.subr.bf16.mxu0 %v1033
    %1265 = vmatpush1.bf16.msra.mxu0 %v1032
    %1266 = vmatprep.subr.bf16.mxu0 %v1037
    %1267 = vmatpush1.bf16.msra.mxu0 %v1036
    %1268 = vmatprep.subr.bf16.mxu0 %v1041
    %1269 = vmatpush1.bf16.msra.mxu0 %v1040
    %1270 = vmatprep.subr.bf16.mxu0 %v1045
    %1271 = vmatpush1.bf16.msra.mxu0 %v1044
    %1272 = vmatprep.mubr.bf16.mxu0 %v469
    %1273 = vmatmul.mubr.bf16.gmra.mrb[0].mxu0 %v468
    %v1274 = vpop.f32.mrb[0].mxu0
    %v1275 = vadd.f32 0.0, %v1274
    %v1276 = vpop.f32.mrb[0].mxu0
    %v1277 = vadd.f32 0.0, %v1276
    %v1278 = vpop.f32.mrb[0].mxu0
    %v1279 = vadd.f32 0.0, %v1278
    %v1280 = vpop.f32.mrb[0].mxu0
    %v1281 = vadd.f32 0.0, %v1280
    %1282 = vdwg.mxu0
    %1283 = vmatprep.subr.bf16.mxu0 %v1049
    %1284 = vmatpush1.bf16.msra.mxu0 %v1048
    %1285 = vmatprep.subr.bf16.mxu0 %v1053
    %1286 = vmatpush1.bf16.msra.mxu0 %v1052
    %1287 = vmatprep.subr.bf16.mxu0 %v1057
    %1288 = vmatpush1.bf16.msra.mxu0 %v1056
    %1289 = vmatprep.subr.bf16.mxu0 %v1061
    %1290 = vmatpush1.bf16.msra.mxu0 %v1060
    %1291 = vmatprep.subr.bf16.mxu0 %v1065
    %1292 = vmatpush1.bf16.msra.mxu0 %v1064
    %1293 = vmatprep.subr.bf16.mxu0 %v1069
    %1294 = vmatpush1.bf16.msra.mxu0 %v1068
    %1295 = vmatprep.subr.bf16.mxu0 %v1073
    %1296 = vmatpush1.bf16.msra.mxu0 %v1072
    %1297 = vmatprep.subr.bf16.mxu0 %v1077
    %1298 = vmatpush1.bf16.msra.mxu0 %v1076
    %1299 = vmatprep.subr.bf16.mxu0 %v1081
    %1300 = vmatpush1.bf16.msra.mxu0 %v1080
    %1301 = vmatprep.subr.bf16.mxu0 %v1085
    %1302 = vmatpush1.bf16.msra.mxu0 %v1084
    %1303 = vmatprep.subr.bf16.mxu0 %v1089
    %1304 = vmatpush1.bf16.msra.mxu0 %v1088
    %1305 = vmatprep.subr.bf16.mxu0 %v1093
    %1306 = vmatpush1.bf16.msra.mxu0 %v1092
    %1307 = vmatprep.subr.bf16.mxu0 %v1097
    %1308 = vmatpush1.bf16.msra.mxu0 %v1096
    %1309 = vmatprep.subr.bf16.mxu0 %v1101
    %1310 = vmatpush1.bf16.msra.mxu0 %v1100
    %1311 = vmatprep.subr.bf16.mxu0 %v1105
    %1312 = vmatpush1.bf16.msra.mxu0 %v1104
    %1313 = vmatprep.subr.bf16.mxu0 %v1109
    %1314 = vmatpush1.bf16.msra.mxu0 %v1108
    %1315 = vmatprep.mubr.bf16.mxu0 %v471
    %1316 = vmatmul.mubr.bf16.gmra.mrb[0].mxu0 %v470
    %v1317 = vpop.f32.mrb[0].mxu0
    %v1318 = vadd.f32 %v1275, %v1317
    %v1319 = vpop.f32.mrb[0].mxu0
    %v1320 = vadd.f32 %v1277, %v1319
    %v1321 = vpop.f32.mrb[0].mxu0
    %v1322 = vadd.f32 %v1279, %v1321
    %v1323 = vpop.f32.mrb[0].mxu0
    %v1324 = vadd.f32 %v1281, %v1323
    %1325 = vdwg.mxu0
    %1326 = vmatprep.subr.bf16.mxu0 %v987
    %1327 = vmatpush1.bf16.msra.mxu0 %v986
    %1328 = vmatprep.subr.bf16.mxu0 %v991
    %1329 = vmatpush1.bf16.msra.mxu0 %v990
    %1330 = vmatprep.subr.bf16.mxu0 %v995
    %1331 = vmatpush1.bf16.msra.mxu0 %v994
    %1332 = vmatprep.subr.bf16.mxu0 %v999
    %1333 = vmatpush1.bf16.msra.mxu0 %v998
    %1334 = vmatprep.subr.bf16.mxu0 %v1003
    %1335 = vmatpush1.bf16.msra.mxu0 %v1002
    %1336 = vmatprep.subr.bf16.mxu0 %v1007
    %1337 = vmatpush1.bf16.msra.mxu0 %v1006
    %1338 = vmatprep.subr.bf16.mxu0 %v1011
    %1339 = vmatpush1.bf16.msra.mxu0 %v1010
    %1340 = vmatprep.subr.bf16.mxu0 %v1015
    %1341 = vmatpush1.bf16.msra.mxu0 %v1014
    %1342 = vmatprep.subr.bf16.mxu0 %v1019
    %1343 = vmatpush1.bf16.msra.mxu0 %v1018
    %1344 = vmatprep.subr.bf16.mxu0 %v1023
    %1345 = vmatpush1.bf16.msra.mxu0 %v1022
    %1346 = vmatprep.subr.bf16.mxu0 %v1027
    %1347 = vmatpush1.bf16.msra.mxu0 %v1026
    %1348 = vmatprep.subr.bf16.mxu0 %v1031
    %1349 = vmatpush1.bf16.msra.mxu0 %v1030
    %1350 = vmatprep.subr.bf16.mxu0 %v1035
    %1351 = vmatpush1.bf16.msra.mxu0 %v1034
    %1352 = vmatprep.subr.bf16.mxu0 %v1039
    %1353 = vmatpush1.bf16.msra.mxu0 %v1038
    %1354 = vmatprep.subr.bf16.mxu0 %v1043
    %1355 = vmatpush1.bf16.msra.mxu0 %v1042
    %1356 = vmatprep.subr.bf16.mxu0 %v1047
    %1357 = vmatpush1.bf16.msra.mxu0 %v1046
    %1358 = vmatprep.mubr.bf16.mxu0 %v469
    %1359 = vmatmul.mubr.bf16.gmra.mrb[0].mxu0 %v468
    %v1360 = vpop.f32.mrb[0].mxu0
    %v1361 = vadd.f32 0.0, %v1360
    %v1362 = vpop.f32.mrb[0].mxu0
    %v1363 = vadd.f32 0.0, %v1362
    %v1364 = vpop.f32.mrb[0].mxu0
    %v1365 = vadd.f32 0.0, %v1364
    %v1366 = vpop.f32.mrb[0].mxu0
    %v1367 = vadd.f32 0.0, %v1366
    %1368 = vdwg.mxu0
    %1369 = vmatprep.subr.bf16.mxu0 %v1051
    %1370 = vmatpush1.bf16.msra.mxu0 %v1050
    %1371 = vmatprep.subr.bf16.mxu0 %v1055
    %1372 = vmatpush1.bf16.msra.mxu0 %v1054
    %1373 = vmatprep.subr.bf16.mxu0 %v1059
    %1374 = vmatpush1.bf16.msra.mxu0 %v1058
    %1375 = vmatprep.subr.bf16.mxu0 %v1063
    %1376 = vmatpush1.bf16.msra.mxu0 %v1062
    %1377 = vmatprep.subr.bf16.mxu0 %v1067
    %1378 = vmatpush1.bf16.msra.mxu0 %v1066
    %1379 = vmatprep.subr.bf16.mxu0 %v1071
    %1380 = vmatpush1.bf16.msra.mxu0 %v1070
    %1381 = vmatprep.subr.bf16.mxu0 %v1075
    %1382 = vmatpush1.bf16.msra.mxu0 %v1074
    %1383 = vmatprep.subr.bf16.mxu0 %v1079
    %1384 = vmatpush1.bf16.msra.mxu0 %v1078
    %1385 = vmatprep.subr.bf16.mxu0 %v1083
    %1386 = vmatpush1.bf16.msra.mxu0 %v1082
    %1387 = vmatprep.subr.bf16.mxu0 %v1087
    %1388 = vmatpush1.bf16.msra.mxu0 %v1086
    %1389 = vmatprep.subr.bf16.mxu0 %v1091
    %1390 = vmatpush1.bf16.msra.mxu0 %v1090
    %1391 = vmatprep.subr.bf16.mxu0 %v1095
    %1392 = vmatpush1.bf16.msra.mxu0 %v1094
    %1393 = vmatprep.subr.bf16.mxu0 %v1099
    %1394 = vmatpush1.bf16.msra.mxu0 %v1098
    %1395 = vmatprep.subr.bf16.mxu0 %v1103
    %1396 = vmatpush1.bf16.msra.mxu0 %v1102
    %1397 = vmatprep.subr.bf16.mxu0 %v1107
    %1398 = vmatpush1.bf16.msra.mxu0 %v1106
    %1399 = vmatprep.subr.bf16.mxu0 %v1111
    %1400 = vmatpush1.bf16.msra.mxu0 %v1110
    %1401 = vmatprep.mubr.bf16.mxu0 %v471
    %1402 = vmatmul.mubr.bf16.gmra.mrb[0].mxu0 %v470
    %v1403 = vpop.f32.mrb[0].mxu0
    %v1404 = vadd.f32 %v1361, %v1403
    %v1405 = vpop.f32.mrb[0].mxu0
    %v1406 = vadd.f32 %v1363, %v1405
    %v1407 = vpop.f32.mrb[0].mxu0
    %v1408 = vadd.f32 %v1365, %v1407
    %v1409 = vpop.f32.mrb[0].mxu0
    %v1410 = vadd.f32 %v1367, %v1409
    %1411 = vdwg.mxu0
    %v1412 = vld [vmem:[%s5] sm:$0xf]
    %v1414 = vlaneseq
    %v1415 = vshrl.u32 %v1414, 7
    %v1416 = vsub.s32 0, %v1415
    %v1417 = vrot.slane %v1412, %v1416
    %v1418 = vlaneseq
    %v1419 = vshrl.u32 %v1418, 7
    %v1420 = vsub.s32 1, %v1419
    %v1421 = vrot.slane %v1412, %v1420
    %v1422 = vlaneseq
    %v1423 = vshrl.u32 %v1422, 7
    %v1424 = vsub.s32 2, %v1423
    %v1425 = vrot.slane %v1412, %v1424
    %v1426 = vlaneseq
    %v1427 = vshrl.u32 %v1426, 7
    %v1428 = vsub.s32 3, %v1427
    %v1429 = vrot.slane %v1412, %v1428
    %v1434 = vmul.f32 %v1318, %v1417
    %v1435 = vmul.f32 %v1320, %v1421
    %v1436 = vmul.f32 %v1404, %v1425
    %v1437 = vmul.f32 %v1406, %v1429
    %v1438 = vmul.f32 %v1322, %v1417
    %v1439 = vmul.f32 %v1324, %v1421
    %v1440 = vmul.f32 %v1408, %v1425
    %v1441 = vmul.f32 %v1410, %v1429
    %v1442 = vld [vmem:[%s6] sm:$0xf]
    %v1444 = vlaneseq
    %v1445 = vshrl.u32 %v1444, 7
    %v1446 = vsub.s32 0, %v1445
    %v1447 = vrot.slane %v1442, %v1446
    %v1448 = vlaneseq
    %v1449 = vshrl.u32 %v1448, 7
    %v1450 = vsub.s32 1, %v1449
    %v1451 = vrot.slane %v1442, %v1450
    %v1452 = vlaneseq
    %v1453 = vshrl.u32 %v1452, 7
    %v1454 = vsub.s32 2, %v1453
    %v1455 = vrot.slane %v1442, %v1454
    %v1456 = vlaneseq
    %v1457 = vshrl.u32 %v1456, 7
    %v1458 = vsub.s32 3, %v1457
    %v1459 = vrot.slane %v1442, %v1458
    %v1464 = vadd.f32 %v1434, %v1447
    %v1465 = vadd.f32 %v1435, %v1451
    %v1466 = vadd.f32 %v1436, %v1455
    %v1467 = vadd.f32 %v1437, %v1459
    %v1468 = vadd.f32 %v1438, %v1447
    %v1469 = vadd.f32 %v1439, %v1451
    %v1470 = vadd.f32 %v1440, %v1455
    %v1471 = vadd.f32 %v1441, %v1459
    %v1472 = vmax.f32 %v1464, 0.0
    %v1473 = vmax.f32 %v1465, 0.0
    %v1474 = vmax.f32 %v1466, 0.0
    %v1475 = vmax.f32 %v1467, 0.0
    %v1476 = vmax.f32 %v1468, 0.0
    %v1477 = vmax.f32 %v1469, 0.0
    %v1478 = vmax.f32 %v1470, 0.0
    %v1479 = vmax.f32 %v1471, 0.0
    %v1480 = vpack.c.bf16 %v1476, %v1472
    %v1481 = vpack.c.bf16 %v1477, %v1473
    %v1482 = vpack.c.bf16 %v1478, %v1474
    %v1483 = vpack.c.bf16 %v1479, %v1475
    %v1484 = vld [vmem:[#allocation8] sm:$0xff]
    %v1485 = vld [vmem:[#allocation8 + $0x8] sm:$0xff]
    %v1486 = vld [vmem:[#allocation8 + $0x10] sm:$0xff]
    %v1487 = vld [vmem:[#allocation8 + $0x18] sm:$0xff]
    %v1488 = vld [vmem:[#allocation8 + $0x20] sm:$0xff]
    %v1489 = vld [vmem:[#allocation8 + $0x28] sm:$0xff]
    %v1490 = vld [vmem:[#allocation8 + $0x30] sm:$0xff]
    %v1491 = vld [vmem:[#allocation8 + $0x38] sm:$0xff]
    %v1492 = vld [vmem:[#allocation8 + $0x40] sm:$0xff]
    %v1493 = vld [vmem:[#allocation8 + $0x48] sm:$0xff]
    %v1494 = vld [vmem:[#allocation8 + $0x50] sm:$0xff]
    %v1495 = vld [vmem:[#allocation8 + $0x58] sm:$0xff]
    %v1496 = vld [vmem:[#allocation8 + $0x60] sm:$0xff]
    %v1497 = vld [vmem:[#allocation8 + $0x68] sm:$0xff]
    %v1498 = vld [vmem:[#allocation8 + $0x70] sm:$0xff]
    %v1499 = vld [vmem:[#allocation8 + $0x78] sm:$0xff]
    %v1500 = vld [vmem:[#allocation8 + $0x80] sm:$0xff]
    %v1501 = vld [vmem:[#allocation8 + $0x88] sm:$0xff]
    %v1502 = vld [vmem:[#allocation8 + $0x90] sm:$0xff]
    %v1503 = vld [vmem:[#allocation8 + $0x98] sm:$0xff]
    %v1504 = vld [vmem:[#allocation8 + $0xa0] sm:$0xff]
    %v1505 = vld [vmem:[#allocation8 + $0xa8] sm:$0xff]
    %v1506 = vld [vmem:[#allocation8 + $0xb0] sm:$0xff]
    %v1507 = vld [vmem:[#allocation8 + $0xb8] sm:$0xff]
    %v1508 = vld [vmem:[#allocation8 + $0xc0] sm:$0xff]
    %v1509 = vld [vmem:[#allocation8 + $0xc8] sm:$0xff]
    %v1510 = vld [vmem:[#allocation8 + $0xd0] sm:$0xff]
    %v1511 = vld [vmem:[#allocation8 + $0xd8] sm:$0xff]
    %v1512 = vld [vmem:[#allocation8 + $0xe0] sm:$0xff]
    %v1513 = vld [vmem:[#allocation8 + $0xe8] sm:$0xff]
    %v1514 = vld [vmem:[#allocation8 + $0xf0] sm:$0xff]
    %v1515 = vld [vmem:[#allocation8 + $0xf8] sm:$0xff]
    %v1516 = vld [vmem:[#allocation8 + $0x100] sm:$0xff]
    %v1517 = vld [vmem:[#allocation8 + $0x108] sm:$0xff]
    %v1518 = vld [vmem:[#allocation8 + $0x110] sm:$0xff]
    %v1519 = vld [vmem:[#allocation8 + $0x118] sm:$0xff]
    %v1520 = vld [vmem:[#allocation8 + $0x120] sm:$0xff]
    %v1521 = vld [vmem:[#allocation8 + $0x128] sm:$0xff]
    %v1522 = vld [vmem:[#allocation8 + $0x130] sm:$0xff]
    %v1523 = vld [vmem:[#allocation8 + $0x138] sm:$0xff]
    %v1524 = vld [vmem:[#allocation8 + $0x140] sm:$0xff]
    %v1525 = vld [vmem:[#allocation8 + $0x148] sm:$0xff]
    %v1526 = vld [vmem:[#allocation8 + $0x150] sm:$0xff]
    %v1527 = vld [vmem:[#allocation8 + $0x158] sm:$0xff]
    %v1528 = vld [vmem:[#allocation8 + $0x160] sm:$0xff]
    %v1529 = vld [vmem:[#allocation8 + $0x168] sm:$0xff]
    %v1530 = vld [vmem:[#allocation8 + $0x170] sm:$0xff]
    %v1531 = vld [vmem:[#allocation8 + $0x178] sm:$0xff]
    %v1532 = vld [vmem:[#allocation8 + $0x180] sm:$0xff]
    %v1533 = vld [vmem:[#allocation8 + $0x188] sm:$0xff]
    %v1534 = vld [vmem:[#allocation8 + $0x190] sm:$0xff]
    %v1535 = vld [vmem:[#allocation8 + $0x198] sm:$0xff]
    %v1536 = vld [vmem:[#allocation8 + $0x1a0] sm:$0xff]
    %v1537 = vld [vmem:[#allocation8 + $0x1a8] sm:$0xff]
    %v1538 = vld [vmem:[#allocation8 + $0x1b0] sm:$0xff]
    %v1539 = vld [vmem:[#allocation8 + $0x1b8] sm:$0xff]
    %v1540 = vld [vmem:[#allocation8 + $0x1c0] sm:$0xff]
    %v1541 = vld [vmem:[#allocation8 + $0x1c8] sm:$0xff]
    %v1542 = vld [vmem:[#allocation8 + $0x1d0] sm:$0xff]
    %v1543 = vld [vmem:[#allocation8 + $0x1d8] sm:$0xff]
    %v1544 = vld [vmem:[#allocation8 + $0x1e0] sm:$0xff]
    %v1545 = vld [vmem:[#allocation8 + $0x1e8] sm:$0xff]
    %v1546 = vld [vmem:[#allocation8 + $0x1f0] sm:$0xff]
    %v1547 = vld [vmem:[#allocation8 + $0x1f8] sm:$0xff]
    %v1548 = vld [vmem:[#allocation8 + $0x200] sm:$0xff]
    %v1549 = vld [vmem:[#allocation8 + $0x208] sm:$0xff]
    %v1550 = vld [vmem:[#allocation8 + $0x210] sm:$0xff]
    %v1551 = vld [vmem:[#allocation8 + $0x218] sm:$0xff]
    %v1552 = vld [vmem:[#allocation8 + $0x220] sm:$0xff]
    %v1553 = vld [vmem:[#allocation8 + $0x228] sm:$0xff]
    %v1554 = vld [vmem:[#allocation8 + $0x230] sm:$0xff]
    %v1555 = vld [vmem:[#allocation8 + $0x238] sm:$0xff]
    %v1556 = vld [vmem:[#allocation8 + $0x240] sm:$0xff]
    %v1557 = vld [vmem:[#allocation8 + $0x248] sm:$0xff]
    %v1558 = vld [vmem:[#allocation8 + $0x250] sm:$0xff]
    %v1559 = vld [vmem:[#allocation8 + $0x258] sm:$0xff]
    %v1560 = vld [vmem:[#allocation8 + $0x260] sm:$0xff]
    %v1561 = vld [vmem:[#allocation8 + $0x268] sm:$0xff]
    %v1562 = vld [vmem:[#allocation8 + $0x270] sm:$0xff]
    %v1563 = vld [vmem:[#allocation8 + $0x278] sm:$0xff]
    %v1564 = vld [vmem:[#allocation8 + $0x280] sm:$0xff]
    %v1565 = vld [vmem:[#allocation8 + $0x288] sm:$0xff]
    %v1566 = vld [vmem:[#allocation8 + $0x290] sm:$0xff]
    %v1567 = vld [vmem:[#allocation8 + $0x298] sm:$0xff]
    %v1568 = vld [vmem:[#allocation8 + $0x2a0] sm:$0xff]
    %v1569 = vld [vmem:[#allocation8 + $0x2a8] sm:$0xff]
    %v1570 = vld [vmem:[#allocation8 + $0x2b0] sm:$0xff]
    %v1571 = vld [vmem:[#allocation8 + $0x2b8] sm:$0xff]
    %v1572 = vld [vmem:[#allocation8 + $0x2c0] sm:$0xff]
    %v1573 = vld [vmem:[#allocation8 + $0x2c8] sm:$0xff]
    %v1574 = vld [vmem:[#allocation8 + $0x2d0] sm:$0xff]
    %v1575 = vld [vmem:[#allocation8 + $0x2d8] sm:$0xff]
    %v1576 = vld [vmem:[#allocation8 + $0x2e0] sm:$0xff]
    %v1577 = vld [vmem:[#allocation8 + $0x2e8] sm:$0xff]
    %v1578 = vld [vmem:[#allocation8 + $0x2f0] sm:$0xff]
    %v1579 = vld [vmem:[#allocation8 + $0x2f8] sm:$0xff]
    %v1580 = vld [vmem:[#allocation8 + $0x300] sm:$0xff]
    %v1581 = vld [vmem:[#allocation8 + $0x308] sm:$0xff]
    %v1582 = vld [vmem:[#allocation8 + $0x310] sm:$0xff]
    %v1583 = vld [vmem:[#allocation8 + $0x318] sm:$0xff]
    %v1584 = vld [vmem:[#allocation8 + $0x320] sm:$0xff]
    %v1585 = vld [vmem:[#allocation8 + $0x328] sm:$0xff]
    %v1586 = vld [vmem:[#allocation8 + $0x330] sm:$0xff]
    %v1587 = vld [vmem:[#allocation8 + $0x338] sm:$0xff]
    %v1588 = vld [vmem:[#allocation8 + $0x340] sm:$0xff]
    %v1589 = vld [vmem:[#allocation8 + $0x348] sm:$0xff]
    %v1590 = vld [vmem:[#allocation8 + $0x350] sm:$0xff]
    %v1591 = vld [vmem:[#allocation8 + $0x358] sm:$0xff]
    %v1592 = vld [vmem:[#allocation8 + $0x360] sm:$0xff]
    %v1593 = vld [vmem:[#allocation8 + $0x368] sm:$0xff]
    %v1594 = vld [vmem:[#allocation8 + $0x370] sm:$0xff]
    %v1595 = vld [vmem:[#allocation8 + $0x378] sm:$0xff]
    %v1596 = vld [vmem:[#allocation8 + $0x380] sm:$0xff]
    %v1597 = vld [vmem:[#allocation8 + $0x388] sm:$0xff]
    %v1598 = vld [vmem:[#allocation8 + $0x390] sm:$0xff]
    %v1599 = vld [vmem:[#allocation8 + $0x398] sm:$0xff]
    %v1600 = vld [vmem:[#allocation8 + $0x3a0] sm:$0xff]
    %v1601 = vld [vmem:[#allocation8 + $0x3a8] sm:$0xff]
    %v1602 = vld [vmem:[#allocation8 + $0x3b0] sm:$0xff]
    %v1603 = vld [vmem:[#allocation8 + $0x3b8] sm:$0xff]
    %v1604 = vld [vmem:[#allocation8 + $0x3c0] sm:$0xff]
    %v1605 = vld [vmem:[#allocation8 + $0x3c8] sm:$0xff]
    %v1606 = vld [vmem:[#allocation8 + $0x3d0] sm:$0xff]
    %v1607 = vld [vmem:[#allocation8 + $0x3d8] sm:$0xff]
    %v1608 = vld [vmem:[#allocation8 + $0x3e0] sm:$0xff]
    %v1609 = vld [vmem:[#allocation8 + $0x3e8] sm:$0xff]
    %v1610 = vld [vmem:[#allocation8 + $0x3f0] sm:$0xff]
    %v1611 = vld [vmem:[#allocation8 + $0x3f8] sm:$0xff]
    %v1740 = vunpack.c.l.b16 %v1484
    %v1741 = vunpack.c.h.b16 %v1484
    %v1742 = vunpack.c.l.b16 %v1485
    %v1743 = vunpack.c.h.b16 %v1485
    %v1744 = vunpack.c.l.b16 %v1486
    %v1745 = vunpack.c.h.b16 %v1486
    %v1746 = vunpack.c.l.b16 %v1487
    %v1747 = vunpack.c.h.b16 %v1487
    %v1748 = vunpack.c.l.b16 %v1488
    %v1749 = vunpack.c.h.b16 %v1488
    %v1750 = vunpack.c.l.b16 %v1489
    %v1751 = vunpack.c.h.b16 %v1489
    %v1752 = vunpack.c.l.b16 %v1490
    %v1753 = vunpack.c.h.b16 %v1490
    %v1754 = vunpack.c.l.b16 %v1491
    %v1755 = vunpack.c.h.b16 %v1491
    %v1756 = vunpack.c.l.b16 %v1492
    %v1757 = vunpack.c.h.b16 %v1492
    %v1758 = vunpack.c.l.b16 %v1493
    %v1759 = vunpack.c.h.b16 %v1493
    %v1760 = vunpack.c.l.b16 %v1494
    %v1761 = vunpack.c.h.b16 %v1494
    %v1762 = vunpack.c.l.b16 %v1495
    %v1763 = vunpack.c.h.b16 %v1495
    %v1764 = vunpack.c.l.b16 %v1496
    %v1765 = vunpack.c.h.b16 %v1496
    %v1766 = vunpack.c.l.b16 %v1497
    %v1767 = vunpack.c.h.b16 %v1497
    %v1768 = vunpack.c.l.b16 %v1498
    %v1769 = vunpack.c.h.b16 %v1498
    %v1770 = vunpack.c.l.b16 %v1499
    %v1771 = vunpack.c.h.b16 %v1499
    %v1772 = vunpack.c.l.b16 %v1500
    %v1773 = vunpack.c.h.b16 %v1500
    %v1774 = vunpack.c.l.b16 %v1501
    %v1775 = vunpack.c.h.b16 %v1501
    %v1776 = vunpack.c.l.b16 %v1502
    %v1777 = vunpack.c.h.b16 %v1502
    %v1778 = vunpack.c.l.b16 %v1503
    %v1779 = vunpack.c.h.b16 %v1503
    %v1780 = vunpack.c.l.b16 %v1504
    %v1781 = vunpack.c.h.b16 %v1504
    %v1782 = vunpack.c.l.b16 %v1505
    %v1783 = vunpack.c.h.b16 %v1505
    %v1784 = vunpack.c.l.b16 %v1506
    %v1785 = vunpack.c.h.b16 %v1506
    %v1786 = vunpack.c.l.b16 %v1507
    %v1787 = vunpack.c.h.b16 %v1507
    %v1788 = vunpack.c.l.b16 %v1508
    %v1789 = vunpack.c.h.b16 %v1508
    %v1790 = vunpack.c.l.b16 %v1509
    %v1791 = vunpack.c.h.b16 %v1509
    %v1792 = vunpack.c.l.b16 %v1510
    %v1793 = vunpack.c.h.b16 %v1510
    %v1794 = vunpack.c.l.b16 %v1511
    %v1795 = vunpack.c.h.b16 %v1511
    %v1796 = vunpack.c.l.b16 %v1512
    %v1797 = vunpack.c.h.b16 %v1512
    %v1798 = vunpack.c.l.b16 %v1513
    %v1799 = vunpack.c.h.b16 %v1513
    %v1800 = vunpack.c.l.b16 %v1514
    %v1801 = vunpack.c.h.b16 %v1514
    %v1802 = vunpack.c.l.b16 %v1515
    %v1803 = vunpack.c.h.b16 %v1515
    %v1804 = vunpack.c.l.b16 %v1516
    %v1805 = vunpack.c.h.b16 %v1516
    %v1806 = vunpack.c.l.b16 %v1517
    %v1807 = vunpack.c.h.b16 %v1517
    %v1808 = vunpack.c.l.b16 %v1518
    %v1809 = vunpack.c.h.b16 %v1518
    %v1810 = vunpack.c.l.b16 %v1519
    %v1811 = vunpack.c.h.b16 %v1519
    %v1812 = vunpack.c.l.b16 %v1520
    %v1813 = vunpack.c.h.b16 %v1520
    %v1814 = vunpack.c.l.b16 %v1521
    %v1815 = vunpack.c.h.b16 %v1521
    %v1816 = vunpack.c.l.b16 %v1522
    %v1817 = vunpack.c.h.b16 %v1522
    %v1818 = vunpack.c.l.b16 %v1523
    %v1819 = vunpack.c.h.b16 %v1523
    %v1820 = vunpack.c.l.b16 %v1524
    %v1821 = vunpack.c.h.b16 %v1524
    %v1822 = vunpack.c.l.b16 %v1525
    %v1823 = vunpack.c.h.b16 %v1525
    %v1824 = vunpack.c.l.b16 %v1526
    %v1825 = vunpack.c.h.b16 %v1526
    %v1826 = vunpack.c.l.b16 %v1527
    %v1827 = vunpack.c.h.b16 %v1527
    %v1828 = vunpack.c.l.b16 %v1528
    %v1829 = vunpack.c.h.b16 %v1528
    %v1830 = vunpack.c.l.b16 %v1529
    %v1831 = vunpack.c.h.b16 %v1529
    %v1832 = vunpack.c.l.b16 %v1530
    %v1833 = vunpack.c.h.b16 %v1530
    %v1834 = vunpack.c.l.b16 %v1531
    %v1835 = vunpack.c.h.b16 %v1531
    %v1836 = vunpack.c.l.b16 %v1532
    %v1837 = vunpack.c.h.b16 %v1532
    %v1838 = vunpack.c.l.b16 %v1533
    %v1839 = vunpack.c.h.b16 %v1533
    %v1840 = vunpack.c.l.b16 %v1534
    %v1841 = vunpack.c.h.b16 %v1534
    %v1842 = vunpack.c.l.b16 %v1535
    %v1843 = vunpack.c.h.b16 %v1535
    %v1844 = vunpack.c.l.b16 %v1536
    %v1845 = vunpack.c.h.b16 %v1536
    %v1846 = vunpack.c.l.b16 %v1537
    %v1847 = vunpack.c.h.b16 %v1537
    %v1848 = vunpack.c.l.b16 %v1538
    %v1849 = vunpack.c.h.b16 %v1538
    %v1850 = vunpack.c.l.b16 %v1539
    %v1851 = vunpack.c.h.b16 %v1539
    %v1852 = vunpack.c.l.b16 %v1540
    %v1853 = vunpack.c.h.b16 %v1540
    %v1854 = vunpack.c.l.b16 %v1541
    %v1855 = vunpack.c.h.b16 %v1541
    %v1856 = vunpack.c.l.b16 %v1542
    %v1857 = vunpack.c.h.b16 %v1542
    %v1858 = vunpack.c.l.b16 %v1543
    %v1859 = vunpack.c.h.b16 %v1543
    %v1860 = vunpack.c.l.b16 %v1544
    %v1861 = vunpack.c.h.b16 %v1544
    %v1862 = vunpack.c.l.b16 %v1545
    %v1863 = vunpack.c.h.b16 %v1545
    %v1864 = vunpack.c.l.b16 %v1546
    %v1865 = vunpack.c.h.b16 %v1546
    %v1866 = vunpack.c.l.b16 %v1547
    %v1867 = vunpack.c.h.b16 %v1547
    %v1868 = vunpack.c.l.b16 %v1548
    %v1869 = vunpack.c.h.b16 %v1548
    %v1870 = vunpack.c.l.b16 %v1549
    %v1871 = vunpack.c.h.b16 %v1549
    %v1872 = vunpack.c.l.b16 %v1550
    %v1873 = vunpack.c.h.b16 %v1550
    %v1874 = vunpack.c.l.b16 %v1551
    %v1875 = vunpack.c.h.b16 %v1551
    %v1876 = vunpack.c.l.b16 %v1552
    %v1877 = vunpack.c.h.b16 %v1552
    %v1878 = vunpack.c.l.b16 %v1553
    %v1879 = vunpack.c.h.b16 %v1553
    %v1880 = vunpack.c.l.b16 %v1554
    %v1881 = vunpack.c.h.b16 %v1554
    %v1882 = vunpack.c.l.b16 %v1555
    %v1883 = vunpack.c.h.b16 %v1555
    %v1884 = vunpack.c.l.b16 %v1556
    %v1885 = vunpack.c.h.b16 %v1556
    %v1886 = vunpack.c.l.b16 %v1557
    %v1887 = vunpack.c.h.b16 %v1557
    %v1888 = vunpack.c.l.b16 %v1558
    %v1889 = vunpack.c.h.b16 %v1558
    %v1890 = vunpack.c.l.b16 %v1559
    %v1891 = vunpack.c.h.b16 %v1559
    %v1892 = vunpack.c.l.b16 %v1560
    %v1893 = vunpack.c.h.b16 %v1560
    %v1894 = vunpack.c.l.b16 %v1561
    %v1895 = vunpack.c.h.b16 %v1561
    %v1896 = vunpack.c.l.b16 %v1562
    %v1897 = vunpack.c.h.b16 %v1562
    %v1898 = vunpack.c.l.b16 %v1563
    %v1899 = vunpack.c.h.b16 %v1563
    %v1900 = vunpack.c.l.b16 %v1564
    %v1901 = vunpack.c.h.b16 %v1564
    %v1902 = vunpack.c.l.b16 %v1565
    %v1903 = vunpack.c.h.b16 %v1565
    %v1904 = vunpack.c.l.b16 %v1566
    %v1905 = vunpack.c.h.b16 %v1566
    %v1906 = vunpack.c.l.b16 %v1567
    %v1907 = vunpack.c.h.b16 %v1567
    %v1908 = vunpack.c.l.b16 %v1568
    %v1909 = vunpack.c.h.b16 %v1568
    %v1910 = vunpack.c.l.b16 %v1569
    %v1911 = vunpack.c.h.b16 %v1569
    %v1912 = vunpack.c.l.b16 %v1570
    %v1913 = vunpack.c.h.b16 %v1570
    %v1914 = vunpack.c.l.b16 %v1571
    %v1915 = vunpack.c.h.b16 %v1571
    %v1916 = vunpack.c.l.b16 %v1572
    %v1917 = vunpack.c.h.b16 %v1572
    %v1918 = vunpack.c.l.b16 %v1573
    %v1919 = vunpack.c.h.b16 %v1573
    %v1920 = vunpack.c.l.b16 %v1574
    %v1921 = vunpack.c.h.b16 %v1574
    %v1922 = vunpack.c.l.b16 %v1575
    %v1923 = vunpack.c.h.b16 %v1575
    %v1924 = vunpack.c.l.b16 %v1576
    %v1925 = vunpack.c.h.b16 %v1576
    %v1926 = vunpack.c.l.b16 %v1577
    %v1927 = vunpack.c.h.b16 %v1577
    %v1928 = vunpack.c.l.b16 %v1578
    %v1929 = vunpack.c.h.b16 %v1578
    %v1930 = vunpack.c.l.b16 %v1579
    %v1931 = vunpack.c.h.b16 %v1579
    %v1932 = vunpack.c.l.b16 %v1580
    %v1933 = vunpack.c.h.b16 %v1580
    %v1934 = vunpack.c.l.b16 %v1581
    %v1935 = vunpack.c.h.b16 %v1581
    %v1936 = vunpack.c.l.b16 %v1582
    %v1937 = vunpack.c.h.b16 %v1582
    %v1938 = vunpack.c.l.b16 %v1583
    %v1939 = vunpack.c.h.b16 %v1583
    %v1940 = vunpack.c.l.b16 %v1584
    %v1941 = vunpack.c.h.b16 %v1584
    %v1942 = vunpack.c.l.b16 %v1585
    %v1943 = vunpack.c.h.b16 %v1585
    %v1944 = vunpack.c.l.b16 %v1586
    %v1945 = vunpack.c.h.b16 %v1586
    %v1946 = vunpack.c.l.b16 %v1587
    %v1947 = vunpack.c.h.b16 %v1587
    %v1948 = vunpack.c.l.b16 %v1588
    %v1949 = vunpack.c.h.b16 %v1588
    %v1950 = vunpack.c.l.b16 %v1589
    %v1951 = vunpack.c.h.b16 %v1589
    %v1952 = vunpack.c.l.b16 %v1590
    %v1953 = vunpack.c.h.b16 %v1590
    %v1954 = vunpack.c.l.b16 %v1591
    %v1955 = vunpack.c.h.b16 %v1591
    %v1956 = vunpack.c.l.b16 %v1592
    %v1957 = vunpack.c.h.b16 %v1592
    %v1958 = vunpack.c.l.b16 %v1593
    %v1959 = vunpack.c.h.b16 %v1593
    %v1960 = vunpack.c.l.b16 %v1594
    %v1961 = vunpack.c.h.b16 %v1594
    %v1962 = vunpack.c.l.b16 %v1595
    %v1963 = vunpack.c.h.b16 %v1595
    %v1964 = vunpack.c.l.b16 %v1596
    %v1965 = vunpack.c.h.b16 %v1596
    %v1966 = vunpack.c.l.b16 %v1597
    %v1967 = vunpack.c.h.b16 %v1597
    %v1968 = vunpack.c.l.b16 %v1598
    %v1969 = vunpack.c.h.b16 %v1598
    %v1970 = vunpack.c.l.b16 %v1599
    %v1971 = vunpack.c.h.b16 %v1599
    %v1972 = vunpack.c.l.b16 %v1600
    %v1973 = vunpack.c.h.b16 %v1600
    %v1974 = vunpack.c.l.b16 %v1601
    %v1975 = vunpack.c.h.b16 %v1601
    %v1976 = vunpack.c.l.b16 %v1602
    %v1977 = vunpack.c.h.b16 %v1602
    %v1978 = vunpack.c.l.b16 %v1603
    %v1979 = vunpack.c.h.b16 %v1603
    %v1980 = vunpack.c.l.b16 %v1604
    %v1981 = vunpack.c.h.b16 %v1604
    %v1982 = vunpack.c.l.b16 %v1605
    %v1983 = vunpack.c.h.b16 %v1605
    %v1984 = vunpack.c.l.b16 %v1606
    %v1985 = vunpack.c.h.b16 %v1606
    %v1986 = vunpack.c.l.b16 %v1607
    %v1987 = vunpack.c.h.b16 %v1607
    %v1988 = vunpack.c.l.b16 %v1608
    %v1989 = vunpack.c.h.b16 %v1608
    %v1990 = vunpack.c.l.b16 %v1609
    %v1991 = vunpack.c.h.b16 %v1609
    %v1992 = vunpack.c.l.b16 %v1610
    %v1993 = vunpack.c.h.b16 %v1610
    %v1994 = vunpack.c.l.b16 %v1611
    %v1995 = vunpack.c.h.b16 %v1611
    %v1996 = vpack.c.b16 %v1744, %v1740
    %v1997 = vpack.c.b16 %v1745, %v1741
    %v1998 = vpack.c.b16 %v1746, %v1742
    %v1999 = vpack.c.b16 %v1747, %v1743
    %v2000 = vpack.c.b16 %v1752, %v1748
    %v2001 = vpack.c.b16 %v1753, %v1749
    %v2002 = vpack.c.b16 %v1754, %v1750
    %v2003 = vpack.c.b16 %v1755, %v1751
    %v2004 = vpack.c.b16 %v1760, %v1756
    %v2005 = vpack.c.b16 %v1761, %v1757
    %v2006 = vpack.c.b16 %v1762, %v1758
    %v2007 = vpack.c.b16 %v1763, %v1759
    %v2008 = vpack.c.b16 %v1768, %v1764
    %v2009 = vpack.c.b16 %v1769, %v1765
    %v2010 = vpack.c.b16 %v1770, %v1766
    %v2011 = vpack.c.b16 %v1771, %v1767
    %v2012 = vpack.c.b16 %v1776, %v1772
    %v2013 = vpack.c.b16 %v1777, %v1773
    %v2014 = vpack.c.b16 %v1778, %v1774
    %v2015 = vpack.c.b16 %v1779, %v1775
    %v2016 = vpack.c.b16 %v1784, %v1780
    %v2017 = vpack.c.b16 %v1785, %v1781
    %v2018 = vpack.c.b16 %v1786, %v1782
    %v2019 = vpack.c.b16 %v1787, %v1783
    %v2020 = vpack.c.b16 %v1792, %v1788
    %v2021 = vpack.c.b16 %v1793, %v1789
    %v2022 = vpack.c.b16 %v1794, %v1790
    %v2023 = vpack.c.b16 %v1795, %v1791
    %v2024 = vpack.c.b16 %v1800, %v1796
    %v2025 = vpack.c.b16 %v1801, %v1797
    %v2026 = vpack.c.b16 %v1802, %v1798
    %v2027 = vpack.c.b16 %v1803, %v1799
    %v2028 = vpack.c.b16 %v1808, %v1804
    %v2029 = vpack.c.b16 %v1809, %v1805
    %v2030 = vpack.c.b16 %v1810, %v1806
    %v2031 = vpack.c.b16 %v1811, %v1807
    %v2032 = vpack.c.b16 %v1816, %v1812
    %v2033 = vpack.c.b16 %v1817, %v1813
    %v2034 = vpack.c.b16 %v1818, %v1814
    %v2035 = vpack.c.b16 %v1819, %v1815
    %v2036 = vpack.c.b16 %v1824, %v1820
    %v2037 = vpack.c.b16 %v1825, %v1821
    %v2038 = vpack.c.b16 %v1826, %v1822
    %v2039 = vpack.c.b16 %v1827, %v1823
    %v2040 = vpack.c.b16 %v1832, %v1828
    %v2041 = vpack.c.b16 %v1833, %v1829
    %v2042 = vpack.c.b16 %v1834, %v1830
    %v2043 = vpack.c.b16 %v1835, %v1831
    %v2044 = vpack.c.b16 %v1840, %v1836
    %v2045 = vpack.c.b16 %v1841, %v1837
    %v2046 = vpack.c.b16 %v1842, %v1838
    %v2047 = vpack.c.b16 %v1843, %v1839
    %v2048 = vpack.c.b16 %v1848, %v1844
    %v2049 = vpack.c.b16 %v1849, %v1845
    %v2050 = vpack.c.b16 %v1850, %v1846
    %v2051 = vpack.c.b16 %v1851, %v1847
    %v2052 = vpack.c.b16 %v1856, %v1852
    %v2053 = vpack.c.b16 %v1857, %v1853
    %v2054 = vpack.c.b16 %v1858, %v1854
    %v2055 = vpack.c.b16 %v1859, %v1855
    %v2056 = vpack.c.b16 %v1864, %v1860
    %v2057 = vpack.c.b16 %v1865, %v1861
    %v2058 = vpack.c.b16 %v1866, %v1862
    %v2059 = vpack.c.b16 %v1867, %v1863
    %v2060 = vpack.c.b16 %v1872, %v1868
    %v2061 = vpack.c.b16 %v1873, %v1869
    %v2062 = vpack.c.b16 %v1874, %v1870
    %v2063 = vpack.c.b16 %v1875, %v1871
    %v2064 = vpack.c.b16 %v1880, %v1876
    %v2065 = vpack.c.b16 %v1881, %v1877
    %v2066 = vpack.c.b16 %v1882, %v1878
    %v2067 = vpack.c.b16 %v1883, %v1879
    %v2068 = vpack.c.b16 %v1888, %v1884
    %v2069 = vpack.c.b16 %v1889, %v1885
    %v2070 = vpack.c.b16 %v1890, %v1886
    %v2071 = vpack.c.b16 %v1891, %v1887
    %v2072 = vpack.c.b16 %v1896, %v1892
    %v2073 = vpack.c.b16 %v1897, %v1893
    %v2074 = vpack.c.b16 %v1898, %v1894
    %v2075 = vpack.c.b16 %v1899, %v1895
    %v2076 = vpack.c.b16 %v1904, %v1900
    %v2077 = vpack.c.b16 %v1905, %v1901
    %v2078 = vpack.c.b16 %v1906, %v1902
    %v2079 = vpack.c.b16 %v1907, %v1903
    %v2080 = vpack.c.b16 %v1912, %v1908
    %v2081 = vpack.c.b16 %v1913, %v1909
    %v2082 = vpack.c.b16 %v1914, %v1910
    %v2083 = vpack.c.b16 %v1915, %v1911
    %v2084 = vpack.c.b16 %v1920, %v1916
    %v2085 = vpack.c.b16 %v1921, %v1917
    %v2086 = vpack.c.b16 %v1922, %v1918
    %v2087 = vpack.c.b16 %v1923, %v1919
    %v2088 = vpack.c.b16 %v1928, %v1924
    %v2089 = vpack.c.b16 %v1929, %v1925
    %v2090 = vpack.c.b16 %v1930, %v1926
    %v2091 = vpack.c.b16 %v1931, %v1927
    %v2092 = vpack.c.b16 %v1936, %v1932
    %v2093 = vpack.c.b16 %v1937, %v1933
    %v2094 = vpack.c.b16 %v1938, %v1934
    %v2095 = vpack.c.b16 %v1939, %v1935
    %v2096 = vpack.c.b16 %v1944, %v1940
    %v2097 = vpack.c.b16 %v1945, %v1941
    %v2098 = vpack.c.b16 %v1946, %v1942
    %v2099 = vpack.c.b16 %v1947, %v1943
    %v2100 = vpack.c.b16 %v1952, %v1948
    %v2101 = vpack.c.b16 %v1953, %v1949
    %v2102 = vpack.c.b16 %v1954, %v1950
    %v2103 = vpack.c.b16 %v1955, %v1951
    %v2104 = vpack.c.b16 %v1960, %v1956
    %v2105 = vpack.c.b16 %v1961, %v1957
    %v2106 = vpack.c.b16 %v1962, %v1958
    %v2107 = vpack.c.b16 %v1963, %v1959
    %v2108 = vpack.c.b16 %v1968, %v1964
    %v2109 = vpack.c.b16 %v1969, %v1965
    %v2110 = vpack.c.b16 %v1970, %v1966
    %v2111 = vpack.c.b16 %v1971, %v1967
    %v2112 = vpack.c.b16 %v1976, %v1972
    %v2113 = vpack.c.b16 %v1977, %v1973
    %v2114 = vpack.c.b16 %v1978, %v1974
    %v2115 = vpack.c.b16 %v1979, %v1975
    %v2116 = vpack.c.b16 %v1984, %v1980
    %v2117 = vpack.c.b16 %v1985, %v1981
    %v2118 = vpack.c.b16 %v1986, %v1982
    %v2119 = vpack.c.b16 %v1987, %v1983
    %v2120 = vpack.c.b16 %v1992, %v1988
    %v2121 = vpack.c.b16 %v1993, %v1989
    %v2122 = vpack.c.b16 %v1994, %v1990
    %v2123 = vpack.c.b16 %v1995, %v1991
    %2252 = vmatprep.subr.bf16.mxu0 %v1997
    %2253 = vmatpush1.bf16.msra.mxu0 %v1996
    %2254 = vmatprep.subr.bf16.mxu0 %v2001
    %2255 = vmatpush1.bf16.msra.mxu0 %v2000
    %2256 = vmatprep.subr.bf16.mxu0 %v2005
    %2257 = vmatpush1.bf16.msra.mxu0 %v2004
    %2258 = vmatprep.subr.bf16.mxu0 %v2009
    %2259 = vmatpush1.bf16.msra.mxu0 %v2008
    %2260 = vmatprep.subr.bf16.mxu0 %v2013
    %2261 = vmatpush1.bf16.msra.mxu0 %v2012
    %2262 = vmatprep.subr.bf16.mxu0 %v2017
    %2263 = vmatpush1.bf16.msra.mxu0 %v2016
    %2264 = vmatprep.subr.bf16.mxu0 %v2021
    %2265 = vmatpush1.bf16.msra.mxu0 %v2020
    %2266 = vmatprep.subr.bf16.mxu0 %v2025
    %2267 = vmatpush1.bf16.msra.mxu0 %v2024
    %2268 = vmatprep.subr.bf16.mxu0 %v2029
    %2269 = vmatpush1.bf16.msra.mxu0 %v2028
    %2270 = vmatprep.subr.bf16.mxu0 %v2033
    %2271 = vmatpush1.bf16.msra.mxu0 %v2032
    %2272 = vmatprep.subr.bf16.mxu0 %v2037
    %2273 = vmatpush1.bf16.msra.mxu0 %v2036
    %2274 = vmatprep.subr.bf16.mxu0 %v2041
    %2275 = vmatpush1.bf16.msra.mxu0 %v2040
    %2276 = vmatprep.subr.bf16.mxu0 %v2045
    %2277 = vmatpush1.bf16.msra.mxu0 %v2044
    %2278 = vmatprep.subr.bf16.mxu0 %v2049
    %2279 = vmatpush1.bf16.msra.mxu0 %v2048
    %2280 = vmatprep.subr.bf16.mxu0 %v2053
    %2281 = vmatpush1.bf16.msra.mxu0 %v2052
    %2282 = vmatprep.subr.bf16.mxu0 %v2057
    %2283 = vmatpush1.bf16.msra.mxu0 %v2056
    %2284 = vmatprep.mubr.bf16.mxu0 %v1481
    %2285 = vmatmul.mubr.bf16.gmra.mrb[0].mxu0 %v1480
    %v2286 = vpop.f32.mrb[0].mxu0
    %v2287 = vadd.f32 0.0, %v2286
    %v2288 = vpop.f32.mrb[0].mxu0
    %v2289 = vadd.f32 0.0, %v2288
    %v2290 = vpop.f32.mrb[0].mxu0
    %v2291 = vadd.f32 0.0, %v2290
    %v2292 = vpop.f32.mrb[0].mxu0
    %v2293 = vadd.f32 0.0, %v2292
    %2294 = vdwg.mxu0
    %2295 = vmatprep.subr.bf16.mxu0 %v2061
    %2296 = vmatpush1.bf16.msra.mxu0 %v2060
    %2297 = vmatprep.subr.bf16.mxu0 %v2065
    %2298 = vmatpush1.bf16.msra.mxu0 %v2064
    %2299 = vmatprep.subr.bf16.mxu0 %v2069
    %2300 = vmatpush1.bf16.msra.mxu0 %v2068
    %2301 = vmatprep.subr.bf16.mxu0 %v2073
    %2302 = vmatpush1.bf16.msra.mxu0 %v2072
    %2303 = vmatprep.subr.bf16.mxu0 %v2077
    %2304 = vmatpush1.bf16.msra.mxu0 %v2076
    %2305 = vmatprep.subr.bf16.mxu0 %v2081
    %2306 = vmatpush1.bf16.msra.mxu0 %v2080
    %2307 = vmatprep.subr.bf16.mxu0 %v2085
    %2308 = vmatpush1.bf16.msra.mxu0 %v2084
    %2309 = vmatprep.subr.bf16.mxu0 %v2089
    %2310 = vmatpush1.bf16.msra.mxu0 %v2088
    %2311 = vmatprep.subr.bf16.mxu0 %v2093
    %2312 = vmatpush1.bf16.msra.mxu0 %v2092
    %2313 = vmatprep.subr.bf16.mxu0 %v2097
    %2314 = vmatpush1.bf16.msra.mxu0 %v2096
    %2315 = vmatprep.subr.bf16.mxu0 %v2101
    %2316 = vmatpush1.bf16.msra.mxu0 %v2100
    %2317 = vmatprep.subr.bf16.mxu0 %v2105
    %2318 = vmatpush1.bf16.msra.mxu0 %v2104
    %2319 = vmatprep.subr.bf16.mxu0 %v2109
    %2320 = vmatpush1.bf16.msra.mxu0 %v2108
    %2321 = vmatprep.subr.bf16.mxu0 %v2113
    %2322 = vmatpush1.bf16.msra.mxu0 %v2112
    %2323 = vmatprep.subr.bf16.mxu0 %v2117
    %2324 = vmatpush1.bf16.msra.mxu0 %v2116
    %2325 = vmatprep.subr.bf16.mxu0 %v2121
    %2326 = vmatpush1.bf16.msra.mxu0 %v2120
    %2327 = vmatprep.mubr.bf16.mxu0 %v1483
    %2328 = vmatmul.mubr.bf16.gmra.mrb[0].mxu0 %v1482
    %v2329 = vpop.f32.mrb[0].mxu0
    %v2330 = vadd.f32 %v2287, %v2329
    %v2331 = vpop.f32.mrb[0].mxu0
    %v2332 = vadd.f32 %v2289, %v2331
    %v2333 = vpop.f32.mrb[0].mxu0
    %v2334 = vadd.f32 %v2291, %v2333
    %v2335 = vpop.f32.mrb[0].mxu0
    %v2336 = vadd.f32 %v2293, %v2335
    %2337 = vdwg.mxu0
    %2338 = vmatprep.subr.bf16.mxu0 %v1999
    %2339 = vmatpush1.bf16.msra.mxu0 %v1998
    %2340 = vmatprep.subr.bf16.mxu0 %v2003
    %2341 = vmatpush1.bf16.msra.mxu0 %v2002
    %2342 = vmatprep.subr.bf16.mxu0 %v2007
    %2343 = vmatpush1.bf16.msra.mxu0 %v2006
    %2344 = vmatprep.subr.bf16.mxu0 %v2011
    %2345 = vmatpush1.bf16.msra.mxu0 %v2010
    %2346 = vmatprep.subr.bf16.mxu0 %v2015
    %2347 = vmatpush1.bf16.msra.mxu0 %v2014
    %2348 = vmatprep.subr.bf16.mxu0 %v2019
    %2349 = vmatpush1.bf16.msra.mxu0 %v2018
    %2350 = vmatprep.subr.bf16.mxu0 %v2023
    %2351 = vmatpush1.bf16.msra.mxu0 %v2022
    %2352 = vmatprep.subr.bf16.mxu0 %v2027
    %2353 = vmatpush1.bf16.msra.mxu0 %v2026
    %2354 = vmatprep.subr.bf16.mxu0 %v2031
    %2355 = vmatpush1.bf16.msra.mxu0 %v2030
    %2356 = vmatprep.subr.bf16.mxu0 %v2035
    %2357 = vmatpush1.bf16.msra.mxu0 %v2034
    %2358 = vmatprep.subr.bf16.mxu0 %v2039
    %2359 = vmatpush1.bf16.msra.mxu0 %v2038
    %2360 = vmatprep.subr.bf16.mxu0 %v2043
    %2361 = vmatpush1.bf16.msra.mxu0 %v2042
    %2362 = vmatprep.subr.bf16.mxu0 %v2047
    %2363 = vmatpush1.bf16.msra.mxu0 %v2046
    %2364 = vmatprep.subr.bf16.mxu0 %v2051
    %2365 = vmatpush1.bf16.msra.mxu0 %v2050
    %2366 = vmatprep.subr.bf16.mxu0 %v2055
    %2367 = vmatpush1.bf16.msra.mxu0 %v2054
    %2368 = vmatprep.subr.bf16.mxu0 %v2059
    %2369 = vmatpush1.bf16.msra.mxu0 %v2058
    %2370 = vmatprep.mubr.bf16.mxu0 %v1481
    %2371 = vmatmul.mubr.bf16.gmra.mrb[0].mxu0 %v1480
    %v2372 = vpop.f32.mrb[0].mxu0
    %v2373 = vadd.f32 0.0, %v2372
    %v2374 = vpop.f32.mrb[0].mxu0
    %v2375 = vadd.f32 0.0, %v2374
    %v2376 = vpop.f32.mrb[0].mxu0
    %v2377 = vadd.f32 0.0, %v2376
    %v2378 = vpop.f32.mrb[0].mxu0
    %v2379 = vadd.f32 0.0, %v2378
    %2380 = vdwg.mxu0
    %2381 = vmatprep.subr.bf16.mxu0 %v2063
    %2382 = vmatpush1.bf16.msra.mxu0 %v2062
    %2383 = vmatprep.subr.bf16.mxu0 %v2067
    %2384 = vmatpush1.bf16.msra.mxu0 %v2066
    %2385 = vmatprep.subr.bf16.mxu0 %v2071
    %2386 = vmatpush1.bf16.msra.mxu0 %v2070
    %2387 = vmatprep.subr.bf16.mxu0 %v2075
    %2388 = vmatpush1.bf16.msra.mxu0 %v2074
    %2389 = vmatprep.subr.bf16.mxu0 %v2079
    %2390 = vmatpush1.bf16.msra.mxu0 %v2078
    %2391 = vmatprep.subr.bf16.mxu0 %v2083
    %2392 = vmatpush1.bf16.msra.mxu0 %v2082
    %2393 = vmatprep.subr.bf16.mxu0 %v2087
    %2394 = vmatpush1.bf16.msra.mxu0 %v2086
    %2395 = vmatprep.subr.bf16.mxu0 %v2091
    %2396 = vmatpush1.bf16.msra.mxu0 %v2090
    %2397 = vmatprep.subr.bf16.mxu0 %v2095
    %2398 = vmatpush1.bf16.msra.mxu0 %v2094
    %2399 = vmatprep.subr.bf16.mxu0 %v2099
    %2400 = vmatpush1.bf16.msra.mxu0 %v2098
    %2401 = vmatprep.subr.bf16.mxu0 %v2103
    %2402 = vmatpush1.bf16.msra.mxu0 %v2102
    %2403 = vmatprep.subr.bf16.mxu0 %v2107
    %2404 = vmatpush1.bf16.msra.mxu0 %v2106
    %2405 = vmatprep.subr.bf16.mxu0 %v2111
    %2406 = vmatpush1.bf16.msra.mxu0 %v2110
    %2407 = vmatprep.subr.bf16.mxu0 %v2115
    %2408 = vmatpush1.bf16.msra.mxu0 %v2114
    %2409 = vmatprep.subr.bf16.mxu0 %v2119
    %2410 = vmatpush1.bf16.msra.mxu0 %v2118
    %2411 = vmatprep.subr.bf16.mxu0 %v2123
    %2412 = vmatpush1.bf16.msra.mxu0 %v2122
    %2413 = vmatprep.mubr.bf16.mxu0 %v1483
    %2414 = vmatmul.mubr.bf16.gmra.mrb[0].mxu0 %v1482
    %v2415 = vpop.f32.mrb[0].mxu0
    %v2416 = vadd.f32 %v2373, %v2415
    %v2417 = vpop.f32.mrb[0].mxu0
    %v2418 = vadd.f32 %v2375, %v2417
    %v2419 = vpop.f32.mrb[0].mxu0
    %v2420 = vadd.f32 %v2377, %v2419
    %v2421 = vpop.f32.mrb[0].mxu0
    %v2422 = vadd.f32 %v2379, %v2421
    %2423 = vdwg.mxu0
    %v2424 = vld [vmem:[%s8] sm:$0xf]
    %v2426 = vlaneseq
    %v2427 = vshrl.u32 %v2426, 7
    %v2428 = vsub.s32 0, %v2427
    %v2429 = vrot.slane %v2424, %v2428
    %v2430 = vlaneseq
    %v2431 = vshrl.u32 %v2430, 7
    %v2432 = vsub.s32 1, %v2431
    %v2433 = vrot.slane %v2424, %v2432
    %v2434 = vlaneseq
    %v2435 = vshrl.u32 %v2434, 7
    %v2436 = vsub.s32 2, %v2435
    %v2437 = vrot.slane %v2424, %v2436
    %v2438 = vlaneseq
    %v2439 = vshrl.u32 %v2438, 7
    %v2440 = vsub.s32 3, %v2439
    %v2441 = vrot.slane %v2424, %v2440
    %v2446 = vmul.f32 %v2330, %v2429
    %v2447 = vmul.f32 %v2332, %v2433
    %v2448 = vmul.f32 %v2416, %v2437
    %v2449 = vmul.f32 %v2418, %v2441
    %v2450 = vmul.f32 %v2334, %v2429
    %v2451 = vmul.f32 %v2336, %v2433
    %v2452 = vmul.f32 %v2420, %v2437
    %v2453 = vmul.f32 %v2422, %v2441
    %v2454 = vld [vmem:[%s9] sm:$0xf]
    %v2456 = vlaneseq
    %v2457 = vshrl.u32 %v2456, 7
    %v2458 = vsub.s32 0, %v2457
    %v2459 = vrot.slane %v2454, %v2458
    %v2460 = vlaneseq
    %v2461 = vshrl.u32 %v2460, 7
    %v2462 = vsub.s32 1, %v2461
    %v2463 = vrot.slane %v2454, %v2462
    %v2464 = vlaneseq
    %v2465 = vshrl.u32 %v2464, 7
    %v2466 = vsub.s32 2, %v2465
    %v2467 = vrot.slane %v2454, %v2466
    %v2468 = vlaneseq
    %v2469 = vshrl.u32 %v2468, 7
    %v2470 = vsub.s32 3, %v2469
    %v2471 = vrot.slane %v2454, %v2470
    %v2476 = vadd.f32 %v2446, %v2459
    %v2477 = vadd.f32 %v2447, %v2463
    %v2478 = vadd.f32 %v2448, %v2467
    %v2479 = vadd.f32 %v2449, %v2471
    %v2480 = vadd.f32 %v2450, %v2459
    %v2481 = vadd.f32 %v2451, %v2463
    %v2482 = vadd.f32 %v2452, %v2467
    %v2483 = vadd.f32 %v2453, %v2471
    %v2484 = vmax.f32 %v2476, 0.0
    %v2485 = vmax.f32 %v2477, 0.0
    %v2486 = vmax.f32 %v2478, 0.0
    %v2487 = vmax.f32 %v2479, 0.0
    %v2488 = vmax.f32 %v2480, 0.0
    %v2489 = vmax.f32 %v2481, 0.0
    %v2490 = vmax.f32 %v2482, 0.0
    %v2491 = vmax.f32 %v2483, 0.0
    %v2492 = vpack.c.bf16 %v2488, %v2484
    %v2493 = vpack.c.bf16 %v2489, %v2485
    %v2494 = vpack.c.bf16 %v2490, %v2486
    %v2495 = vpack.c.bf16 %v2491, %v2487
    %v2496 = vld [vmem:[#allocation10] sm:$0xf]
    %v2497 = vld [vmem:[#allocation10 + $0x4] sm:$0xf]
    %v2498 = vld [vmem:[#allocation10 + $0x8] sm:$0xf]
    %v2499 = vld [vmem:[#allocation10 + $0xc] sm:$0xf]
    %v2500 = vld [vmem:[#allocation10 + $0x10] sm:$0xf]
    %v2501 = vld [vmem:[#allocation10 + $0x14] sm:$0xf]
    %v2502 = vld [vmem:[#allocation10 + $0x18] sm:$0xf]
    %v2503 = vld [vmem:[#allocation10 + $0x1c] sm:$0xf]
    %v2504 = vld [vmem:[#allocation10 + $0x20] sm:$0xf]
    %v2505 = vld [vmem:[#allocation10 + $0x24] sm:$0xf]
    %v2506 = vld [vmem:[#allocation10 + $0x28] sm:$0xf]
    %v2507 = vld [vmem:[#allocation10 + $0x2c] sm:$0xf]
    %v2508 = vld [vmem:[#allocation10 + $0x30] sm:$0xf]
    %v2509 = vld [vmem:[#allocation10 + $0x34] sm:$0xf]
    %v2510 = vld [vmem:[#allocation10 + $0x38] sm:$0xf]
    %v2511 = vld [vmem:[#allocation10 + $0x3c] sm:$0xf]
    %v2512 = vld [vmem:[#allocation10 + $0x40] sm:$0xf]
    %v2513 = vld [vmem:[#allocation10 + $0x44] sm:$0xf]
    %v2514 = vld [vmem:[#allocation10 + $0x48] sm:$0xf]
    %v2515 = vld [vmem:[#allocation10 + $0x4c] sm:$0xf]
    %v2516 = vld [vmem:[#allocation10 + $0x50] sm:$0xf]
    %v2517 = vld [vmem:[#allocation10 + $0x54] sm:$0xf]
    %v2518 = vld [vmem:[#allocation10 + $0x58] sm:$0xf]
    %v2519 = vld [vmem:[#allocation10 + $0x5c] sm:$0xf]
    %v2520 = vld [vmem:[#allocation10 + $0x60] sm:$0xf]
    %v2521 = vld [vmem:[#allocation10 + $0x64] sm:$0xf]
    %v2522 = vld [vmem:[#allocation10 + $0x68] sm:$0xf]
    %v2523 = vld [vmem:[#allocation10 + $0x6c] sm:$0xf]
    %v2524 = vld [vmem:[#allocation10 + $0x70] sm:$0xf]
    %v2525 = vld [vmem:[#allocation10 + $0x74] sm:$0xf]
    %v2526 = vld [vmem:[#allocation10 + $0x78] sm:$0xf]
    %v2527 = vld [vmem:[#allocation10 + $0x7c] sm:$0xf]
    %v2528 = vld [vmem:[#allocation10 + $0x80] sm:$0xf]
    %v2529 = vld [vmem:[#allocation10 + $0x84] sm:$0xf]
    %v2530 = vld [vmem:[#allocation10 + $0x88] sm:$0xf]
    %v2531 = vld [vmem:[#allocation10 + $0x8c] sm:$0xf]
    %v2532 = vld [vmem:[#allocation10 + $0x90] sm:$0xf]
    %v2533 = vld [vmem:[#allocation10 + $0x94] sm:$0xf]
    %v2534 = vld [vmem:[#allocation10 + $0x98] sm:$0xf]
    %v2535 = vld [vmem:[#allocation10 + $0x9c] sm:$0xf]
    %v2536 = vld [vmem:[#allocation10 + $0xa0] sm:$0xf]
    %v2537 = vld [vmem:[#allocation10 + $0xa4] sm:$0xf]
    %v2538 = vld [vmem:[#allocation10 + $0xa8] sm:$0xf]
    %v2539 = vld [vmem:[#allocation10 + $0xac] sm:$0xf]
    %v2540 = vld [vmem:[#allocation10 + $0xb0] sm:$0xf]
    %v2541 = vld [vmem:[#allocation10 + $0xb4] sm:$0xf]
    %v2542 = vld [vmem:[#allocation10 + $0xb8] sm:$0xf]
    %v2543 = vld [vmem:[#allocation10 + $0xbc] sm:$0xf]
    %v2544 = vld [vmem:[#allocation10 + $0xc0] sm:$0xf]
    %v2545 = vld [vmem:[#allocation10 + $0xc4] sm:$0xf]
    %v2546 = vld [vmem:[#allocation10 + $0xc8] sm:$0xf]
    %v2547 = vld [vmem:[#allocation10 + $0xcc] sm:$0xf]
    %v2548 = vld [vmem:[#allocation10 + $0xd0] sm:$0xf]
    %v2549 = vld [vmem:[#allocation10 + $0xd4] sm:$0xf]
    %v2550 = vld [vmem:[#allocation10 + $0xd8] sm:$0xf]
    %v2551 = vld [vmem:[#allocation10 + $0xdc] sm:$0xf]
    %v2552 = vld [vmem:[#allocation10 + $0xe0] sm:$0xf]
    %v2553 = vld [vmem:[#allocation10 + $0xe4] sm:$0xf]
    %v2554 = vld [vmem:[#allocation10 + $0xe8] sm:$0xf]
    %v2555 = vld [vmem:[#allocation10 + $0xec] sm:$0xf]
    %v2556 = vld [vmem:[#allocation10 + $0xf0] sm:$0xf]
    %v2557 = vld [vmem:[#allocation10 + $0xf4] sm:$0xf]
    %v2558 = vld [vmem:[#allocation10 + $0xf8] sm:$0xf]
    %v2559 = vld [vmem:[#allocation10 + $0xfc] sm:$0xf]
    %v2624 = vunpack.c.l.b16 %v2496
    %v2625 = vunpack.c.l.b16 %v2497
    %v2626 = vunpack.c.l.b16 %v2498
    %v2627 = vunpack.c.l.b16 %v2499
    %v2628 = vunpack.c.l.b16 %v2500
    %v2629 = vunpack.c.l.b16 %v2501
    %v2630 = vunpack.c.l.b16 %v2502
    %v2631 = vunpack.c.l.b16 %v2503
    %v2632 = vunpack.c.l.b16 %v2504
    %v2633 = vunpack.c.l.b16 %v2505
    %v2634 = vunpack.c.l.b16 %v2506
    %v2635 = vunpack.c.l.b16 %v2507
    %v2636 = vunpack.c.l.b16 %v2508
    %v2637 = vunpack.c.l.b16 %v2509
    %v2638 = vunpack.c.l.b16 %v2510
    %v2639 = vunpack.c.l.b16 %v2511
    %v2640 = vunpack.c.l.b16 %v2512
    %v2641 = vunpack.c.l.b16 %v2513
    %v2642 = vunpack.c.l.b16 %v2514
    %v2643 = vunpack.c.l.b16 %v2515
    %v2644 = vunpack.c.l.b16 %v2516
    %v2645 = vunpack.c.l.b16 %v2517
    %v2646 = vunpack.c.l.b16 %v2518
    %v2647 = vunpack.c.l.b16 %v2519
    %v2648 = vunpack.c.l.b16 %v2520
    %v2649 = vunpack.c.l.b16 %v2521
    %v2650 = vunpack.c.l.b16 %v2522
    %v2651 = vunpack.c.l.b16 %v2523
    %v2652 = vunpack.c.l.b16 %v2524
    %v2653 = vunpack.c.l.b16 %v2525
    %v2654 = vunpack.c.l.b16 %v2526
    %v2655 = vunpack.c.l.b16 %v2527
    %v2656 = vunpack.c.l.b16 %v2528
    %v2657 = vunpack.c.l.b16 %v2529
    %v2658 = vunpack.c.l.b16 %v2530
    %v2659 = vunpack.c.l.b16 %v2531
    %v2660 = vunpack.c.l.b16 %v2532
    %v2661 = vunpack.c.l.b16 %v2533
    %v2662 = vunpack.c.l.b16 %v2534
    %v2663 = vunpack.c.l.b16 %v2535
    %v2664 = vunpack.c.l.b16 %v2536
    %v2665 = vunpack.c.l.b16 %v2537
    %v2666 = vunpack.c.l.b16 %v2538
    %v2667 = vunpack.c.l.b16 %v2539
    %v2668 = vunpack.c.l.b16 %v2540
    %v2669 = vunpack.c.l.b16 %v2541
    %v2670 = vunpack.c.l.b16 %v2542
    %v2671 = vunpack.c.l.b16 %v2543
    %v2672 = vunpack.c.l.b16 %v2544
    %v2673 = vunpack.c.l.b16 %v2545
    %v2674 = vunpack.c.l.b16 %v2546
    %v2675 = vunpack.c.l.b16 %v2547
    %v2676 = vunpack.c.l.b16 %v2548
    %v2677 = vunpack.c.l.b16 %v2549
    %v2678 = vunpack.c.l.b16 %v2550
    %v2679 = vunpack.c.l.b16 %v2551
    %v2680 = vunpack.c.l.b16 %v2552
    %v2681 = vunpack.c.l.b16 %v2553
    %v2682 = vunpack.c.l.b16 %v2554
    %v2683 = vunpack.c.l.b16 %v2555
    %v2684 = vunpack.c.l.b16 %v2556
    %v2685 = vunpack.c.l.b16 %v2557
    %v2686 = vunpack.c.l.b16 %v2558
    %v2687 = vunpack.c.l.b16 %v2559
    %v2688 = vpack.c.b16 %v2625, %v2624
    %v2689 = vpack.c.b16 %v2627, %v2626
    %v2690 = vpack.c.b16 %v2629, %v2628
    %v2691 = vpack.c.b16 %v2631, %v2630
    %v2692 = vpack.c.b16 %v2633, %v2632
    %v2693 = vpack.c.b16 %v2635, %v2634
    %v2694 = vpack.c.b16 %v2637, %v2636
    %v2695 = vpack.c.b16 %v2639, %v2638
    %v2696 = vpack.c.b16 %v2641, %v2640
    %v2697 = vpack.c.b16 %v2643, %v2642
    %v2698 = vpack.c.b16 %v2645, %v2644
    %v2699 = vpack.c.b16 %v2647, %v2646
    %v2700 = vpack.c.b16 %v2649, %v2648
    %v2701 = vpack.c.b16 %v2651, %v2650
    %v2702 = vpack.c.b16 %v2653, %v2652
    %v2703 = vpack.c.b16 %v2655, %v2654
    %v2704 = vpack.c.b16 %v2657, %v2656
    %v2705 = vpack.c.b16 %v2659, %v2658
    %v2706 = vpack.c.b16 %v2661, %v2660
    %v2707 = vpack.c.b16 %v2663, %v2662
    %v2708 = vpack.c.b16 %v2665, %v2664
    %v2709 = vpack.c.b16 %v2667, %v2666
    %v2710 = vpack.c.b16 %v2669, %v2668
    %v2711 = vpack.c.b16 %v2671, %v2670
    %v2712 = vpack.c.b16 %v2673, %v2672
    %v2713 = vpack.c.b16 %v2675, %v2674
    %v2714 = vpack.c.b16 %v2677, %v2676
    %v2715 = vpack.c.b16 %v2679, %v2678
    %v2716 = vpack.c.b16 %v2681, %v2680
    %v2717 = vpack.c.b16 %v2683, %v2682
    %v2718 = vpack.c.b16 %v2685, %v2684
    %v2719 = vpack.c.b16 %v2687, %v2686
    %2752 = vmatprep.subr.bf16.mxu0 0
    %2753 = vmatpush1.bf16.msra.mxu0 %v2688
    %2754 = vmatprep.subr.bf16.mxu0 0
    %2755 = vmatpush1.bf16.msra.mxu0 %v2689
    %2756 = vmatprep.subr.bf16.mxu0 0
    %2757 = vmatpush1.bf16.msra.mxu0 %v2690
    %2758 = vmatprep.subr.bf16.mxu0 0
    %2759 = vmatpush1.bf16.msra.mxu0 %v2691
    %2760 = vmatprep.subr.bf16.mxu0 0
    %2761 = vmatpush1.bf16.msra.mxu0 %v2692
    %2762 = vmatprep.subr.bf16.mxu0 0
    %2763 = vmatpush1.bf16.msra.mxu0 %v2693
    %2764 = vmatprep.subr.bf16.mxu0 0
    %2765 = vmatpush1.bf16.msra.mxu0 %v2694
    %2766 = vmatprep.subr.bf16.mxu0 0
    %2767 = vmatpush1.bf16.msra.mxu0 %v2695
    %2768 = vmatprep.subr.bf16.mxu0 0
    %2769 = vmatpush1.bf16.msra.mxu0 %v2696
    %2770 = vmatprep.subr.bf16.mxu0 0
    %2771 = vmatpush1.bf16.msra.mxu0 %v2697
    %2772 = vmatprep.subr.bf16.mxu0 0
    %2773 = vmatpush1.bf16.msra.mxu0 %v2698
    %2774 = vmatprep.subr.bf16.mxu0 0
    %2775 = vmatpush1.bf16.msra.mxu0 %v2699
    %2776 = vmatprep.subr.bf16.mxu0 0
    %2777 = vmatpush1.bf16.msra.mxu0 %v2700
    %2778 = vmatprep.subr.bf16.mxu0 0
    %2779 = vmatpush1.bf16.msra.mxu0 %v2701
    %2780 = vmatprep.subr.bf16.mxu0 0
    %2781 = vmatpush1.bf16.msra.mxu0 %v2702
    %2782 = vmatprep.subr.bf16.mxu0 0
    %2783 = vmatpush1.bf16.msra.mxu0 %v2703
    %2784 = vmatprep.mubr.bf16.mxu0 %v2493
    %2785 = vmatmul.mubr.bf16.gmra.mrb[0].mxu0 %v2492
    %v2786 = vpop.f32.mrb[0].mxu0
    %v2787 = vadd.f32 0.0, %v2786
    %v2788 = vpop.f32.mrb[0].mxu0
    %v2789 = vpop.f32.mrb[0].mxu0
    %v2790 = vadd.f32 0.0, %v2789
    %v2791 = vpop.f32.mrb[0].mxu0
    %2792 = vdwg.mxu0
    %2793 = vmatprep.subr.bf16.mxu0 0
    %2794 = vmatpush1.bf16.msra.mxu0 %v2704
    %2795 = vmatprep.subr.bf16.mxu0 0
    %2796 = vmatpush1.bf16.msra.mxu0 %v2705
    %2797 = vmatprep.subr.bf16.mxu0 0
    %2798 = vmatpush1.bf16.msra.mxu0 %v2706
    %2799 = vmatprep.subr.bf16.mxu0 0
    %2800 = vmatpush1.bf16.msra.mxu0 %v2707
    %2801 = vmatprep.subr.bf16.mxu0 0
    %2802 = vmatpush1.bf16.msra.mxu0 %v2708
    %2803 = vmatprep.subr.bf16.mxu0 0
    %2804 = vmatpush1.bf16.msra.mxu0 %v2709
    %2805 = vmatprep.subr.bf16.mxu0 0
    %2806 = vmatpush1.bf16.msra.mxu0 %v2710
    %2807 = vmatprep.subr.bf16.mxu0 0
    %2808 = vmatpush1.bf16.msra.mxu0 %v2711
    %2809 = vmatprep.subr.bf16.mxu0 0
    %2810 = vmatpush1.bf16.msra.mxu0 %v2712
    %2811 = vmatprep.subr.bf16.mxu0 0
    %2812 = vmatpush1.bf16.msra.mxu0 %v2713
    %2813 = vmatprep.subr.bf16.mxu0 0
    %2814 = vmatpush1.bf16.msra.mxu0 %v2714
    %2815 = vmatprep.subr.bf16.mxu0 0
    %2816 = vmatpush1.bf16.msra.mxu0 %v2715
    %2817 = vmatprep.subr.bf16.mxu0 0
    %2818 = vmatpush1.bf16.msra.mxu0 %v2716
    %2819 = vmatprep.subr.bf16.mxu0 0
    %2820 = vmatpush1.bf16.msra.mxu0 %v2717
    %2821 = vmatprep.subr.bf16.mxu0 0
    %2822 = vmatpush1.bf16.msra.mxu0 %v2718
    %2823 = vmatprep.subr.bf16.mxu0 0
    %2824 = vmatpush1.bf16.msra.mxu0 %v2719
    %2825 = vmatprep.mubr.bf16.mxu0 %v2495
    %2826 = vmatmul.mubr.bf16.gmra.mrb[0].mxu0 %v2494
    %v2827 = vpop.f32.mrb[0].mxu0
    %v2828 = vadd.f32 %v2787, %v2827
    %v2829 = vpop.f32.mrb[0].mxu0
    %v2830 = vpop.f32.mrb[0].mxu0
    %v2831 = vadd.f32 %v2790, %v2830
    %v2832 = vpop.f32.mrb[0].mxu0
    %2833 = vdwg.mxu0
    %v2834 = vld [vmem:[%s11] sm:$0x1]
    %v2836 = vlaneseq
    %v2837 = vshrl.u32 %v2836, 7
    %v2838 = vsub.s32 0, %v2837
    %v2839 = vrot.slane %v2834, %v2838
    %v2841 = vmul.f32 %v2828, %v2839
    %v2842 = vmul.f32 %v2831, %v2839
    %v2843 = vld [vmem:[%s12] sm:$0x1]
    %v2845 = vlaneseq
    %v2846 = vshrl.u32 %v2845, 7
    %v2847 = vsub.s32 0, %v2846
    %v2848 = vrot.slane %v2843, %v2847
    %v2850 = vadd.f32 %v2841, %v2848
    %v2851 = vadd.f32 %v2842, %v2848
    %2852 = vst [vmem:[#allocation11] sm:$0xff] %v2850
    %2853 = vst [vmem:[#allocation11 + $0x8] sm:$0xff] %v2851
    // Predicated region
    $region74: #{tpu_custom_call.1} parent=1 // pred_check
      _
    $region75: #{tpu_custom_call.1} parent=1 // pred_check_branch
      %2855 = sbr.rel (0) target = $region77
    $region76: #{tpu_custom_call.1} parent=1 // pred_region
      %s2857 = ssub.s32 256, 256
      %2858 = vsyncadd [#allocation4], %s2857
      %s2859 = sshll.u32 [#allocation11], 4
      %s2860 = int_to_ptr.vmem [resolvable:$true] %s2859
      %2865 = dma.vmem_to_hbm [thread:$0]  %s2860, 256, %s13, [#allocation4], 128, 128, 8
    $region77: #{tpu_custom_call.1} parent=1 // pred_fallthru
      _
    // Predicated region
    $region78: #{tpu_custom_call.1} parent=1 // pred_check
      _
    $region79: #{tpu_custom_call.1} parent=1 // pred_check_branch
      %2867 = sbr.rel (0) target = $region81
    $region80: #{tpu_custom_call.1} parent=1 // pred_region
      %2868 = dma.done [#allocation4], 256
    $region81: #{tpu_custom_call.1} parent=1 // pred_fallthru
      _
    %2869 = vsyncpa [#allocation3], 1
    %2870 = vsyncpa [#allocation6], 1
    %2871 = vsyncpa [#allocation9], 1
    %2872 = vsyncpa [#allocation4], 1

</llo_original>
